<compile_context>
chip_gen: v5e
topology: v5e:2x2
jax: 0.10.0
libtpu: 0.0.40
codegen_flags: <defaults>
</compile_context>

<pallas_src>
import functools

import jax
import jax.numpy as jnp
from jax.experimental import pallas as pl
from jax.experimental.pallas import tpu as pltpu

LANE = 128
_EPS = 1e-5


def _one_hot_bf16(cond):
    # bool -> f32 -> bf16 (cheap VPU converts, robust lowering)
    return cond.astype(jnp.float32).astype(jnp.bfloat16)


def _node_block_kernel(
    # inputs ---------------------------------------------------------------
    x_ref, ea_ref, rowt_ref, col_ref, t_ref,
    nw1_ref, nb1_ref, nw2_ref, nb2_ref,            # node_net MLP
    ew1_ref, eb1_ref, ew2_ref, eb2_ref,            # edge_net MLP
    mw_ref, mb_ref,                                # msg_net Linear
    gw1e_ref, gw1x_ref, gw1t_ref, gb1_ref,         # gate MLP layer 1 (split, hoisted)
    gw2_ref, gb2_ref,                              # gate MLP layer 2
    cw_ref, cb_ref,                                # centroid_lin
    ln_g_ref, ln_b_ref,                            # layer_norm
    ow_ref, ob_ref,                                # out_transform
    # output ---------------------------------------------------------------
    out_ref,
    # scratch ---------------------------------------------------------------
    p_sc,        # (N_pad, 2*H_pad) bf16 : [ node_net(x) | x@gw1x + t*gw1t ]
    aggr_sc,     # (N_pad, H_pad)  f32  : running scatter_sum accumulator
    *, h_real,
):
    f32, bf16 = jnp.float32, jnp.bfloat16
    relu = lambda v: jnp.maximum(v, 0.0)
    dot = functools.partial(jnp.dot, preferred_element_type=f32)

    step = pl.program_id(0)
    n_pad = x_ref.shape[0]
    h_pad = aggr_sc.shape[1]

    # ---- step 0: per-node precompute (hoisted out of the per-edge loop) ----
    @pl.when(step == 0)
    def _init():
        x = x_ref[...]                                            # bf16 (N, D)
        h = relu(dot(x, nw1_ref[...]) + nb1_ref[...])
        h = dot(h.astype(bf16), nw2_ref[...]) + nb2_ref[...]      # node_net(x)
        p_sc[:, :h_pad] = h.astype(bf16)
        # node-indexed part of the gate's first layer, once per node
        g = dot(x, gw1x_ref[...]) + t_ref[...] * gw1t_ref[...]
        p_sc[:, h_pad:] = g.astype(bf16)
        aggr_sc[...] = jnp.zeros_like(aggr_sc)

    # ---- per edge tile ------------------------------------------------------
    ea = ea_ref[...]                     # bf16 (Et, De_pad)
    col = col_ref[...]                   # int32 (Et, 1)
    rowt = rowt_ref[...]                 # int32 (1, Et)
    e_tile = ea.shape[0]

    # fused gather of [h_node | gate node term] at col with ONE matmul.
    # Padded edges point at node index >= n_pad -> all-zero one-hot row.
    col_oh = _one_hot_bf16(
        jax.lax.broadcasted_iota(jnp.int32, (e_tile, n_pad), 1) == col)   # (Et, N)
    gath = dot(col_oh, p_sc[...])                                         # (Et, 2H)
    h_node_col = gath[:, :h_pad]
    gnode_col = gath[:, h_pad:]

    # edge_net(edge_attr)
    h_edge = relu(dot(ea, ew1_ref[...]) + eb1_ref[...])
    h_edge = dot(h_edge.astype(bf16), ew2_ref[...]) + eb2_ref[...]

    # msg_net(h_edge * h_node[col])
    msg = dot((h_edge * h_node_col).astype(bf16), mw_ref[...]) + mb_ref[...]

    # gate = MLP(cat([edge_attr, x[col], node_time[col]])): edge part here,
    # node part gathered from the hoisted precompute.
    g1 = dot(ea, gw1e_ref[...]) + gnode_col + gb1_ref[...]
    gate = dot(relu(g1).astype(bf16), gw2_ref[...]) + gb2_ref[...]
    msg = msg * jax.nn.sigmoid(gate)

    # scatter_sum(msg, row): one-hot built directly transposed (N, Et),
    # so no explicit XLU transpose; padded edges -> all-zero columns.
    row_oh_t = _one_hot_bf16(
        jax.lax.broadcasted_iota(jnp.int32, (n_pad, e_tile), 0) == rowt)  # (N, Et)
    aggr_sc[...] += dot(row_oh_t, msg.astype(bf16))

    # ---- last step: finalize node update -----------------------------------
    @pl.when(step == pl.num_programs(0) - 1)
    def _finalize():
        x = x_ref[...]
        out = dot(x, cw_ref[...]) + cb_ref[...] + aggr_sc[...]            # (N, H) f32
        # masked LayerNorm over the real hidden lanes (padded lanes are exact 0)
        lane = jax.lax.broadcasted_iota(jnp.int32, out.shape, 1)
        mask = (lane < h_real).astype(f32)
        inv_h = 1.0 / h_real
        mean = jnp.sum(out * mask, axis=-1, keepdims=True) * inv_h
        cen = (out - mean) * mask
        var = jnp.sum(cen * cen, axis=-1, keepdims=True) * inv_h
        y = cen * jax.lax.rsqrt(var + _EPS) * ln_g_ref[...] + ln_b_ref[...]
        y = dot(relu(y).astype(bf16), ow_ref[...]) + ob_ref[...]
        out_ref[...] = y.astype(out_ref.dtype)


def _rup(v, m):
    return (v + m - 1) // m * m


def _pad2(a, rows, cols, dtype):
    a = jnp.asarray(a, dtype)
    return jnp.pad(a, ((0, rows - a.shape[0]), (0, cols - a.shape[1])))


def node_block(x, edge_index, edge_attr, node_time, params, *, e_tile=128):
    N, node_dim = x.shape
    E, edge_dim = edge_attr.shape
    hidden_dim = params["nw2"].shape[1]

    f32, bf16 = jnp.float32, jnp.bfloat16
    n_pad = _rup(N, 16)                   # bf16 sublane packing
    e_pad = _rup(E, e_tile)
    d_pad = _rup(node_dim, LANE)
    de_pad = _rup(edge_dim, LANE)
    h_pad = _rup(hidden_dim, LANE)
    do_pad = _rup(node_dim, LANE)         # lane-dense output

    # activations (bf16 matmul operands), indices, time
    xp = _pad2(x, n_pad, d_pad, bf16)
    eap = _pad2(edge_attr, e_pad, de_pad, bf16)
    tp = _pad2(node_time, n_pad, 1, f32)
    # padded edges carry sentinel node index n_pad -> no one-hot match -> no effect
    rowt = jnp.full((1, e_pad), n_pad, jnp.int32).at[0, :E].set(
        edge_index[0].astype(jnp.int32))
    colp = jnp.full((e_pad, 1), n_pad, jnp.int32).at[:E, 0].set(
        edge_index[1].astype(jnp.int32))

    # weights zero-padded to lane-dense shapes; matmul weights bf16, biases/LN f32
    W = dict(
        nw1=_pad2(params["nw1"], d_pad, h_pad, bf16),
        nb1=_pad2(params["nb1"], 1, h_pad, f32),
        nw2=_pad2(params["nw2"], h_pad, h_pad, bf16),
        nb2=_pad2(params["nb2"], 1, h_pad, f32),
        ew1=_pad2(params["ew1"], de_pad, h_pad, bf16),
        eb1=_pad2(params["eb1"], 1, h_pad, f32),
        ew2=_pad2(params["ew2"], h_pad, h_pad, bf16),
        eb2=_pad2(params["eb2"], 1, h_pad, f32),
        mw=_pad2(params["mw"], h_pad, h_pad, bf16),
        mb=_pad2(params["mb"], 1, h_pad, f32),
        gw1e=_pad2(params["gw1e"], de_pad, h_pad, bf16),
        gw1x=_pad2(params["gw1x"], d_pad, h_pad, bf16),
        gw1t=_pad2(params["gw1t"], 1, h_pad, f32),
        gb1=_pad2(params["gb1"], 1, h_pad, f32),
        gw2=_pad2(params["gw2"], h_pad, h_pad, bf16),
        gb2=_pad2(params["gb2"], 1, h_pad, f32),
        cw=_pad2(params["cw"], d_pad, h_pad, bf16),
        cb=_pad2(params["cb"], 1, h_pad, f32),
        ln_g=_pad2(params["ln_g"], 1, h_pad, f32),
        ln_b=_pad2(params["ln_b"], 1, h_pad, f32),
        ow=_pad2(params["ow"], h_pad, do_pad, bf16),
        ob=_pad2(params["ob"], 1, do_pad, f32),
    )
    w_order = ["nw1", "nb1", "nw2", "nb2", "ew1", "eb1", "ew2", "eb2",
               "mw", "mb", "gw1e", "gw1x", "gw1t", "gb1", "gw2", "gb2",
               "cw", "cb", "ln_g", "ln_b", "ow", "ob"]

    args = (xp, eap, rowt, colp, tp) + tuple(W[k] for k in w_order)

    full = lambda a: pl.BlockSpec(a.shape, lambda e: (0, 0))   # grid-resident block
    in_specs = [
        full(xp),                                              # x
        pl.BlockSpec((e_tile, de_pad), lambda e: (e, 0)),      # edge_attr tile
        pl.BlockSpec((1, e_tile), lambda e: (0, e)),           # row (pre-transposed)
        pl.BlockSpec((e_tile, 1), lambda e: (e, 0)),           # col
        full(tp),                                              # node_time
    ] + [full(W[k]) for k in w_order]
    out_spec = pl.BlockSpec((n_pad, do_pad), lambda e: (0, 0))
    grid = (e_pad // e_tile,)

    # advisory cost estimate for the XLA scheduler
    flops = 2 * (
        n_pad * d_pad * h_pad * 2 + n_pad * h_pad * h_pad            # node precompute
        + e_pad * n_pad * (3 * h_pad)                                # one-hot gather + scatter
        + e_pad * (2 * de_pad * h_pad + 3 * h_pad * h_pad)           # edge_net, msg, gate
        + n_pad * (d_pad * h_pad + h_pad * do_pad)                   # centroid + out_transform
    )
    bytes_accessed = sum(int(a.size) * a.dtype.itemsize for a in args) + n_pad * do_pad * 4
    cost = pl.CostEstimate(flops=int(flops),
                           transcendentals=int(e_pad * h_pad + n_pad),
                           bytes_accessed=int(bytes_accessed))

    kernel = functools.partial(_node_block_kernel, h_real=hidden_dim)
    out = pl.pallas_call(
        kernel,
        out_shape=jax.ShapeDtypeStruct((n_pad, do_pad), jnp.float32),
        grid_spec=pltpu.PrefetchScalarGridSpec(
            num_scalar_prefetch=0,
            grid=grid,
            in_specs=in_specs,
            out_specs=out_spec,
            scratch_shapes=[
                pltpu.VMEM((n_pad, 2 * h_pad), jnp.bfloat16),   # [h_node | gate node term]
                pltpu.VMEM((n_pad, h_pad), jnp.float32),        # scatter_sum accumulator
            ],
        ),
        compiler_params=pltpu.CompilerParams(
            dimension_semantics=("arbitrary",),   # shared (N,H) accumulator across E tiles
            vmem_limit_bytes=32 * 1024 * 1024,    # > v5e 16 MiB default, safe on v6e/v7x
        ),
        cost_estimate=cost,
    )(*args)
    return out[:N, :node_dim]


def init_params(key, node_dim, edge_dim, hidden_dim):
    ks = jax.random.split(key, 16)
    s = 0.1

    def w(k, shape):
        return (s * jax.random.normal(k, shape)).astype(jnp.float32)

    gate_in = edge_dim + node_dim + 1
    gw1 = w(ks[8], (gate_in, hidden_dim))
    params = dict(
        nw1=w(ks[0], (node_dim, hidden_dim)),   nb1=w(ks[1], (1, hidden_dim)),
        nw2=w(ks[2], (hidden_dim, hidden_dim)), nb2=w(ks[3], (1, hidden_dim)),
        ew1=w(ks[4], (edge_dim, hidden_dim)),   eb1=w(ks[5], (1, hidden_dim)),
        ew2=w(ks[6], (hidden_dim, hidden_dim)), eb2=w(ks[7], (1, hidden_dim)),
        mw=w(ks[9], (hidden_dim, hidden_dim)),  mb=w(ks[10], (1, hidden_dim)),
        gw1e=gw1[:edge_dim],
        gw1x=gw1[edge_dim:edge_dim + node_dim],
        gw1t=gw1[edge_dim + node_dim:].reshape(1, hidden_dim),
        gb1=w(ks[11], (1, hidden_dim)),
        gw2=w(ks[12], (hidden_dim, hidden_dim)), gb2=w(ks[13], (1, hidden_dim)),
        cw=w(ks[14], (node_dim, hidden_dim)),    cb=w(ks[15], (1, hidden_dim)),
        ln_g=jnp.ones((1, hidden_dim), jnp.float32),
        ln_b=jnp.zeros((1, hidden_dim), jnp.float32),
        ow=w(jax.random.fold_in(key, 99), (hidden_dim, node_dim)),
        ob=jnp.zeros((1, node_dim), jnp.float32),
    )
    return params


def node_block_ref(x, edge_index, edge_attr, node_time, params):
    """Pure-JAX f32 reference for numerical verification."""
    relu = lambda v: jnp.maximum(v, 0.0)
    row, col = edge_index[0], edge_index[1]
    N = x.shape[0]

    h_node = relu(x @ params["nw1"] + params["nb1"]) @ params["nw2"] + params["nb2"]
    h_edge = relu(edge_attr @ params["ew1"] + params["eb1"]) @ params["ew2"] + params["eb2"]
    msg = (h_edge * h_node[col]) @ params["mw"] + params["mb"]

    gw1 = jnp.concatenate([params["gw1e"], params["gw1x"], params["gw1t"]], axis=0)
    gate_in = jnp.concatenate([edge_attr, x[col], node_time[col]], axis=-1)
    gate = relu(gate_in @ gw1 + params["gb1"]) @ params["gw2"] + params["gb2"]
    msg = msg * jax.nn.sigmoid(gate)

    aggr = jax.ops.segment_sum(msg, row, num_segments=N)
    out = x @ params["cw"] + params["cb"] + aggr
    mean = out.mean(-1, keepdims=True)
    var = ((out - mean) ** 2).mean(-1, keepdims=True)
    out = (out - mean) * jax.lax.rsqrt(var + _EPS) * params["ln_g"] + params["ln_b"]
    return relu(out) @ params["ow"] + params["ob"]


if __name__ == "__main__":
    node_dim, edge_dim, hidden_dim = 16, 8, 32
    N, E = 32, 300                       # 3 edge tiles of 128 after padding

    key = jax.random.PRNGKey(0)
    k_x, k_ea, k_ei, k_t, k_p = jax.random.split(key, 5)

    x = jax.random.normal(k_x, (N, node_dim), jnp.float32)
    edge_attr = jax.random.normal(k_ea, (E, edge_dim), jnp.float32)
    edge_index = jax.random.randint(k_ei, (2, E), 0, N, jnp.int32)
    node_time = jax.random.uniform(k_t, (N, 1), jnp.float32)
    params = init_params(k_p, node_dim, edge_dim, hidden_dim)

    out = node_block(x, edge_index, edge_attr, node_time, params)
    out = jax.block_until_ready(out)

    ref = node_block_ref(x, edge_index, edge_attr, node_time, params)
    # bf16 matmul operands (f32 accumulation) -> loosened tolerance vs f32 reference
    if not jnp.allclose(out, ref, atol=5e-2, rtol=5e-2):
        max_err = float(jnp.max(jnp.abs(out - ref)))
        raise AssertionError(f"Pallas kernel mismatch vs reference, max abs err={max_err}")

    print("KERNEL_OK")
</pallas_src>

<mosaic_0001>
module attributes {stable_mosaic.version = 11 : i64} {
  func.func @_node_block_kernel(%arg0: i32, %arg1: memref<32x128xbf16, #tpu.memory_space<vmem>>, %arg2: memref<128x128xbf16, #tpu.memory_space<vmem>>, %arg3: memref<1x128xi32, #tpu.memory_space<vmem>>, %arg4: memref<128x1xi32, #tpu.memory_space<vmem>>, %arg5: memref<32x1xf32, #tpu.memory_space<vmem>>, %arg6: memref<128x128xbf16, #tpu.memory_space<vmem>>, %arg7: memref<1x128xf32, #tpu.memory_space<vmem>>, %arg8: memref<128x128xbf16, #tpu.memory_space<vmem>>, %arg9: memref<1x128xf32, #tpu.memory_space<vmem>>, %arg10: memref<128x128xbf16, #tpu.memory_space<vmem>>, %arg11: memref<1x128xf32, #tpu.memory_space<vmem>>, %arg12: memref<128x128xbf16, #tpu.memory_space<vmem>>, %arg13: memref<1x128xf32, #tpu.memory_space<vmem>>, %arg14: memref<128x128xbf16, #tpu.memory_space<vmem>>, %arg15: memref<1x128xf32, #tpu.memory_space<vmem>>, %arg16: memref<128x128xbf16, #tpu.memory_space<vmem>>, %arg17: memref<128x128xbf16, #tpu.memory_space<vmem>>, %arg18: memref<1x128xf32, #tpu.memory_space<vmem>>, %arg19: memref<1x128xf32, #tpu.memory_space<vmem>>, %arg20: memref<128x128xbf16, #tpu.memory_space<vmem>>, %arg21: memref<1x128xf32, #tpu.memory_space<vmem>>, %arg22: memref<128x128xbf16, #tpu.memory_space<vmem>>, %arg23: memref<1x128xf32, #tpu.memory_space<vmem>>, %arg24: memref<1x128xf32, #tpu.memory_space<vmem>>, %arg25: memref<1x128xf32, #tpu.memory_space<vmem>>, %arg26: memref<128x128xbf16, #tpu.memory_space<vmem>>, %arg27: memref<1x128xf32, #tpu.memory_space<vmem>>, %arg28: memref<32x128xf32, #tpu.memory_space<vmem>>, %arg29: memref<32x256xbf16, #tpu.memory_space<vmem>>, %arg30: memref<32x128xf32, #tpu.memory_space<vmem>>) attributes {dimension_semantics = [#tpu.dimension_semantics<arbitrary>], iteration_bounds = array<i64: 3>, scalar_prefetch = 0 : i64, scratch_operands = 2 : i64, tpu.core_type = #tpu.core_type<tc>, window_params = [{pipeline_mode = #tpu.pipeline_mode<synchronous>, transform_indices = @transform_0, window_bounds = array<i64: 32, 128>}, {transform_indices = @transform_1, window_bounds = array<i64: 128, 128>}, {transform_indices = @transform_2, window_bounds = array<i64: 1, 128>}, {transform_indices = @transform_3, window_bounds = array<i64: 128, 1>}, {pipeline_mode = #tpu.pipeline_mode<synchronous>, transform_indices = @transform_4, window_bounds = array<i64: 32, 1>}, {pipeline_mode = #tpu.pipeline_mode<synchronous>, transform_indices = @transform_5, window_bounds = array<i64: 128, 128>}, {pipeline_mode = #tpu.pipeline_mode<synchronous>, transform_indices = @transform_6, window_bounds = array<i64: 1, 128>}, {pipeline_mode = #tpu.pipeline_mode<synchronous>, transform_indices = @transform_7, window_bounds = array<i64: 128, 128>}, {pipeline_mode = #tpu.pipeline_mode<synchronous>, transform_indices = @transform_8, window_bounds = array<i64: 1, 128>}, {pipeline_mode = #tpu.pipeline_mode<synchronous>, transform_indices = @transform_9, window_bounds = array<i64: 128, 128>}, {pipeline_mode = #tpu.pipeline_mode<synchronous>, transform_indices = @transform_10, window_bounds = array<i64: 1, 128>}, {pipeline_mode = #tpu.pipeline_mode<synchronous>, transform_indices = @transform_11, window_bounds = array<i64: 128, 128>}, {pipeline_mode = #tpu.pipeline_mode<synchronous>, transform_indices = @transform_12, window_bounds = array<i64: 1, 128>}, {pipeline_mode = #tpu.pipeline_mode<synchronous>, transform_indices = @transform_13, window_bounds = array<i64: 128, 128>}, {pipeline_mode = #tpu.pipeline_mode<synchronous>, transform_indices = @transform_14, window_bounds = array<i64: 1, 128>}, {pipeline_mode = #tpu.pipeline_mode<synchronous>, transform_indices = @transform_15, window_bounds = array<i64: 128, 128>}, {pipeline_mode = #tpu.pipeline_mode<synchronous>, transform_indices = @transform_16, window_bounds = array<i64: 128, 128>}, {pipeline_mode = #tpu.pipeline_mode<synchronous>, transform_indices = @transform_17, window_bounds = array<i64: 1, 128>}, {pipeline_mode = #tpu.pipeline_mode<synchronous>, transform_indices = @transform_18, window_bounds = array<i64: 1, 128>}, {pipeline_mode = #tpu.pipeline_mode<synchronous>, transform_indices = @transform_19, window_bounds = array<i64: 128, 128>}, {pipeline_mode = #tpu.pipeline_mode<synchronous>, transform_indices = @transform_20, window_bounds = array<i64: 1, 128>}, {pipeline_mode = #tpu.pipeline_mode<synchronous>, transform_indices = @transform_21, window_bounds = array<i64: 128, 128>}, {pipeline_mode = #tpu.pipeline_mode<synchronous>, transform_indices = @transform_22, window_bounds = array<i64: 1, 128>}, {pipeline_mode = #tpu.pipeline_mode<synchronous>, transform_indices = @transform_23, window_bounds = array<i64: 1, 128>}, {pipeline_mode = #tpu.pipeline_mode<synchronous>, transform_indices = @transform_24, window_bounds = array<i64: 1, 128>}, {pipeline_mode = #tpu.pipeline_mode<synchronous>, transform_indices = @transform_25, window_bounds = array<i64: 128, 128>}, {pipeline_mode = #tpu.pipeline_mode<synchronous>, transform_indices = @transform_26, window_bounds = array<i64: 1, 128>}, {pipeline_mode = #tpu.pipeline_mode<synchronous>, transform_indices = @transform_27, window_bounds = array<i64: 32, 128>}]} {
    %c0_i32 = arith.constant 0 : i32
    %0 = arith.cmpi eq, %arg0, %c0_i32 : i32
    %1 = arith.extui %0 : i1 to i32
    %c0_i32_0 = arith.constant 0 : i32
    %2 = arith.cmpi ne, %1, %c0_i32_0 : i32
    scf.if %2 {
      %c0_42 = arith.constant 0 : index
      %c0_43 = arith.constant 0 : index
      %70 = vector.load %arg1[%c0_42, %c0_43] : memref<32x128xbf16, #tpu.memory_space<vmem>>, vector<32x128xbf16>
      %c0_44 = arith.constant 0 : index
      %c0_45 = arith.constant 0 : index
      %71 = vector.load %arg6[%c0_44, %c0_45] : memref<128x128xbf16, #tpu.memory_space<vmem>>, vector<128x128xbf16>
      %cst_46 = arith.constant dense<0.000000e+00> : vector<32x128xf32>
      %72 = tpu.matmul %70, %71, %cst_46 {dimension_numbers = #tpu.dot_dimension_numbers<[1], [0], [0], [1], [0, 0, 1, 1], [], []>} : vector<32x128xbf16>, vector<128x128xbf16>, vector<32x128xf32> -> vector<32x128xf32>
      %c0_47 = arith.constant 0 : index
      %c0_48 = arith.constant 0 : index
      %73 = vector.load %arg7[%c0_47, %c0_48] : memref<1x128xf32, #tpu.memory_space<vmem>>, vector<1x128xf32>
      %74 = vector.broadcast %73 : vector<1x128xf32> to vector<32x128xf32>
      %75 = arith.addf %72, %74 : vector<32x128xf32>
      %cst_49 = arith.constant 0.000000e+00 : f32
      %76 = vector.broadcast %cst_49 : f32 to vector<32x128xf32>
      %77 = arith.maximumf %75, %76 : vector<32x128xf32>
      %78 = arith.truncf %77 : vector<32x128xf32> to vector<32x128xbf16>
      %c0_50 = arith.constant 0 : index
      %c0_51 = arith.constant 0 : index
      %79 = vector.load %arg8[%c0_50, %c0_51] : memref<128x128xbf16, #tpu.memory_space<vmem>>, vector<128x128xbf16>
      %cst_52 = arith.constant dense<0.000000e+00> : vector<32x128xf32>
      %80 = tpu.matmul %78, %79, %cst_52 {dimension_numbers = #tpu.dot_dimension_numbers<[1], [0], [0], [1], [0, 0, 1, 1], [], []>} : vector<32x128xbf16>, vector<128x128xbf16>, vector<32x128xf32> -> vector<32x128xf32>
      %c0_53 = arith.constant 0 : index
      %c0_54 = arith.constant 0 : index
      %81 = vector.load %arg9[%c0_53, %c0_54] : memref<1x128xf32, #tpu.memory_space<vmem>>, vector<1x128xf32>
      %82 = vector.broadcast %81 : vector<1x128xf32> to vector<32x128xf32>
      %83 = arith.addf %80, %82 : vector<32x128xf32>
      %84 = arith.truncf %83 : vector<32x128xf32> to vector<32x128xbf16>
      %c0_55 = arith.constant 0 : index
      %c0_56 = arith.constant 0 : index
      %85 = vector.load %arg29[%c0_55, %c0_56] : memref<32x256xbf16, #tpu.memory_space<vmem>>, vector<32x128xbf16>
      tpu.vector_store %arg29[%c0_55, %c0_56], %84 {strides = array<i32>} : memref<32x256xbf16, #tpu.memory_space<vmem>>, vector<32x128xbf16>,
      %c0_57 = arith.constant 0 : index
      %c0_58 = arith.constant 0 : index
      %86 = vector.load %arg17[%c0_57, %c0_58] : memref<128x128xbf16, #tpu.memory_space<vmem>>, vector<128x128xbf16>
      %cst_59 = arith.constant dense<0.000000e+00> : vector<32x128xf32>
      %87 = tpu.matmul %70, %86, %cst_59 {dimension_numbers = #tpu.dot_dimension_numbers<[1], [0], [0], [1], [0, 0, 1, 1], [], []>} : vector<32x128xbf16>, vector<128x128xbf16>, vector<32x128xf32> -> vector<32x128xf32>
      %c0_60 = arith.constant 0 : index
      %c0_61 = arith.constant 0 : index
      %88 = vector.load %arg5[%c0_60, %c0_61] : memref<32x1xf32, #tpu.memory_space<vmem>>, vector<32x1xf32>
      %c0_62 = arith.constant 0 : index
      %c0_63 = arith.constant 0 : index
      %89 = vector.load %arg18[%c0_62, %c0_63] : memref<1x128xf32, #tpu.memory_space<vmem>>, vector<1x128xf32>
      %90 = vector.broadcast %88 : vector<32x1xf32> to vector<32x128xf32>
      %91 = vector.broadcast %89 : vector<1x128xf32> to vector<32x128xf32>
      %92 = arith.mulf %90, %91 : vector<32x128xf32>
      %93 = arith.addf %87, %92 : vector<32x128xf32>
      %94 = arith.truncf %93 : vector<32x128xf32> to vector<32x128xbf16>
      %c0_64 = arith.constant 0 : index
      %c128 = arith.constant 128 : index
      %95 = vector.load %arg29[%c0_64, %c128] : memref<32x256xbf16, #tpu.memory_space<vmem>>, vector<32x128xbf16>
      tpu.vector_store %arg29[%c0_64, %c128], %94 {strides = array<i32>} : memref<32x256xbf16, #tpu.memory_space<vmem>>, vector<32x128xbf16>,
      %cst_65 = arith.constant 0.000000e+00 : f32
      %96 = vector.broadcast %cst_65 : f32 to vector<32x128xf32>
      %c0_66 = arith.constant 0 : index
      %c0_67 = arith.constant 0 : index
      %97 = vector.load %arg30[%c0_66, %c0_67] : memref<32x128xf32, #tpu.memory_space<vmem>>, vector<32x128xf32>
      tpu.vector_store %arg30[%c0_66, %c0_67], %96 {strides = array<i32>} : memref<32x128xf32, #tpu.memory_space<vmem>>, vector<32x128xf32>,
    } else {
    }
    %c0 = arith.constant 0 : index
    %c0_1 = arith.constant 0 : index
    %3 = vector.load %arg2[%c0, %c0_1] : memref<128x128xbf16, #tpu.memory_space<vmem>>, vector<128x128xbf16>
    %c0_2 = arith.constant 0 : index
    %c0_3 = arith.constant 0 : index
    %4 = vector.load %arg4[%c0_2, %c0_3] : memref<128x1xi32, #tpu.memory_space<vmem>>, vector<128x1xi32>
    %c0_4 = arith.constant 0 : index
    %c0_5 = arith.constant 0 : index
    %5 = vector.load %arg3[%c0_4, %c0_5] : memref<1x128xi32, #tpu.memory_space<vmem>>, vector<1x128xi32>
    %6 = tpu.iota {dimensions = array<i32: 1>} : vector<128x32xi32>
    %7 = vector.broadcast %4 : vector<128x1xi32> to vector<128x32xi32>
    %8 = arith.cmpi eq, %6, %7 : vector<128x32xi32>
    %9 = arith.extui %8 : vector<128x32xi1> to vector<128x32xi32>
    %10 = arith.sitofp %9 : vector<128x32xi32> to vector<128x32xf32>
    %11 = arith.truncf %10 : vector<128x32xf32> to vector<128x32xbf16>
    %c0_6 = arith.constant 0 : index
    %c0_7 = arith.constant 0 : index
    %12 = vector.load %arg29[%c0_6, %c0_7] : memref<32x256xbf16, #tpu.memory_space<vmem>>, vector<32x256xbf16>
    %cst = arith.constant dense<0.000000e+00> : vector<128x256xf32>
    %13 = tpu.matmul %11, %12, %cst {dimension_numbers = #tpu.dot_dimension_numbers<[1], [0], [0], [1], [0, 0, 1, 1], [], []>} : vector<128x32xbf16>, vector<32x256xbf16>, vector<128x256xf32> -> vector<128x256xf32>
    %14 = vector.extract_strided_slice %13 {offsets = [0, 0], sizes = [128, 128], strides = [1, 1]} : vector<128x256xf32> to vector<128x128xf32>
    %15 = vector.extract_strided_slice %13 {offsets = [0, 128], sizes = [128, 128], strides = [1, 1]} : vector<128x256xf32> to vector<128x128xf32>
    %c0_8 = arith.constant 0 : index
    %c0_9 = arith.constant 0 : index
    %16 = vector.load %arg10[%c0_8, %c0_9] : memref<128x128xbf16, #tpu.memory_space<vmem>>, vector<128x128xbf16>
    %cst_10 = arith.constant dense<0.000000e+00> : vector<128x128xf32>
    %17 = tpu.matmul %3, %16, %cst_10 {dimension_numbers = #tpu.dot_dimension_numbers<[1], [0], [0], [1], [0, 0, 1, 1], [], []>} : vector<128x128xbf16>, vector<128x128xbf16>, vector<128x128xf32> -> vector<128x128xf32>
    %c0_11 = arith.constant 0 : index
    %c0_12 = arith.constant 0 : index
    %18 = vector.load %arg11[%c0_11, %c0_12] : memref<1x128xf32, #tpu.memory_space<vmem>>, vector<1x128xf32>
    %19 = vector.broadcast %18 : vector<1x128xf32> to vector<128x128xf32>
    %20 = arith.addf %17, %19 : vector<128x128xf32>
    %cst_13 = arith.constant 0.000000e+00 : f32
    %21 = vector.broadcast %cst_13 : f32 to vector<128x128xf32>
    %22 = arith.maximumf %20, %21 : vector<128x128xf32>
    %23 = arith.truncf %22 : vector<128x128xf32> to vector<128x128xbf16>
    %c0_14 = arith.constant 0 : index
    %c0_15 = arith.constant 0 : index
    %24 = vector.load %arg12[%c0_14, %c0_15] : memref<128x128xbf16, #tpu.memory_space<vmem>>, vector<128x128xbf16>
    %cst_16 = arith.constant dense<0.000000e+00> : vector<128x128xf32>
    %25 = tpu.matmul %23, %24, %cst_16 {dimension_numbers = #tpu.dot_dimension_numbers<[1], [0], [0], [1], [0, 0, 1, 1], [], []>} : vector<128x128xbf16>, vector<128x128xbf16>, vector<128x128xf32> -> vector<128x128xf32>
    %c0_17 = arith.constant 0 : index
    %c0_18 = arith.constant 0 : index
    %26 = vector.load %arg13[%c0_17, %c0_18] : memref<1x128xf32, #tpu.memory_space<vmem>>, vector<1x128xf32>
    %27 = vector.broadcast %26 : vector<1x128xf32> to vector<128x128xf32>
    %28 = arith.addf %25, %27 : vector<128x128xf32>
    %29 = arith.mulf %28, %14 : vector<128x128xf32>
    %30 = arith.truncf %29 : vector<128x128xf32> to vector<128x128xbf16>
    %c0_19 = arith.constant 0 : index
    %c0_20 = arith.constant 0 : index
    %31 = vector.load %arg14[%c0_19, %c0_20] : memref<128x128xbf16, #tpu.memory_space<vmem>>, vector<128x128xbf16>
    %cst_21 = arith.constant dense<0.000000e+00> : vector<128x128xf32>
    %32 = tpu.matmul %30, %31, %cst_21 {dimension_numbers = #tpu.dot_dimension_numbers<[1], [0], [0], [1], [0, 0, 1, 1], [], []>} : vector<128x128xbf16>, vector<128x128xbf16>, vector<128x128xf32> -> vector<128x128xf32>
    %c0_22 = arith.constant 0 : index
    %c0_23 = arith.constant 0 : index
    %33 = vector.load %arg15[%c0_22, %c0_23] : memref<1x128xf32, #tpu.memory_space<vmem>>, vector<1x128xf32>
    %34 = vector.broadcast %33 : vector<1x128xf32> to vector<128x128xf32>
    %35 = arith.addf %32, %34 : vector<128x128xf32>
    %c0_24 = arith.constant 0 : index
    %c0_25 = arith.constant 0 : index
    %36 = vector.load %arg16[%c0_24, %c0_25] : memref<128x128xbf16, #tpu.memory_space<vmem>>, vector<128x128xbf16>
    %cst_26 = arith.constant dense<0.000000e+00> : vector<128x128xf32>
    %37 = tpu.matmul %3, %36, %cst_26 {dimension_numbers = #tpu.dot_dimension_numbers<[1], [0], [0], [1], [0, 0, 1, 1], [], []>} : vector<128x128xbf16>, vector<128x128xbf16>, vector<128x128xf32> -> vector<128x128xf32>
    %38 = arith.addf %37, %15 : vector<128x128xf32>
    %c0_27 = arith.constant 0 : index
    %c0_28 = arith.constant 0 : index
    %39 = vector.load %arg19[%c0_27, %c0_28] : memref<1x128xf32, #tpu.memory_space<vmem>>, vector<1x128xf32>
    %40 = vector.broadcast %39 : vector<1x128xf32> to vector<128x128xf32>
    %41 = arith.addf %38, %40 : vector<128x128xf32>
    %cst_29 = arith.constant 0.000000e+00 : f32
    %42 = vector.broadcast %cst_29 : f32 to vector<128x128xf32>
    %43 = arith.maximumf %41, %42 : vector<128x128xf32>
    %44 = arith.truncf %43 : vector<128x128xf32> to vector<128x128xbf16>
    %c0_30 = arith.constant 0 : index
    %c0_31 = arith.constant 0 : index
    %45 = vector.load %arg20[%c0_30, %c0_31] : memref<128x128xbf16, #tpu.memory_space<vmem>>, vector<128x128xbf16>
    %cst_32 = arith.constant dense<0.000000e+00> : vector<128x128xf32>
    %46 = tpu.matmul %44, %45, %cst_32 {dimension_numbers = #tpu.dot_dimension_numbers<[1], [0], [0], [1], [0, 0, 1, 1], [], []>} : vector<128x128xbf16>, vector<128x128xbf16>, vector<128x128xf32> -> vector<128x128xf32>
    %c0_33 = arith.constant 0 : index
    %c0_34 = arith.constant 0 : index
    %47 = vector.load %arg21[%c0_33, %c0_34] : memref<1x128xf32, #tpu.memory_space<vmem>>, vector<1x128xf32>
    %48 = vector.broadcast %47 : vector<1x128xf32> to vector<128x128xf32>
    %49 = arith.addf %46, %48 : vector<128x128xf32>
    %50 = arith.negf %49 : vector<128x128xf32>
    %51 = math.exp %50 : vector<128x128xf32>
    %cst_35 = arith.constant 1.000000e+00 : f32
    %52 = vector.broadcast %cst_35 : f32 to vector<128x128xf32>
    %53 = arith.addf %52, %51 : vector<128x128xf32>
    %54 = arith.divf %52, %53 : vector<128x128xf32>
    %55 = arith.mulf %35, %54 : vector<128x128xf32>
    %56 = tpu.iota {dimensions = array<i32: 0>} : vector<32x128xi32>
    %57 = vector.broadcast %5 : vector<1x128xi32> to vector<32x128xi32>
    %58 = arith.cmpi eq, %56, %57 : vector<32x128xi32>
    %59 = arith.extui %58 : vector<32x128xi1> to vector<32x128xi32>
    %60 = arith.sitofp %59 : vector<32x128xi32> to vector<32x128xf32>
    %61 = arith.truncf %60 : vector<32x128xf32> to vector<32x128xbf16>
    %c0_36 = arith.constant 0 : index
    %c0_37 = arith.constant 0 : index
    %62 = vector.load %arg30[%c0_36, %c0_37] : memref<32x128xf32, #tpu.memory_space<vmem>>, vector<32x128xf32>
    %63 = arith.truncf %55 : vector<128x128xf32> to vector<128x128xbf16>
    %cst_38 = arith.constant dense<0.000000e+00> : vector<32x128xf32>
    %64 = tpu.matmul %61, %63, %cst_38 {dimension_numbers = #tpu.dot_dimension_numbers<[1], [0], [0], [1], [0, 0, 1, 1], [], []>} : vector<32x128xbf16>, vector<128x128xbf16>, vector<32x128xf32> -> vector<32x128xf32>
    %65 = arith.addf %62, %64 : vector<32x128xf32>
    %c0_39 = arith.constant 0 : index
    %c0_40 = arith.constant 0 : index
    %66 = vector.load %arg30[%c0_39, %c0_40] : memref<32x128xf32, #tpu.memory_space<vmem>>, vector<32x128xf32>
    tpu.vector_store %arg30[%c0_39, %c0_40], %65 {strides = array<i32>} : memref<32x128xf32, #tpu.memory_space<vmem>>, vector<32x128xf32>,
    %c2_i32 = arith.constant 2 : i32
    %67 = arith.cmpi eq, %arg0, %c2_i32 : i32
    %68 = arith.extui %67 : i1 to i32
    %c0_i32_41 = arith.constant 0 : i32
    %69 = arith.cmpi ne, %68, %c0_i32_41 : i32
    scf.if %69 {
      %c0_42 = arith.constant 0 : index
      %c0_43 = arith.constant 0 : index
      %70 = vector.load %arg1[%c0_42, %c0_43] : memref<32x128xbf16, #tpu.memory_space<vmem>>, vector<32x128xbf16>
      %c0_44 = arith.constant 0 : index
      %c0_45 = arith.constant 0 : index
      %71 = vector.load %arg22[%c0_44, %c0_45] : memref<128x128xbf16, #tpu.memory_space<vmem>>, vector<128x128xbf16>
      %cst_46 = arith.constant dense<0.000000e+00> : vector<32x128xf32>
      %72 = tpu.matmul %70, %71, %cst_46 {dimension_numbers = #tpu.dot_dimension_numbers<[1], [0], [0], [1], [0, 0, 1, 1], [], []>} : vector<32x128xbf16>, vector<128x128xbf16>, vector<32x128xf32> -> vector<32x128xf32>
      %c0_47 = arith.constant 0 : index
      %c0_48 = arith.constant 0 : index
      %73 = vector.load %arg23[%c0_47, %c0_48] : memref<1x128xf32, #tpu.memory_space<vmem>>, vector<1x128xf32>
      %74 = vector.broadcast %73 : vector<1x128xf32> to vector<32x128xf32>
      %75 = arith.addf %72, %74 : vector<32x128xf32>
      %c0_49 = arith.constant 0 : index
      %c0_50 = arith.constant 0 : index
      %76 = vector.load %arg30[%c0_49, %c0_50] : memref<32x128xf32, #tpu.memory_space<vmem>>, vector<32x128xf32>
      %77 = arith.addf %75, %76 : vector<32x128xf32>
      %78 = tpu.iota {dimensions = array<i32: 1>} : vector<32x128xi32>
      %c32_i32 = arith.constant 32 : i32
      %79 = vector.broadcast %c32_i32 : i32 to vector<32x128xi32>
      %80 = arith.cmpi slt, %78, %79 : vector<32x128xi32>
      %81 = arith.extui %80 : vector<32x128xi1> to vector<32x128xi32>
      %82 = arith.sitofp %81 : vector<32x128xi32> to vector<32x128xf32>
      %83 = arith.mulf %77, %82 : vector<32x128xf32>
      %cst_51 = arith.constant dense<0.000000e+00> : vector<32xf32>
      %84 = vector.multi_reduction <add>, %83, %cst_51 [1] : vector<32x128xf32> to vector<32xf32>
      %85 = vector.shape_cast %84 : vector<32xf32> to vector<32x1xf32>
      %cst_52 = arith.constant 3.125000e-02 : f32
      %86 = vector.broadcast %cst_52 : f32 to vector<32x1xf32>
      %87 = arith.mulf %85, %86 : vector<32x1xf32>
      %88 = vector.broadcast %87 : vector<32x1xf32> to vector<32x128xf32>
      %89 = arith.subf %77, %88 : vector<32x128xf32>
      %90 = arith.mulf %89, %82 : vector<32x128xf32>
      %91 = arith.mulf %90, %90 : vector<32x128xf32>
      %cst_53 = arith.constant dense<0.000000e+00> : vector<32xf32>
      %92 = vector.multi_reduction <add>, %91, %cst_53 [1] : vector<32x128xf32> to vector<32xf32>
      %93 = vector.shape_cast %92 : vector<32xf32> to vector<32x1xf32>
      %cst_54 = arith.constant 3.125000e-02 : f32
      %94 = vector.broadcast %cst_54 : f32 to vector<32x1xf32>
      %95 = arith.mulf %93, %94 : vector<32x1xf32>
      %cst_55 = arith.constant 9.99999974E-6 : f32
      %96 = vector.broadcast %cst_55 : f32 to vector<32x1xf32>
      %97 = arith.addf %95, %96 : vector<32x1xf32>
      %98 = math.rsqrt %97 : vector<32x1xf32>
      %99 = vector.broadcast %98 : vector<32x1xf32> to vector<32x128xf32>
      %100 = arith.mulf %90, %99 : vector<32x128xf32>
      %c0_56 = arith.constant 0 : index
      %c0_57 = arith.constant 0 : index
      %101 = vector.load %arg24[%c0_56, %c0_57] : memref<1x128xf32, #tpu.memory_space<vmem>>, vector<1x128xf32>
      %102 = vector.broadcast %101 : vector<1x128xf32> to vector<32x128xf32>
      %103 = arith.mulf %100, %102 : vector<32x128xf32>
      %c0_58 = arith.constant 0 : index
      %c0_59 = arith.constant 0 : index
      %104 = vector.load %arg25[%c0_58, %c0_59] : memref<1x128xf32, #tpu.memory_space<vmem>>, vector<1x128xf32>
      %105 = vector.broadcast %104 : vector<1x128xf32> to vector<32x128xf32>
      %106 = arith.addf %103, %105 : vector<32x128xf32>
      %cst_60 = arith.constant 0.000000e+00 : f32
      %107 = vector.broadcast %cst_60 : f32 to vector<32x128xf32>
      %108 = arith.maximumf %106, %107 : vector<32x128xf32>
      %109 = arith.truncf %108 : vector<32x128xf32> to vector<32x128xbf16>
      %c0_61 = arith.constant 0 : index
      %c0_62 = arith.constant 0 : index
      %110 = vector.load %arg26[%c0_61, %c0_62] : memref<128x128xbf16, #tpu.memory_space<vmem>>, vector<128x128xbf16>
      %cst_63 = arith.constant dense<0.000000e+00> : vector<32x128xf32>
      %111 = tpu.matmul %109, %110, %cst_63 {dimension_numbers = #tpu.dot_dimension_numbers<[1], [0], [0], [1], [0, 0, 1, 1], [], []>} : vector<32x128xbf16>, vector<128x128xbf16>, vector<32x128xf32> -> vector<32x128xf32>
      %c0_64 = arith.constant 0 : index
      %c0_65 = arith.constant 0 : index
      %112 = vector.load %arg27[%c0_64, %c0_65] : memref<1x128xf32, #tpu.memory_space<vmem>>, vector<1x128xf32>
      %113 = vector.broadcast %112 : vector<1x128xf32> to vector<32x128xf32>
      %114 = arith.addf %111, %113 : vector<32x128xf32>
      %c0_66 = arith.constant 0 : index
      %c0_67 = arith.constant 0 : index
      %115 = vector.load %arg28[%c0_66, %c0_67] : memref<32x128xf32, #tpu.memory_space<vmem>>, vector<32x128xf32>
      tpu.vector_store %arg28[%c0_66, %c0_67], %114 {strides = array<i32>} : memref<32x128xf32, #tpu.memory_space<vmem>>, vector<32x128xf32>,
    } else {
    }
    return
  }
  func.func @transform_0(%arg0: i32) -> (i32, i32) {
    %c0_i32 = arith.constant 0 : i32
    %c0_i32_0 = arith.constant 0 : i32
    %c0_i32_1 = arith.constant 0 : i32
    return %c0_i32, %c0_i32_0 : i32, i32
  }
  func.func @transform_1(%arg0: i32) -> (i32, i32) {
    %c0_i32 = arith.constant 0 : i32
    %c0_i32_0 = arith.constant 0 : i32
    return %arg0, %c0_i32 : i32, i32
  }
  func.func @transform_2(%arg0: i32) -> (i32, i32) {
    %c0_i32 = arith.constant 0 : i32
    %c0_i32_0 = arith.constant 0 : i32
    return %c0_i32, %arg0 : i32, i32
  }
  func.func @transform_3(%arg0: i32) -> (i32, i32) {
    %c0_i32 = arith.constant 0 : i32
    %c0_i32_0 = arith.constant 0 : i32
    return %arg0, %c0_i32 : i32, i32
  }
  func.func @transform_4(%arg0: i32) -> (i32, i32) {
    %c0_i32 = arith.constant 0 : i32
    %c0_i32_0 = arith.constant 0 : i32
    %c0_i32_1 = arith.constant 0 : i32
    return %c0_i32, %c0_i32_0 : i32, i32
  }
  func.func @transform_5(%arg0: i32) -> (i32, i32) {
    %c0_i32 = arith.constant 0 : i32
    %c0_i32_0 = arith.constant 0 : i32
    %c0_i32_1 = arith.constant 0 : i32
    return %c0_i32, %c0_i32_0 : i32, i32
  }
  func.func @transform_6(%arg0: i32) -> (i32, i32) {
    %c0_i32 = arith.constant 0 : i32
    %c0_i32_0 = arith.constant 0 : i32
    %c0_i32_1 = arith.constant 0 : i32
    return %c0_i32, %c0_i32_0 : i32, i32
  }
  func.func @transform_7(%arg0: i32) -> (i32, i32) {
    %c0_i32 = arith.constant 0 : i32
    %c0_i32_0 = arith.constant 0 : i32
    %c0_i32_1 = arith.constant 0 : i32
    return %c0_i32, %c0_i32_0 : i32, i32
  }
  func.func @transform_8(%arg0: i32) -> (i32, i32) {
    %c0_i32 = arith.constant 0 : i32
    %c0_i32_0 = arith.constant 0 : i32
    %c0_i32_1 = arith.constant 0 : i32
    return %c0_i32, %c0_i32_0 : i32, i32
  }
  func.func @transform_9(%arg0: i32) -> (i32, i32) {
    %c0_i32 = arith.constant 0 : i32
    %c0_i32_0 = arith.constant 0 : i32
    %c0_i32_1 = arith.constant 0 : i32
    return %c0_i32, %c0_i32_0 : i32, i32
  }
  func.func @transform_10(%arg0: i32) -> (i32, i32) {
    %c0_i32 = arith.constant 0 : i32
    %c0_i32_0 = arith.constant 0 : i32
    %c0_i32_1 = arith.constant 0 : i32
    return %c0_i32, %c0_i32_0 : i32, i32
  }
  func.func @transform_11(%arg0: i32) -> (i32, i32) {
    %c0_i32 = arith.constant 0 : i32
    %c0_i32_0 = arith.constant 0 : i32
    %c0_i32_1 = arith.constant 0 : i32
    return %c0_i32, %c0_i32_0 : i32, i32
  }
  func.func @transform_12(%arg0: i32) -> (i32, i32) {
    %c0_i32 = arith.constant 0 : i32
    %c0_i32_0 = arith.constant 0 : i32
    %c0_i32_1 = arith.constant 0 : i32
    return %c0_i32, %c0_i32_0 : i32, i32
  }
  func.func @transform_13(%arg0: i32) -> (i32, i32) {
    %c0_i32 = arith.constant 0 : i32
    %c0_i32_0 = arith.constant 0 : i32
    %c0_i32_1 = arith.constant 0 : i32
    return %c0_i32, %c0_i32_0 : i32, i32
  }
  func.func @transform_14(%arg0: i32) -> (i32, i32) {
    %c0_i32 = arith.constant 0 : i32
    %c0_i32_0 = arith.constant 0 : i32
    %c0_i32_1 = arith.constant 0 : i32
    return %c0_i32, %c0_i32_0 : i32, i32
  }
  func.func @transform_15(%arg0: i32) -> (i32, i32) {
    %c0_i32 = arith.constant 0 : i32
    %c0_i32_0 = arith.constant 0 : i32
    %c0_i32_1 = arith.constant 0 : i32
    return %c0_i32, %c0_i32_0 : i32, i32
  }
  func.func @transform_16(%arg0: i32) -> (i32, i32) {
    %c0_i32 = arith.constant 0 : i32
    %c0_i32_0 = arith.constant 0 : i32
    %c0_i32_1 = arith.constant 0 : i32
    return %c0_i32, %c0_i32_0 : i32, i32
  }
  func.func @transform_17(%arg0: i32) -> (i32, i32) {
    %c0_i32 = arith.constant 0 : i32
    %c0_i32_0 = arith.constant 0 : i32
    %c0_i32_1 = arith.constant 0 : i32
    return %c0_i32, %c0_i32_0 : i32, i32
  }
  func.func @transform_18(%arg0: i32) -> (i32, i32) {
    %c0_i32 = arith.constant 0 : i32
    %c0_i32_0 = arith.constant 0 : i32
    %c0_i32_1 = arith.constant 0 : i32
    return %c0_i32, %c0_i32_0 : i32, i32
  }
  func.func @transform_19(%arg0: i32) -> (i32, i32) {
    %c0_i32 = arith.constant 0 : i32
    %c0_i32_0 = arith.constant 0 : i32
    %c0_i32_1 = arith.constant 0 : i32
    return %c0_i32, %c0_i32_0 : i32, i32
  }
  func.func @transform_20(%arg0: i32) -> (i32, i32) {
    %c0_i32 = arith.constant 0 : i32
    %c0_i32_0 = arith.constant 0 : i32
    %c0_i32_1 = arith.constant 0 : i32
    return %c0_i32, %c0_i32_0 : i32, i32
  }
  func.func @transform_21(%arg0: i32) -> (i32, i32) {
    %c0_i32 = arith.constant 0 : i32
    %c0_i32_0 = arith.constant 0 : i32
    %c0_i32_1 = arith.constant 0 : i32
    return %c0_i32, %c0_i32_0 : i32, i32
  }
  func.func @transform_22(%arg0: i32) -> (i32, i32) {
    %c0_i32 = arith.constant 0 : i32
    %c0_i32_0 = arith.constant 0 : i32
    %c0_i32_1 = arith.constant 0 : i32
    return %c0_i32, %c0_i32_0 : i32, i32
  }
  func.func @transform_23(%arg0: i32) -> (i32, i32) {
    %c0_i32 = arith.constant 0 : i32
    %c0_i32_0 = arith.constant 0 : i32
    %c0_i32_1 = arith.constant 0 : i32
    return %c0_i32, %c0_i32_0 : i32, i32
  }
  func.func @transform_24(%arg0: i32) -> (i32, i32) {
    %c0_i32 = arith.constant 0 : i32
    %c0_i32_0 = arith.constant 0 : i32
    %c0_i32_1 = arith.constant 0 : i32
    return %c0_i32, %c0_i32_0 : i32, i32
  }
  func.func @transform_25(%arg0: i32) -> (i32, i32) {
    %c0_i32 = arith.constant 0 : i32
    %c0_i32_0 = arith.constant 0 : i32
    %c0_i32_1 = arith.constant 0 : i32
    return %c0_i32, %c0_i32_0 : i32, i32
  }
  func.func @transform_26(%arg0: i32) -> (i32, i32) {
    %c0_i32 = arith.constant 0 : i32
    %c0_i32_0 = arith.constant 0 : i32
    %c0_i32_1 = arith.constant 0 : i32
    return %c0_i32, %c0_i32_0 : i32, i32
  }
  func.func @transform_27(%arg0: i32) -> (i32, i32) {
    %c0_i32 = arith.constant 0 : i32
    %c0_i32_0 = arith.constant 0 : i32
    %c0_i32_1 = arith.constant 0 : i32
    return %c0_i32, %c0_i32_0 : i32, i32
  }
}

</mosaic_0001>

<llo_original>
// kernel: tpu_custom_call.1
$region0: #{tpu_custom_call.1}
  #allocation0 [shape = 'u32[]', space=smem, size = 0x4, offset = 0x4, fixed_abs, tag = 'smem constant byte address 0x4 - core index']
  #allocation1 [shape = 'u32[72,128]{1,0:T(1,128)}', space=vmem, size = 0x9000, scoped, tag = 'internal scratch']
  #allocation2 [shape = 'bf16[32,256]{1,0:T(8,128)(2,1)}', space=vmem, size = 0x4000, scoped, tag = 'scratch operand']
  #allocation3 [shape = 'f32[32,128]{1,0:T(8,128)}', space=vmem, size = 0x4000, scoped, tag = 'scratch operand']
  %s0 = inlined_call_operand.vmem [shape: bf16[32,128], index: 0, kind: input, shape index: {}]
  %s1 = inlined_call_operand.vmem [shape: bf16[384,128], index: 1, kind: input, shape index: {}]
  %s2 = inlined_call_operand.vmem [shape: s32[1,384], index: 2, kind: input, shape index: {}]
  %s3 = inlined_call_operand.vmem [shape: s32[384,1], index: 3, kind: input, shape index: {}]
  %s4 = inlined_call_operand.vmem [shape: f32[32,1], index: 4, kind: input, shape index: {}]
  %s5 = inlined_call_operand.vmem [shape: bf16[128,128], index: 5, kind: input, shape index: {}]
  %s6 = inlined_call_operand.vmem [shape: f32[1,128], index: 6, kind: input, shape index: {}]
  %s7 = inlined_call_operand.vmem [shape: bf16[128,128], index: 7, kind: input, shape index: {}]
  %s8 = inlined_call_operand.vmem [shape: f32[1,128], index: 8, kind: input, shape index: {}]
  %s9 = inlined_call_operand.vmem [shape: bf16[128,128], index: 9, kind: input, shape index: {}]
  %s10 = inlined_call_operand.vmem [shape: f32[1,128], index: 10, kind: input, shape index: {}]
  %s11 = inlined_call_operand.hbm [shape: bf16[128,128], index: 11, kind: input, shape index: {}]
  %s12 = inlined_call_operand.vmem [shape: f32[1,128], index: 12, kind: input, shape index: {}]
  %s13 = inlined_call_operand.hbm [shape: bf16[128,128], index: 13, kind: input, shape index: {}]
  %s14 = inlined_call_operand.vmem [shape: f32[1,128], index: 14, kind: input, shape index: {}]
  %s15 = inlined_call_operand.hbm [shape: bf16[128,128], index: 15, kind: input, shape index: {}]
  %s16 = inlined_call_operand.hbm [shape: bf16[128,128], index: 16, kind: input, shape index: {}]
  %s17 = inlined_call_operand.vmem [shape: f32[1,128], index: 17, kind: input, shape index: {}]
  %s18 = inlined_call_operand.vmem [shape: f32[1,128], index: 18, kind: input, shape index: {}]
  %s19 = inlined_call_operand.hbm [shape: bf16[128,128], index: 19, kind: input, shape index: {}]
  %s20 = inlined_call_operand.vmem [shape: f32[1,128], index: 20, kind: input, shape index: {}]
  %s21 = inlined_call_operand.hbm [shape: bf16[128,128], index: 21, kind: input, shape index: {}]
  %s22 = inlined_call_operand.vmem [shape: f32[1,128], index: 22, kind: input, shape index: {}]
  %s23 = inlined_call_operand.vmem [shape: f32[1,128], index: 23, kind: input, shape index: {}]
  %s24 = inlined_call_operand.vmem [shape: f32[1,128], index: 24, kind: input, shape index: {}]
  %s25 = inlined_call_operand.hbm [shape: bf16[128,128], index: 25, kind: input, shape index: {}]
  %s26 = inlined_call_operand.vmem [shape: f32[1,128], index: 26, kind: input, shape index: {}]
  %s27 = inlined_call_operand.hbm [shape: f32[32,128], index: 27, kind: output, shape index: {}]
  %s28 = sld [smem:[#allocation0]]
  $region177: #{tpu_custom_call.1} parent=0
    _
  %s30 = ssub.s32 1, %s28
  %s31 = scalar_select 0, %s30, %s28
  $region1: #{tpu_custom_call.1} parent=0
    #allocation4 [shape = 'u8[32768]{0}', space=vmem, size = 0x8000, scoped, tag = 'input window, operand 11, single buffered']
    #allocation5 [shape = 's32[2]{0}', space=sflag, size = 0x8, scoped, tag = 'scoped memory for tpu_custom_call.1']
    #allocation6 [shape = 's32[2]{0}', space=sflag, size = 0x8, scoped, tag = 'scoped memory for tpu_custom_call.1']
    #allocation7 [shape = 'u8[32768]{0}', space=vmem, size = 0x8000, scoped, tag = 'input window, operand 13, single buffered']
    #allocation8 [shape = 's32[1]{0}', space=sflag, size = 0x4, scoped, tag = 'scoped memory for tpu_custom_call.1']
    #allocation9 [shape = 'u8[32768]{0}', space=vmem, size = 0x8000, scoped, tag = 'input window, operand 15, single buffered']
    #allocation10 [shape = 'u8[32768]{0}', space=vmem, size = 0x8000, scoped, tag = 'input window, operand 16, single buffered']
    #allocation11 [shape = 's32[1]{0}', space=sflag, size = 0x4, scoped, tag = 'scoped memory for tpu_custom_call.1']
    #allocation12 [shape = 'u8[32768]{0}', space=vmem, size = 0x8000, scoped, tag = 'input window, operand 19, single buffered']
    #allocation13 [shape = 'u8[32768]{0}', space=vmem, size = 0x8000, scoped, tag = 'input window, operand 21, single buffered']
    #allocation14 [shape = 's32[1]{0}', space=sflag, size = 0x4, scoped, tag = 'scoped memory for tpu_custom_call.1']
    #allocation15 [shape = 'u8[32768]{0}', space=vmem, size = 0x8000, scoped, tag = 'input window, operand 25, single buffered']
    #allocation16 [shape = 'u8[16384]{0}', space=vmem, size = 0x4000, scoped, tag = 'output window, operand 0, single buffered']
    %32 = vsyncpa [#allocation5], 0
    %33 = vsyncpa [#allocation8], 0
    %34 = vsyncpa [#allocation11], 0
    %35 = vsyncpa [#allocation14], 0
    %36 = vsyncpa [#allocation6], 0
    loop: start=0, step=1, limit=5
    $region2: #{tpu_custom_call.1} parent=1 // loop_pre_header
      _
    $region3: #{tpu_custom_call.1} parent=1 // loop_header
      %s38 = sphi 0, %s42
      %p39 = scmp.ge.s32.totalorder %s38, 5
      %s46 = sphi 0, %s46
      %s48 = sphi 0, %s46
      %s49 = sphi 0, %s48
      %s63 = sphi 0, %s49
      %s69 = sphi 0, %s71
      %s72 = sphi 0, %s69
      %s73 = sphi 0, %s72
      %s89 = sphi 0, %s73
      %s95 = sphi 0, %s97
      %s98 = sphi 0, %s95
      %s99 = sphi 0, %s98
      %s115 = sphi 0, %s99
      %s121 = sphi 0, %s123
      %s124 = sphi 0, %s121
      %s125 = sphi 0, %s124
      %s141 = sphi 0, %s125
      %s145 = sphi 0, %s145
      %s147 = sphi 0, %s145
      %s148 = sphi 0, %s147
      %s162 = sphi 0, %s148
      %s166 = sphi 0, %s166
      %s168 = sphi 0, %s166
      %s169 = sphi 0, %s168
      %s183 = sphi 0, %s169
      %s187 = sphi 0, %s187
      %s189 = sphi 0, %s187
      %s190 = sphi 0, %s189
      %s204 = sphi 0, %s190
      %s208 = sphi 0, %s208
      %s210 = sphi 0, %s208
      %s211 = sphi 0, %s210
      %s225 = sphi 0, %s211
      %s229 = sphi 0, %s229
      %s231 = sphi 0, %s229
      %s232 = sphi 0, %s231
      %s246 = sphi 0, %s232
      %s250 = sphi 0, %s250
      %s252 = sphi 0, %s250
      %s253 = sphi 0, %s252
      %s267 = sphi 0, %s253
      %s271 = sphi 0, %s271
      %s273 = sphi 0, %s271
      %s274 = sphi 0, %s273
      %s288 = sphi 0, %s274
      %s292 = sphi 0, %s292
      %s294 = sphi 0, %s292
      %s295 = sphi 0, %s294
      %s309 = sphi 0, %s295
      %s313 = sphi 0, %s313
      %s315 = sphi 0, %s313
      %s316 = sphi 0, %s315
      %s330 = sphi 0, %s316
      %s334 = sphi 0, %s334
      %s336 = sphi 0, %s334
      %s337 = sphi 0, %s336
      %s351 = sphi 0, %s337
      %s355 = sphi 0, %s355
      %s357 = sphi 0, %s355
      %s358 = sphi 0, %s357
      %s372 = sphi 0, %s358
      %s376 = sphi 0, %s376
      %s378 = sphi 0, %s376
      %s379 = sphi 0, %s378
      %s393 = sphi 0, %s379
      %s397 = sphi 0, %s397
      %s399 = sphi 0, %s397
      %s400 = sphi 0, %s399
      %s414 = sphi 0, %s400
      %s418 = sphi 0, %s418
      %s420 = sphi 0, %s418
      %s421 = sphi 0, %s420
      %s435 = sphi 0, %s421
      %s439 = sphi 0, %s439
      %s441 = sphi 0, %s439
      %s442 = sphi 0, %s441
      %s456 = sphi 0, %s442
      %s460 = sphi 0, %s460
      %s462 = sphi 0, %s460
      %s463 = sphi 0, %s462
      %s477 = sphi 0, %s463
      %s481 = sphi 0, %s481
      %s483 = sphi 0, %s481
      %s484 = sphi 0, %s483
      %s498 = sphi 0, %s484
      %s502 = sphi 0, %s502
      %s504 = sphi 0, %s502
      %s505 = sphi 0, %s504
      %s519 = sphi 0, %s505
      %s523 = sphi 0, %s523
      %s525 = sphi 0, %s523
      %s526 = sphi 0, %s525
      %s540 = sphi 0, %s526
      %s544 = sphi 0, %s544
      %s546 = sphi 0, %s544
      %s547 = sphi 0, %s546
      %s561 = sphi 0, %s547
      %s565 = sphi 0, %s565
      %s567 = sphi 0, %s565
      %s568 = sphi 0, %s567
      %s582 = sphi 0, %s568
      %s586 = sphi 0, %s586
      %s588 = sphi 0, %s586
      %s589 = sphi 0, %s588
      %s603 = sphi 0, %s589
      %s607 = sphi 0, %s607
      %s609 = sphi 0, %s607
      %s610 = sphi 0, %s609
      %s624 = sphi 0, %s610
      %s628 = sphi 0, %s628
      %s630 = sphi 0, %s628
      %s631 = sphi 0, %s630
      %s645 = sphi 0, %s631
    $region4: #{tpu_custom_call.1} parent=1 // loop_header_branch
      %41 = sbr.rel (%p39) target = $region8
    $region5: #{tpu_custom_call.1} parent=1 // loop_body
      %s43 = ssub.s32 %s38, 1
      %s44 = ssub.s32 %s38, 2
      %s45 = sadd.s32 %s38, 1
      %s47 = sadd.s32 %s46, 1
      %p50 = scmp.eq.s32.totalorder %s38, 2
      %p51 = scmp.ne.s32.totalorder %s46, %s48
      %p52 = scmp.eq.s32.totalorder %s38, 0
      %p53 = por %p51, %p52
      %p54 = scmp.ne.s32.totalorder %s46, %s48
      %p55 = scmp.eq.s32.totalorder %s43, 2
      %p56 = por %p54, %p55
      %p57 = scmp.ne.s32.totalorder %s48, %s49
      %p58 = scmp.eq.s32.totalorder %s43, 0
      %p59 = por %p57, %p58
      %p60 = scmp.ne.s32.totalorder %s48, %s49
      %p61 = scmp.eq.s32.totalorder %s44, 2
      %p62 = por %p60, %p61
      %p64 = scmp.ne.s32.totalorder %s49, %s63
      %p65 = scmp.eq.s32.totalorder %s44, 0
      %p66 = por %p64, %p65
      %s67 = ssub.s32 %s38, %s45
      %p68 = scmp.eq.s32.totalorder %s67, 0
      %s70 = sadd.s32 %s69, 1
      %s71 = scalar_select %p68, %s69, %s70
      %p74 = pneg %p68
      %p75 = scmp.eq.s32.totalorder %s38, 2
      %p76 = por %p74, %p75
      %p77 = scmp.ne.s32.totalorder %s69, %s72
      %p78 = scmp.eq.s32.totalorder %s38, 0
      %p79 = por %p77, %p78
      %p80 = scmp.ne.s32.totalorder %s69, %s72
      %p81 = scmp.eq.s32.totalorder %s43, 2
      %p82 = por %p80, %p81
      %p83 = scmp.ne.s32.totalorder %s72, %s73
      %p84 = scmp.eq.s32.totalorder %s43, 0
      %p85 = por %p83, %p84
      %p86 = scmp.ne.s32.totalorder %s72, %s73
      %p87 = scmp.eq.s32.totalorder %s44, 2
      %p88 = por %p86, %p87
      %p90 = scmp.ne.s32.totalorder %s73, %s89
      %p91 = scmp.eq.s32.totalorder %s44, 0
      %p92 = por %p90, %p91
      %s93 = ssub.s32 %s38, %s45
      %p94 = scmp.eq.s32.totalorder %s93, 0
      %s96 = sadd.s32 %s95, 1
      %s97 = scalar_select %p94, %s95, %s96
      %p100 = pneg %p94
      %p101 = scmp.eq.s32.totalorder %s38, 2
      %p102 = por %p100, %p101
      %p103 = scmp.ne.s32.totalorder %s95, %s98
      %p104 = scmp.eq.s32.totalorder %s38, 0
      %p105 = por %p103, %p104
      %p106 = scmp.ne.s32.totalorder %s95, %s98
      %p107 = scmp.eq.s32.totalorder %s43, 2
      %p108 = por %p106, %p107
      %p109 = scmp.ne.s32.totalorder %s98, %s99
      %p110 = scmp.eq.s32.totalorder %s43, 0
      %p111 = por %p109, %p110
      %p112 = scmp.ne.s32.totalorder %s98, %s99
      %p113 = scmp.eq.s32.totalorder %s44, 2
      %p114 = por %p112, %p113
      %p116 = scmp.ne.s32.totalorder %s99, %s115
      %p117 = scmp.eq.s32.totalorder %s44, 0
      %p118 = por %p116, %p117
      %s119 = ssub.s32 %s38, %s45
      %p120 = scmp.eq.s32.totalorder %s119, 0
      %s122 = sadd.s32 %s121, 1
      %s123 = scalar_select %p120, %s121, %s122
      %p126 = pneg %p120
      %p127 = scmp.eq.s32.totalorder %s38, 2
      %p128 = por %p126, %p127
      %p129 = scmp.ne.s32.totalorder %s121, %s124
      %p130 = scmp.eq.s32.totalorder %s38, 0
      %p131 = por %p129, %p130
      %p132 = scmp.ne.s32.totalorder %s121, %s124
      %p133 = scmp.eq.s32.totalorder %s43, 2
      %p134 = por %p132, %p133
      %p135 = scmp.ne.s32.totalorder %s124, %s125
      %p136 = scmp.eq.s32.totalorder %s43, 0
      %p137 = por %p135, %p136
      %p138 = scmp.ne.s32.totalorder %s124, %s125
      %p139 = scmp.eq.s32.totalorder %s44, 2
      %p140 = por %p138, %p139
      %p142 = scmp.ne.s32.totalorder %s125, %s141
      %p143 = scmp.eq.s32.totalorder %s44, 0
      %p144 = por %p142, %p143
      %s146 = sadd.s32 %s145, 1
      %p149 = scmp.eq.s32.totalorder %s38, 2
      %p150 = scmp.ne.s32.totalorder %s145, %s147
      %p151 = scmp.eq.s32.totalorder %s38, 0
      %p152 = por %p150, %p151
      %p153 = scmp.ne.s32.totalorder %s145, %s147
      %p154 = scmp.eq.s32.totalorder %s43, 2
      %p155 = por %p153, %p154
      %p156 = scmp.ne.s32.totalorder %s147, %s148
      %p157 = scmp.eq.s32.totalorder %s43, 0
      %p158 = por %p156, %p157
      %p159 = scmp.ne.s32.totalorder %s147, %s148
      %p160 = scmp.eq.s32.totalorder %s44, 2
      %p161 = por %p159, %p160
      %p163 = scmp.ne.s32.totalorder %s148, %s162
      %p164 = scmp.eq.s32.totalorder %s44, 0
      %p165 = por %p163, %p164
      %s167 = sadd.s32 %s166, 1
      %p170 = scmp.eq.s32.totalorder %s38, 2
      %p171 = scmp.ne.s32.totalorder %s166, %s168
      %p172 = scmp.eq.s32.totalorder %s38, 0
      %p173 = por %p171, %p172
      %p174 = scmp.ne.s32.totalorder %s166, %s168
      %p175 = scmp.eq.s32.totalorder %s43, 2
      %p176 = por %p174, %p175
      %p177 = scmp.ne.s32.totalorder %s168, %s169
      %p178 = scmp.eq.s32.totalorder %s43, 0
      %p179 = por %p177, %p178
      %p180 = scmp.ne.s32.totalorder %s168, %s169
      %p181 = scmp.eq.s32.totalorder %s44, 2
      %p182 = por %p180, %p181
      %p184 = scmp.ne.s32.totalorder %s169, %s183
      %p185 = scmp.eq.s32.totalorder %s44, 0
      %p186 = por %p184, %p185
      %s188 = sadd.s32 %s187, 1
      %p191 = scmp.eq.s32.totalorder %s38, 2
      %p192 = scmp.ne.s32.totalorder %s187, %s189
      %p193 = scmp.eq.s32.totalorder %s38, 0
      %p194 = por %p192, %p193
      %p195 = scmp.ne.s32.totalorder %s187, %s189
      %p196 = scmp.eq.s32.totalorder %s43, 2
      %p197 = por %p195, %p196
      %p198 = scmp.ne.s32.totalorder %s189, %s190
      %p199 = scmp.eq.s32.totalorder %s43, 0
      %p200 = por %p198, %p199
      %p201 = scmp.ne.s32.totalorder %s189, %s190
      %p202 = scmp.eq.s32.totalorder %s44, 2
      %p203 = por %p201, %p202
      %p205 = scmp.ne.s32.totalorder %s190, %s204
      %p206 = scmp.eq.s32.totalorder %s44, 0
      %p207 = por %p205, %p206
      %s209 = sadd.s32 %s208, 1
      %p212 = scmp.eq.s32.totalorder %s38, 2
      %p213 = scmp.ne.s32.totalorder %s208, %s210
      %p214 = scmp.eq.s32.totalorder %s38, 0
      %p215 = por %p213, %p214
      %p216 = scmp.ne.s32.totalorder %s208, %s210
      %p217 = scmp.eq.s32.totalorder %s43, 2
      %p218 = por %p216, %p217
      %p219 = scmp.ne.s32.totalorder %s210, %s211
      %p220 = scmp.eq.s32.totalorder %s43, 0
      %p221 = por %p219, %p220
      %p222 = scmp.ne.s32.totalorder %s210, %s211
      %p223 = scmp.eq.s32.totalorder %s44, 2
      %p224 = por %p222, %p223
      %p226 = scmp.ne.s32.totalorder %s211, %s225
      %p227 = scmp.eq.s32.totalorder %s44, 0
      %p228 = por %p226, %p227
      %s230 = sadd.s32 %s229, 1
      %p233 = scmp.eq.s32.totalorder %s38, 2
      %p234 = scmp.ne.s32.totalorder %s229, %s231
      %p235 = scmp.eq.s32.totalorder %s38, 0
      %p236 = por %p234, %p235
      %p237 = scmp.ne.s32.totalorder %s229, %s231
      %p238 = scmp.eq.s32.totalorder %s43, 2
      %p239 = por %p237, %p238
      %p240 = scmp.ne.s32.totalorder %s231, %s232
      %p241 = scmp.eq.s32.totalorder %s43, 0
      %p242 = por %p240, %p241
      %p243 = scmp.ne.s32.totalorder %s231, %s232
      %p244 = scmp.eq.s32.totalorder %s44, 2
      %p245 = por %p243, %p244
      %p247 = scmp.ne.s32.totalorder %s232, %s246
      %p248 = scmp.eq.s32.totalorder %s44, 0
      %p249 = por %p247, %p248
      %s251 = sadd.s32 %s250, 1
      %p254 = scmp.eq.s32.totalorder %s38, 2
      %p255 = scmp.ne.s32.totalorder %s250, %s252
      %p256 = scmp.eq.s32.totalorder %s38, 0
      %p257 = por %p255, %p256
      %p258 = scmp.ne.s32.totalorder %s250, %s252
      %p259 = scmp.eq.s32.totalorder %s43, 2
      %p260 = por %p258, %p259
      %p261 = scmp.ne.s32.totalorder %s252, %s253
      %p262 = scmp.eq.s32.totalorder %s43, 0
      %p263 = por %p261, %p262
      %p264 = scmp.ne.s32.totalorder %s252, %s253
      %p265 = scmp.eq.s32.totalorder %s44, 2
      %p266 = por %p264, %p265
      %p268 = scmp.ne.s32.totalorder %s253, %s267
      %p269 = scmp.eq.s32.totalorder %s44, 0
      %p270 = por %p268, %p269
      %s272 = sadd.s32 %s271, 1
      %p275 = scmp.eq.s32.totalorder %s38, 2
      %p276 = scmp.ne.s32.totalorder %s271, %s273
      %p277 = scmp.eq.s32.totalorder %s38, 0
      %p278 = por %p276, %p277
      %p279 = scmp.ne.s32.totalorder %s271, %s273
      %p280 = scmp.eq.s32.totalorder %s43, 2
      %p281 = por %p279, %p280
      %p282 = scmp.ne.s32.totalorder %s273, %s274
      %p283 = scmp.eq.s32.totalorder %s43, 0
      %p284 = por %p282, %p283
      %p285 = scmp.ne.s32.totalorder %s273, %s274
      %p286 = scmp.eq.s32.totalorder %s44, 2
      %p287 = por %p285, %p286
      %p289 = scmp.ne.s32.totalorder %s274, %s288
      %p290 = scmp.eq.s32.totalorder %s44, 0
      %p291 = por %p289, %p290
      %s293 = sadd.s32 %s292, 1
      %p296 = scmp.eq.s32.totalorder %s38, 2
      %p297 = scmp.ne.s32.totalorder %s292, %s294
      %p298 = scmp.eq.s32.totalorder %s38, 0
      %p299 = por %p297, %p298
      %p300 = scmp.ne.s32.totalorder %s292, %s294
      %p301 = scmp.eq.s32.totalorder %s43, 2
      %p302 = por %p300, %p301
      %p303 = scmp.ne.s32.totalorder %s294, %s295
      %p304 = scmp.eq.s32.totalorder %s43, 0
      %p305 = por %p303, %p304
      %p306 = scmp.ne.s32.totalorder %s294, %s295
      %p307 = scmp.eq.s32.totalorder %s44, 2
      %p308 = por %p306, %p307
      %p310 = scmp.ne.s32.totalorder %s295, %s309
      %p311 = scmp.eq.s32.totalorder %s44, 0
      %p312 = por %p310, %p311
      %s314 = sadd.s32 %s313, 1
      %p317 = scmp.eq.s32.totalorder %s38, 2
      %p318 = scmp.ne.s32.totalorder %s313, %s315
      %p319 = scmp.eq.s32.totalorder %s38, 0
      %p320 = por %p318, %p319
      %p321 = scmp.ne.s32.totalorder %s313, %s315
      %p322 = scmp.eq.s32.totalorder %s43, 2
      %p323 = por %p321, %p322
      %p324 = scmp.ne.s32.totalorder %s315, %s316
      %p325 = scmp.eq.s32.totalorder %s43, 0
      %p326 = por %p324, %p325
      %p327 = scmp.ne.s32.totalorder %s315, %s316
      %p328 = scmp.eq.s32.totalorder %s44, 2
      %p329 = por %p327, %p328
      %p331 = scmp.ne.s32.totalorder %s316, %s330
      %p332 = scmp.eq.s32.totalorder %s44, 0
      %p333 = por %p331, %p332
      %s335 = sadd.s32 %s334, 1
      %p338 = scmp.eq.s32.totalorder %s38, 2
      %p339 = scmp.ne.s32.totalorder %s334, %s336
      %p340 = scmp.eq.s32.totalorder %s38, 0
      %p341 = por %p339, %p340
      %p342 = scmp.ne.s32.totalorder %s334, %s336
      %p343 = scmp.eq.s32.totalorder %s43, 2
      %p344 = por %p342, %p343
      %p345 = scmp.ne.s32.totalorder %s336, %s337
      %p346 = scmp.eq.s32.totalorder %s43, 0
      %p347 = por %p345, %p346
      %p348 = scmp.ne.s32.totalorder %s336, %s337
      %p349 = scmp.eq.s32.totalorder %s44, 2
      %p350 = por %p348, %p349
      %p352 = scmp.ne.s32.totalorder %s337, %s351
      %p353 = scmp.eq.s32.totalorder %s44, 0
      %p354 = por %p352, %p353
      %s356 = sadd.s32 %s355, 1
      %p359 = scmp.eq.s32.totalorder %s38, 2
      %p360 = scmp.ne.s32.totalorder %s355, %s357
      %p361 = scmp.eq.s32.totalorder %s38, 0
      %p362 = por %p360, %p361
      %p363 = scmp.ne.s32.totalorder %s355, %s357
      %p364 = scmp.eq.s32.totalorder %s43, 2
      %p365 = por %p363, %p364
      %p366 = scmp.ne.s32.totalorder %s357, %s358
      %p367 = scmp.eq.s32.totalorder %s43, 0
      %p368 = por %p366, %p367
      %p369 = scmp.ne.s32.totalorder %s357, %s358
      %p370 = scmp.eq.s32.totalorder %s44, 2
      %p371 = por %p369, %p370
      %p373 = scmp.ne.s32.totalorder %s358, %s372
      %p374 = scmp.eq.s32.totalorder %s44, 0
      %p375 = por %p373, %p374
      %s377 = sadd.s32 %s376, 1
      %p380 = scmp.eq.s32.totalorder %s38, 2
      %p381 = scmp.ne.s32.totalorder %s376, %s378
      %p382 = scmp.eq.s32.totalorder %s38, 0
      %p383 = por %p381, %p382
      %p384 = scmp.ne.s32.totalorder %s376, %s378
      %p385 = scmp.eq.s32.totalorder %s43, 2
      %p386 = por %p384, %p385
      %p387 = scmp.ne.s32.totalorder %s378, %s379
      %p388 = scmp.eq.s32.totalorder %s43, 0
      %p389 = por %p387, %p388
      %p390 = scmp.ne.s32.totalorder %s378, %s379
      %p391 = scmp.eq.s32.totalorder %s44, 2
      %p392 = por %p390, %p391
      %p394 = scmp.ne.s32.totalorder %s379, %s393
      %p395 = scmp.eq.s32.totalorder %s44, 0
      %p396 = por %p394, %p395
      %s398 = sadd.s32 %s397, 1
      %p401 = scmp.eq.s32.totalorder %s38, 2
      %p402 = scmp.ne.s32.totalorder %s397, %s399
      %p403 = scmp.eq.s32.totalorder %s38, 0
      %p404 = por %p402, %p403
      %p405 = scmp.ne.s32.totalorder %s397, %s399
      %p406 = scmp.eq.s32.totalorder %s43, 2
      %p407 = por %p405, %p406
      %p408 = scmp.ne.s32.totalorder %s399, %s400
      %p409 = scmp.eq.s32.totalorder %s43, 0
      %p410 = por %p408, %p409
      %p411 = scmp.ne.s32.totalorder %s399, %s400
      %p412 = scmp.eq.s32.totalorder %s44, 2
      %p413 = por %p411, %p412
      %p415 = scmp.ne.s32.totalorder %s400, %s414
      %p416 = scmp.eq.s32.totalorder %s44, 0
      %p417 = por %p415, %p416
      %s419 = sadd.s32 %s418, 1
      %p422 = scmp.eq.s32.totalorder %s38, 2
      %p423 = scmp.ne.s32.totalorder %s418, %s420
      %p424 = scmp.eq.s32.totalorder %s38, 0
      %p425 = por %p423, %p424
      %p426 = scmp.ne.s32.totalorder %s418, %s420
      %p427 = scmp.eq.s32.totalorder %s43, 2
      %p428 = por %p426, %p427
      %p429 = scmp.ne.s32.totalorder %s420, %s421
      %p430 = scmp.eq.s32.totalorder %s43, 0
      %p431 = por %p429, %p430
      %p432 = scmp.ne.s32.totalorder %s420, %s421
      %p433 = scmp.eq.s32.totalorder %s44, 2
      %p434 = por %p432, %p433
      %p436 = scmp.ne.s32.totalorder %s421, %s435
      %p437 = scmp.eq.s32.totalorder %s44, 0
      %p438 = por %p436, %p437
      %s440 = sadd.s32 %s439, 1
      %p443 = scmp.eq.s32.totalorder %s38, 2
      %p444 = scmp.ne.s32.totalorder %s439, %s441
      %p445 = scmp.eq.s32.totalorder %s38, 0
      %p446 = por %p444, %p445
      %p447 = scmp.ne.s32.totalorder %s439, %s441
      %p448 = scmp.eq.s32.totalorder %s43, 2
      %p449 = por %p447, %p448
      %p450 = scmp.ne.s32.totalorder %s441, %s442
      %p451 = scmp.eq.s32.totalorder %s43, 0
      %p452 = por %p450, %p451
      %p453 = scmp.ne.s32.totalorder %s441, %s442
      %p454 = scmp.eq.s32.totalorder %s44, 2
      %p455 = por %p453, %p454
      %p457 = scmp.ne.s32.totalorder %s442, %s456
      %p458 = scmp.eq.s32.totalorder %s44, 0
      %p459 = por %p457, %p458
      %s461 = sadd.s32 %s460, 1
      %p464 = scmp.eq.s32.totalorder %s38, 2
      %p465 = scmp.ne.s32.totalorder %s460, %s462
      %p466 = scmp.eq.s32.totalorder %s38, 0
      %p467 = por %p465, %p466
      %p468 = scmp.ne.s32.totalorder %s460, %s462
      %p469 = scmp.eq.s32.totalorder %s43, 2
      %p470 = por %p468, %p469
      %p471 = scmp.ne.s32.totalorder %s462, %s463
      %p472 = scmp.eq.s32.totalorder %s43, 0
      %p473 = por %p471, %p472
      %p474 = scmp.ne.s32.totalorder %s462, %s463
      %p475 = scmp.eq.s32.totalorder %s44, 2
      %p476 = por %p474, %p475
      %p478 = scmp.ne.s32.totalorder %s463, %s477
      %p479 = scmp.eq.s32.totalorder %s44, 0
      %p480 = por %p478, %p479
      %s482 = sadd.s32 %s481, 1
      %p485 = scmp.eq.s32.totalorder %s38, 2
      %p486 = scmp.ne.s32.totalorder %s481, %s483
      %p487 = scmp.eq.s32.totalorder %s38, 0
      %p488 = por %p486, %p487
      %p489 = scmp.ne.s32.totalorder %s481, %s483
      %p490 = scmp.eq.s32.totalorder %s43, 2
      %p491 = por %p489, %p490
      %p492 = scmp.ne.s32.totalorder %s483, %s484
      %p493 = scmp.eq.s32.totalorder %s43, 0
      %p494 = por %p492, %p493
      %p495 = scmp.ne.s32.totalorder %s483, %s484
      %p496 = scmp.eq.s32.totalorder %s44, 2
      %p497 = por %p495, %p496
      %p499 = scmp.ne.s32.totalorder %s484, %s498
      %p500 = scmp.eq.s32.totalorder %s44, 0
      %p501 = por %p499, %p500
      %s503 = sadd.s32 %s502, 1
      %p506 = scmp.eq.s32.totalorder %s38, 2
      %p507 = scmp.ne.s32.totalorder %s502, %s504
      %p508 = scmp.eq.s32.totalorder %s38, 0
      %p509 = por %p507, %p508
      %p510 = scmp.ne.s32.totalorder %s502, %s504
      %p511 = scmp.eq.s32.totalorder %s43, 2
      %p512 = por %p510, %p511
      %p513 = scmp.ne.s32.totalorder %s504, %s505
      %p514 = scmp.eq.s32.totalorder %s43, 0
      %p515 = por %p513, %p514
      %p516 = scmp.ne.s32.totalorder %s504, %s505
      %p517 = scmp.eq.s32.totalorder %s44, 2
      %p518 = por %p516, %p517
      %p520 = scmp.ne.s32.totalorder %s505, %s519
      %p521 = scmp.eq.s32.totalorder %s44, 0
      %p522 = por %p520, %p521
      %s524 = sadd.s32 %s523, 1
      %p527 = scmp.eq.s32.totalorder %s38, 2
      %p528 = scmp.ne.s32.totalorder %s523, %s525
      %p529 = scmp.eq.s32.totalorder %s38, 0
      %p530 = por %p528, %p529
      %p531 = scmp.ne.s32.totalorder %s523, %s525
      %p532 = scmp.eq.s32.totalorder %s43, 2
      %p533 = por %p531, %p532
      %p534 = scmp.ne.s32.totalorder %s525, %s526
      %p535 = scmp.eq.s32.totalorder %s43, 0
      %p536 = por %p534, %p535
      %p537 = scmp.ne.s32.totalorder %s525, %s526
      %p538 = scmp.eq.s32.totalorder %s44, 2
      %p539 = por %p537, %p538
      %p541 = scmp.ne.s32.totalorder %s526, %s540
      %p542 = scmp.eq.s32.totalorder %s44, 0
      %p543 = por %p541, %p542
      %s545 = sadd.s32 %s544, 1
      %p548 = scmp.eq.s32.totalorder %s38, 2
      %p549 = scmp.ne.s32.totalorder %s544, %s546
      %p550 = scmp.eq.s32.totalorder %s38, 0
      %p551 = por %p549, %p550
      %p552 = scmp.ne.s32.totalorder %s544, %s546
      %p553 = scmp.eq.s32.totalorder %s43, 2
      %p554 = por %p552, %p553
      %p555 = scmp.ne.s32.totalorder %s546, %s547
      %p556 = scmp.eq.s32.totalorder %s43, 0
      %p557 = por %p555, %p556
      %p558 = scmp.ne.s32.totalorder %s546, %s547
      %p559 = scmp.eq.s32.totalorder %s44, 2
      %p560 = por %p558, %p559
      %p562 = scmp.ne.s32.totalorder %s547, %s561
      %p563 = scmp.eq.s32.totalorder %s44, 0
      %p564 = por %p562, %p563
      %s566 = sadd.s32 %s565, 1
      %p569 = scmp.eq.s32.totalorder %s38, 2
      %p570 = scmp.ne.s32.totalorder %s565, %s567
      %p571 = scmp.eq.s32.totalorder %s38, 0
      %p572 = por %p570, %p571
      %p573 = scmp.ne.s32.totalorder %s565, %s567
      %p574 = scmp.eq.s32.totalorder %s43, 2
      %p575 = por %p573, %p574
      %p576 = scmp.ne.s32.totalorder %s567, %s568
      %p577 = scmp.eq.s32.totalorder %s43, 0
      %p578 = por %p576, %p577
      %p579 = scmp.ne.s32.totalorder %s567, %s568
      %p580 = scmp.eq.s32.totalorder %s44, 2
      %p581 = por %p579, %p580
      %p583 = scmp.ne.s32.totalorder %s568, %s582
      %p584 = scmp.eq.s32.totalorder %s44, 0
      %p585 = por %p583, %p584
      %s587 = sadd.s32 %s586, 1
      %p590 = scmp.eq.s32.totalorder %s38, 2
      %p591 = scmp.ne.s32.totalorder %s586, %s588
      %p592 = scmp.eq.s32.totalorder %s38, 0
      %p593 = por %p591, %p592
      %p594 = scmp.ne.s32.totalorder %s586, %s588
      %p595 = scmp.eq.s32.totalorder %s43, 2
      %p596 = por %p594, %p595
      %p597 = scmp.ne.s32.totalorder %s588, %s589
      %p598 = scmp.eq.s32.totalorder %s43, 0
      %p599 = por %p597, %p598
      %p600 = scmp.ne.s32.totalorder %s588, %s589
      %p601 = scmp.eq.s32.totalorder %s44, 2
      %p602 = por %p600, %p601
      %p604 = scmp.ne.s32.totalorder %s589, %s603
      %p605 = scmp.eq.s32.totalorder %s44, 0
      %p606 = por %p604, %p605
      %s608 = sadd.s32 %s607, 1
      %p611 = scmp.eq.s32.totalorder %s38, 2
      %p612 = scmp.ne.s32.totalorder %s607, %s609
      %p613 = scmp.eq.s32.totalorder %s38, 0
      %p614 = por %p612, %p613
      %p615 = scmp.ne.s32.totalorder %s607, %s609
      %p616 = scmp.eq.s32.totalorder %s43, 2
      %p617 = por %p615, %p616
      %p618 = scmp.ne.s32.totalorder %s609, %s610
      %p619 = scmp.eq.s32.totalorder %s43, 0
      %p620 = por %p618, %p619
      %p621 = scmp.ne.s32.totalorder %s609, %s610
      %p622 = scmp.eq.s32.totalorder %s44, 2
      %p623 = por %p621, %p622
      %p625 = scmp.ne.s32.totalorder %s610, %s624
      %p626 = scmp.eq.s32.totalorder %s44, 0
      %p627 = por %p625, %p626
      %s629 = sadd.s32 %s628, 1
      %p632 = scmp.eq.s32.totalorder %s38, 2
      %p633 = scmp.ne.s32.totalorder %s628, %s630
      %p634 = scmp.eq.s32.totalorder %s38, 0
      %p635 = por %p633, %p634
      %p636 = scmp.ne.s32.totalorder %s628, %s630
      %p637 = scmp.eq.s32.totalorder %s43, 2
      %p638 = por %p636, %p637
      %p639 = scmp.ne.s32.totalorder %s630, %s631
      %p640 = scmp.eq.s32.totalorder %s43, 0
      %p641 = por %p639, %p640
      %p642 = scmp.ne.s32.totalorder %s630, %s631
      %p643 = scmp.eq.s32.totalorder %s44, 2
      %p644 = por %p642, %p643
      %p646 = scmp.ne.s32.totalorder %s631, %s645
      %p647 = scmp.eq.s32.totalorder %s44, 0
      %p648 = por %p646, %p647
      %p649 = scmp.le.s32.totalorder 1, %s38
      %p650 = scmp.lt.s32.totalorder %s38, 4
      %p651 = pnand %p649, %p650
      %p652 = pneg %p651
      // Predicated region
      $region9: #{tpu_custom_call.1} parent=5 // pred_check
        _
      $region10: #{tpu_custom_call.1} parent=5 // pred_check_branch
        %654 = sbr.rel (%p651) target = $region12
      $region11: #{tpu_custom_call.1} parent=5 // pred_region
        %s655 = ssub.s32 %s38, 1
        // Predicated region
        $region13: #{tpu_custom_call.1} parent=11 // pred_check
          %p656 = pneg %p59
        $region14: #{tpu_custom_call.1} parent=11 // pred_check_branch
          %658 = sbr.rel (%p656) target = $region16
        $region15: #{tpu_custom_call.1} parent=11 // pred_region
          _
        $region16: #{tpu_custom_call.1} parent=11 // pred_fallthru
          _
        // Predicated region
        $region17: #{tpu_custom_call.1} parent=11 // pred_check
          %p659 = pneg %p158
        $region18: #{tpu_custom_call.1} parent=11 // pred_check_branch
          %661 = sbr.rel (%p659) target = $region20
        $region19: #{tpu_custom_call.1} parent=11 // pred_region
          _
        $region20: #{tpu_custom_call.1} parent=11 // pred_fallthru
          _
        // Predicated region
        $region21: #{tpu_custom_call.1} parent=11 // pred_check
          %p662 = pneg %p179
        $region22: #{tpu_custom_call.1} parent=11 // pred_check_branch
          %664 = sbr.rel (%p662) target = $region24
        $region23: #{tpu_custom_call.1} parent=11 // pred_region
          _
        $region24: #{tpu_custom_call.1} parent=11 // pred_fallthru
          _
        // Predicated region
        $region25: #{tpu_custom_call.1} parent=11 // pred_check
          %p665 = pneg %p200
        $region26: #{tpu_custom_call.1} parent=11 // pred_check_branch
          %667 = sbr.rel (%p665) target = $region28
        $region27: #{tpu_custom_call.1} parent=11 // pred_region
          _
        $region28: #{tpu_custom_call.1} parent=11 // pred_fallthru
          _
        // Predicated region
        $region29: #{tpu_custom_call.1} parent=11 // pred_check
          %p668 = pneg %p221
        $region30: #{tpu_custom_call.1} parent=11 // pred_check_branch
          %670 = sbr.rel (%p668) target = $region32
        $region31: #{tpu_custom_call.1} parent=11 // pred_region
          _
        $region32: #{tpu_custom_call.1} parent=11 // pred_fallthru
          _
        // Predicated region
        $region33: #{tpu_custom_call.1} parent=11 // pred_check
          %p671 = pneg %p242
        $region34: #{tpu_custom_call.1} parent=11 // pred_check_branch
          %673 = sbr.rel (%p671) target = $region36
        $region35: #{tpu_custom_call.1} parent=11 // pred_region
          _
        $region36: #{tpu_custom_call.1} parent=11 // pred_fallthru
          _
        // Predicated region
        $region37: #{tpu_custom_call.1} parent=11 // pred_check
          %p674 = pneg %p263
        $region38: #{tpu_custom_call.1} parent=11 // pred_check_branch
          %676 = sbr.rel (%p674) target = $region40
        $region39: #{tpu_custom_call.1} parent=11 // pred_region
          _
        $region40: #{tpu_custom_call.1} parent=11 // pred_fallthru
          _
        // Predicated region
        $region41: #{tpu_custom_call.1} parent=11 // pred_check
          %p677 = pneg %p284
        $region42: #{tpu_custom_call.1} parent=11 // pred_check_branch
          %679 = sbr.rel (%p677) target = $region44
        $region43: #{tpu_custom_call.1} parent=11 // pred_region
          _
        $region44: #{tpu_custom_call.1} parent=11 // pred_fallthru
          _
        // Predicated region
        $region45: #{tpu_custom_call.1} parent=11 // pred_check
          %p680 = pneg %p305
        $region46: #{tpu_custom_call.1} parent=11 // pred_check_branch
          %682 = sbr.rel (%p680) target = $region48
        $region47: #{tpu_custom_call.1} parent=11 // pred_region
          %684 = vsyncadd [#allocation5], 0
          %s685 = sshll.u32 %s11, 4
          %s686 = int_to_ptr.hbm [resolvable:$true] %s685
          %s687 = sshll.u32 [#allocation4], 4
          %s688 = int_to_ptr.vmem [resolvable:$true] %s687
          %693 = dma.hbm_to_vmem [thread:$0]  %s686, 1024, %s688, [#allocation5], 64, 64, 4
        $region48: #{tpu_custom_call.1} parent=11 // pred_fallthru
          _
        // Predicated region
        $region49: #{tpu_custom_call.1} parent=11 // pred_check
          %p694 = pneg %p326
        $region50: #{tpu_custom_call.1} parent=11 // pred_check_branch
          %696 = sbr.rel (%p694) target = $region52
        $region51: #{tpu_custom_call.1} parent=11 // pred_region
          _
        $region52: #{tpu_custom_call.1} parent=11 // pred_fallthru
          _
        // Predicated region
        $region53: #{tpu_custom_call.1} parent=11 // pred_check
          %p697 = pneg %p347
        $region54: #{tpu_custom_call.1} parent=11 // pred_check_branch
          %699 = sbr.rel (%p697) target = $region56
        $region55: #{tpu_custom_call.1} parent=11 // pred_region
          %701 = vsyncadd [#allocation8], 0
          %s702 = sshll.u32 %s13, 4
          %s703 = int_to_ptr.hbm [resolvable:$true] %s702
          %s704 = sshll.u32 [#allocation7], 4
          %s705 = int_to_ptr.vmem [resolvable:$true] %s704
          %710 = dma.hbm_to_vmem [thread:$0]  %s703, 1024, %s705, [#allocation8], 64, 64, 4
        $region56: #{tpu_custom_call.1} parent=11 // pred_fallthru
          _
        // Predicated region
        $region57: #{tpu_custom_call.1} parent=11 // pred_check
          %p711 = pneg %p368
        $region58: #{tpu_custom_call.1} parent=11 // pred_check_branch
          %713 = sbr.rel (%p711) target = $region60
        $region59: #{tpu_custom_call.1} parent=11 // pred_region
          _
        $region60: #{tpu_custom_call.1} parent=11 // pred_fallthru
          _
        // Predicated region
        $region61: #{tpu_custom_call.1} parent=11 // pred_check
          %p714 = pneg %p389
        $region62: #{tpu_custom_call.1} parent=11 // pred_check_branch
          %716 = sbr.rel (%p714) target = $region64
        $region63: #{tpu_custom_call.1} parent=11 // pred_region
          %718 = vsyncadd [#allocation8], 0
          %s719 = sshll.u32 %s15, 4
          %s720 = int_to_ptr.hbm [resolvable:$true] %s719
          %s721 = sshll.u32 [#allocation9], 4
          %s722 = int_to_ptr.vmem [resolvable:$true] %s721
          %727 = dma.hbm_to_vmem [thread:$0]  %s720, 1024, %s722, [#allocation8], 64, 64, 4
        $region64: #{tpu_custom_call.1} parent=11 // pred_fallthru
          _
        // Predicated region
        $region65: #{tpu_custom_call.1} parent=11 // pred_check
          %p728 = pneg %p410
        $region66: #{tpu_custom_call.1} parent=11 // pred_check_branch
          %730 = sbr.rel (%p728) target = $region68
        $region67: #{tpu_custom_call.1} parent=11 // pred_region
          %732 = vsyncadd [#allocation11], 0
          %s733 = sshll.u32 %s16, 4
          %s734 = int_to_ptr.hbm [resolvable:$true] %s733
          %s735 = sshll.u32 [#allocation10], 4
          %s736 = int_to_ptr.vmem [resolvable:$true] %s735
          %741 = dma.hbm_to_vmem [thread:$0]  %s734, 1024, %s736, [#allocation11], 64, 64, 4
        $region68: #{tpu_custom_call.1} parent=11 // pred_fallthru
          _
        // Predicated region
        $region69: #{tpu_custom_call.1} parent=11 // pred_check
          %p742 = pneg %p431
        $region70: #{tpu_custom_call.1} parent=11 // pred_check_branch
          %744 = sbr.rel (%p742) target = $region72
        $region71: #{tpu_custom_call.1} parent=11 // pred_region
          _
        $region72: #{tpu_custom_call.1} parent=11 // pred_fallthru
          _
        // Predicated region
        $region73: #{tpu_custom_call.1} parent=11 // pred_check
          %p745 = pneg %p452
        $region74: #{tpu_custom_call.1} parent=11 // pred_check_branch
          %747 = sbr.rel (%p745) target = $region76
        $region75: #{tpu_custom_call.1} parent=11 // pred_region
          _
        $region76: #{tpu_custom_call.1} parent=11 // pred_fallthru
          _
        // Predicated region
        $region77: #{tpu_custom_call.1} parent=11 // pred_check
          %p748 = pneg %p473
        $region78: #{tpu_custom_call.1} parent=11 // pred_check_branch
          %750 = sbr.rel (%p748) target = $region80
        $region79: #{tpu_custom_call.1} parent=11 // pred_region
          %752 = vsyncadd [#allocation11], 0
          %s753 = sshll.u32 %s19, 4
          %s754 = int_to_ptr.hbm [resolvable:$true] %s753
          %s755 = sshll.u32 [#allocation12], 4
          %s756 = int_to_ptr.vmem [resolvable:$true] %s755
          %761 = dma.hbm_to_vmem [thread:$0]  %s754, 1024, %s756, [#allocation11], 64, 64, 4
        $region80: #{tpu_custom_call.1} parent=11 // pred_fallthru
          _
        // Predicated region
        $region81: #{tpu_custom_call.1} parent=11 // pred_check
          %p762 = pneg %p494
        $region82: #{tpu_custom_call.1} parent=11 // pred_check_branch
          %764 = sbr.rel (%p762) target = $region84
        $region83: #{tpu_custom_call.1} parent=11 // pred_region
          _
        $region84: #{tpu_custom_call.1} parent=11 // pred_fallthru
          _
        // Predicated region
        $region85: #{tpu_custom_call.1} parent=11 // pred_check
          %p765 = pneg %p515
        $region86: #{tpu_custom_call.1} parent=11 // pred_check_branch
          %767 = sbr.rel (%p765) target = $region88
        $region87: #{tpu_custom_call.1} parent=11 // pred_region
          %769 = vsyncadd [#allocation14], 0
          %s770 = sshll.u32 %s21, 4
          %s771 = int_to_ptr.hbm [resolvable:$true] %s770
          %s772 = sshll.u32 [#allocation13], 4
          %s773 = int_to_ptr.vmem [resolvable:$true] %s772
          %778 = dma.hbm_to_vmem [thread:$0]  %s771, 1024, %s773, [#allocation14], 64, 64, 4
        $region88: #{tpu_custom_call.1} parent=11 // pred_fallthru
          _
        // Predicated region
        $region89: #{tpu_custom_call.1} parent=11 // pred_check
          %p779 = pneg %p536
        $region90: #{tpu_custom_call.1} parent=11 // pred_check_branch
          %781 = sbr.rel (%p779) target = $region92
        $region91: #{tpu_custom_call.1} parent=11 // pred_region
          _
        $region92: #{tpu_custom_call.1} parent=11 // pred_fallthru
          _
        // Predicated region
        $region93: #{tpu_custom_call.1} parent=11 // pred_check
          %p782 = pneg %p557
        $region94: #{tpu_custom_call.1} parent=11 // pred_check_branch
          %784 = sbr.rel (%p782) target = $region96
        $region95: #{tpu_custom_call.1} parent=11 // pred_region
          _
        $region96: #{tpu_custom_call.1} parent=11 // pred_fallthru
          _
        // Predicated region
        $region97: #{tpu_custom_call.1} parent=11 // pred_check
          %p785 = pneg %p578
        $region98: #{tpu_custom_call.1} parent=11 // pred_check_branch
          %787 = sbr.rel (%p785) target = $region100
        $region99: #{tpu_custom_call.1} parent=11 // pred_region
          _
        $region100: #{tpu_custom_call.1} parent=11 // pred_fallthru
          _
        // Predicated region
        $region101: #{tpu_custom_call.1} parent=11 // pred_check
          %p788 = pneg %p599
        $region102: #{tpu_custom_call.1} parent=11 // pred_check_branch
          %790 = sbr.rel (%p788) target = $region104
        $region103: #{tpu_custom_call.1} parent=11 // pred_region
          %792 = vsyncadd [#allocation14], 0
          %s793 = sshll.u32 %s25, 4
          %s794 = int_to_ptr.hbm [resolvable:$true] %s793
          %s795 = sshll.u32 [#allocation15], 4
          %s796 = int_to_ptr.vmem [resolvable:$true] %s795
          %801 = dma.hbm_to_vmem [thread:$0]  %s794, 1024, %s796, [#allocation14], 64, 64, 4
        $region104: #{tpu_custom_call.1} parent=11 // pred_fallthru
          _
        // Predicated region
        $region105: #{tpu_custom_call.1} parent=11 // pred_check
          %p802 = pneg %p620
        $region106: #{tpu_custom_call.1} parent=11 // pred_check_branch
          %804 = sbr.rel (%p802) target = $region108
        $region107: #{tpu_custom_call.1} parent=11 // pred_region
          _
        $region108: #{tpu_custom_call.1} parent=11 // pred_fallthru
          _
      $region12: #{tpu_custom_call.1} parent=5 // pred_fallthru
        _
      %p805 = scmp.lt.s32.totalorder %s38, 3
      // Predicated region
      $region109: #{tpu_custom_call.1} parent=5 // pred_check
        %p806 = pneg %p805
      $region110: #{tpu_custom_call.1} parent=5 // pred_check_branch
        %808 = sbr.rel (%p806) target = $region112
      $region111: #{tpu_custom_call.1} parent=5 // pred_region
        // Predicated region
        $region113: #{tpu_custom_call.1} parent=111 // pred_check
          %p809 = pneg %p79
        $region114: #{tpu_custom_call.1} parent=111 // pred_check_branch
          %811 = sbr.rel (%p809) target = $region116
        $region115: #{tpu_custom_call.1} parent=111 // pred_region
          %s812 = smul.u32 16, %s38
          %p813 = scmp.lt.s32.totalorder %s812, 47
          %s814 = scalar_select %p813, %s812, 47
          %s815 = smul.addr %s814, 4
          %s816 = scalar_lea.vmem %s1, %s815
          %s817 = smul.u32 16, %s38
        $region116: #{tpu_custom_call.1} parent=111 // pred_fallthru
          _
        // Predicated region
        $region117: #{tpu_custom_call.1} parent=111 // pred_check
          %p818 = pneg %p105
        $region118: #{tpu_custom_call.1} parent=111 // pred_check_branch
          %820 = sbr.rel (%p818) target = $region120
        $region119: #{tpu_custom_call.1} parent=111 // pred_region
          %p821 = scmp.lt.s32.totalorder %s38, 2
          %s822 = scalar_select %p821, %s38, 2
          %s823 = scalar_lea.vmem %s2, %s822
        $region120: #{tpu_custom_call.1} parent=111 // pred_fallthru
          _
        // Predicated region
        $region121: #{tpu_custom_call.1} parent=111 // pred_check
          %p824 = pneg %p131
        $region122: #{tpu_custom_call.1} parent=111 // pred_check_branch
          %826 = sbr.rel (%p824) target = $region124
        $region123: #{tpu_custom_call.1} parent=111 // pred_region
          %s827 = smul.u32 16, %s38
          %p828 = scmp.lt.s32.totalorder %s827, 47
          %s829 = scalar_select %p828, %s827, 47
          %s830 = smul.addr %s829, 8
          %s831 = scalar_lea.vmem %s3, %s830
          %s832 = smul.u32 16, %s38
        $region124: #{tpu_custom_call.1} parent=111 // pred_fallthru
          _
      $region112: #{tpu_custom_call.1} parent=5 // pred_fallthru
        _
      %p833 = scmp.le.s32.totalorder 1, %s38
      %p834 = scmp.lt.s32.totalorder %s38, 4
      %p835 = pnand %p833, %p834
      %p836 = pneg %p835
      // Predicated region
      $region125: #{tpu_custom_call.1} parent=5 // pred_check
        _
      $region126: #{tpu_custom_call.1} parent=5 // pred_check_branch
        %838 = sbr.rel (%p835) target = $region128
      $region127: #{tpu_custom_call.1} parent=5 // pred_region
        %s839 = ssub.s32 %s38, 1
        // Predicated region
        $region129: #{tpu_custom_call.1} parent=127 // pred_check
          %p840 = pneg %p305
        $region130: #{tpu_custom_call.1} parent=127 // pred_check_branch
          %842 = sbr.rel (%p840) target = $region132
        $region131: #{tpu_custom_call.1} parent=127 // pred_region
          %844 = dma.done [#allocation5], 1024
        $region132: #{tpu_custom_call.1} parent=127 // pred_fallthru
          _
        // Predicated region
        $region133: #{tpu_custom_call.1} parent=127 // pred_check
          %p845 = pneg %p347
        $region134: #{tpu_custom_call.1} parent=127 // pred_check_branch
          %847 = sbr.rel (%p845) target = $region136
        $region135: #{tpu_custom_call.1} parent=127 // pred_region
          %849 = dma.done [#allocation8], 1024
        $region136: #{tpu_custom_call.1} parent=127 // pred_fallthru
          _
        // Predicated region
        $region137: #{tpu_custom_call.1} parent=127 // pred_check
          %p850 = pneg %p389
        $region138: #{tpu_custom_call.1} parent=127 // pred_check_branch
          %852 = sbr.rel (%p850) target = $region140
        $region139: #{tpu_custom_call.1} parent=127 // pred_region
          %854 = dma.done [#allocation8], 1024
        $region140: #{tpu_custom_call.1} parent=127 // pred_fallthru
          _
        // Predicated region
        $region141: #{tpu_custom_call.1} parent=127 // pred_check
          %p855 = pneg %p410
        $region142: #{tpu_custom_call.1} parent=127 // pred_check_branch
          %857 = sbr.rel (%p855) target = $region144
        $region143: #{tpu_custom_call.1} parent=127 // pred_region
          %859 = dma.done [#allocation11], 1024
        $region144: #{tpu_custom_call.1} parent=127 // pred_fallthru
          _
        // Predicated region
        $region145: #{tpu_custom_call.1} parent=127 // pred_check
          %p860 = pneg %p473
        $region146: #{tpu_custom_call.1} parent=127 // pred_check_branch
          %862 = sbr.rel (%p860) target = $region148
        $region147: #{tpu_custom_call.1} parent=127 // pred_region
          %864 = dma.done [#allocation11], 1024
        $region148: #{tpu_custom_call.1} parent=127 // pred_fallthru
          _
        // Predicated region
        $region149: #{tpu_custom_call.1} parent=127 // pred_check
          %p865 = pneg %p515
        $region150: #{tpu_custom_call.1} parent=127 // pred_check_branch
          %867 = sbr.rel (%p865) target = $region152
        $region151: #{tpu_custom_call.1} parent=127 // pred_region
          %869 = dma.done [#allocation14], 1024
        $region152: #{tpu_custom_call.1} parent=127 // pred_fallthru
          _
        // Predicated region
        $region153: #{tpu_custom_call.1} parent=127 // pred_check
          %p870 = pneg %p599
        $region154: #{tpu_custom_call.1} parent=127 // pred_check_branch
          %872 = sbr.rel (%p870) target = $region156
        $region155: #{tpu_custom_call.1} parent=127 // pred_region
          %874 = dma.done [#allocation14], 1024
        $region156: #{tpu_custom_call.1} parent=127 // pred_fallthru
          _
        %p875 = pneg %p59
        %p876 = pneg %p56
        %s877 = smul.u32 16, %s43
        %p878 = scmp.lt.s32.totalorder %s877, 47
        %s879 = scalar_select %p878, %s877, 47
        %s880 = smul.addr %s879, 4
        %s881 = scalar_lea.vmem %s1, %s880
        %p882 = pneg %p85
        %p883 = pneg %p82
        %p884 = scmp.lt.s32.totalorder %s43, 2
        %s885 = scalar_select %p884, %s43, 2
        %s886 = scalar_lea.vmem %s2, %s885
        %p887 = pneg %p111
        %p888 = pneg %p108
        %s889 = smul.u32 16, %s43
        %p890 = scmp.lt.s32.totalorder %s889, 47
        %s891 = scalar_select %p890, %s889, 47
        %s892 = smul.addr %s891, 8
        %s893 = scalar_lea.vmem %s3, %s892
        %p894 = pneg %p137
        %p895 = pneg %p134
        %p896 = pneg %p158
        %p897 = pneg %p155
        %p898 = pneg %p179
        %p899 = pneg %p176
        %p900 = pneg %p200
        %p901 = pneg %p197
        %p902 = pneg %p221
        %p903 = pneg %p218
        %p904 = pneg %p242
        %p905 = pneg %p239
        %p906 = pneg %p263
        %p907 = pneg %p260
        %p908 = pneg %p284
        %p909 = pneg %p281
        %p910 = pneg %p305
        %p911 = pneg %p302
        %p912 = pneg %p326
        %p913 = pneg %p323
        %p914 = pneg %p347
        %p915 = pneg %p344
        %p916 = pneg %p368
        %p917 = pneg %p365
        %p918 = pneg %p389
        %p919 = pneg %p386
        %p920 = pneg %p410
        %p921 = pneg %p407
        %p922 = pneg %p431
        %p923 = pneg %p428
        %p924 = pneg %p452
        %p925 = pneg %p449
        %p926 = pneg %p473
        %p927 = pneg %p470
        %p928 = pneg %p494
        %p929 = pneg %p491
        %p930 = pneg %p515
        %p931 = pneg %p512
        %p932 = pneg %p536
        %p933 = pneg %p533
        %p934 = pneg %p557
        %p935 = pneg %p554
        %p936 = pneg %p578
        %p937 = pneg %p575
        %p938 = pneg %p599
        %p939 = pneg %p596
        %p940 = pneg %p620
        %p941 = pneg %p617
        %p942 = pneg %p641
        %p943 = pneg %p638
        %s944 = smul.u32 16, %s43
        %p945 = scmp.lt.s32.totalorder %s944, 47
        %s946 = scalar_select %p945, %s944, 47
        %s947 = smul.addr %s946, 4
        %s948 = scalar_lea.vmem %s1, %s947
        %s949 = smul.u32 16, %s43
        %p950 = scmp.lt.s32.totalorder %s43, 2
        %s951 = scalar_select %p950, %s43, 2
        %s952 = scalar_lea.vmem %s2, %s951
        %s953 = smul.u32 16, %s43
        %p954 = scmp.lt.s32.totalorder %s953, 47
        %s955 = scalar_select %p954, %s953, 47
        %s956 = smul.addr %s955, 8
        %s957 = scalar_lea.vmem %s3, %s956
        %s958 = smul.u32 16, %s43
        %p960 = scmp.eq.s32.totalorder %s43, 0
        // Predicated region
        $region157: #{tpu_custom_call.1} parent=127 // pred_check
          %p961 = pneg %p960
        $region158: #{tpu_custom_call.1} parent=127 // pred_check_branch
          %963 = sbr.rel (%p961) target = $region160
        $region159: #{tpu_custom_call.1} parent=127 // pred_region
          %v964 = vld [vmem:[%s0] sm:$0xf]
          %v965 = vld [vmem:[%s0 + $0x4] sm:$0xf]
          %v966 = vld [vmem:[%s0 + $0x8] sm:$0xf]
          %v967 = vld [vmem:[%s0 + $0xc] sm:$0xf]
          %v968 = vld [vmem:[%s5] sm:$0xf]
          %v969 = vld [vmem:[%s5 + $0x4] sm:$0xf]
          %v970 = vld [vmem:[%s5 + $0x8] sm:$0xf]
          %v971 = vld [vmem:[%s5 + $0xc] sm:$0xf]
          %v972 = vld [vmem:[%s5 + $0x10] sm:$0xf]
          %v973 = vld [vmem:[%s5 + $0x14] sm:$0xf]
          %v974 = vld [vmem:[%s5 + $0x18] sm:$0xf]
          %v975 = vld [vmem:[%s5 + $0x1c] sm:$0xf]
          %v976 = vld [vmem:[%s5 + $0x20] sm:$0xf]
          %v977 = vld [vmem:[%s5 + $0x24] sm:$0xf]
          %v978 = vld [vmem:[%s5 + $0x28] sm:$0xf]
          %v979 = vld [vmem:[%s5 + $0x2c] sm:$0xf]
          %v980 = vld [vmem:[%s5 + $0x30] sm:$0xf]
          %v981 = vld [vmem:[%s5 + $0x34] sm:$0xf]
          %v982 = vld [vmem:[%s5 + $0x38] sm:$0xf]
          %v983 = vld [vmem:[%s5 + $0x3c] sm:$0xf]
          %v984 = vld [vmem:[%s6] sm:$0x1]
          %v986 = vperm.slane %v984, 0
          %v992 = vunpack.c.l.b16 %v964
          %v993 = vunpack.c.l.b16 %v965
          %v994 = vunpack.c.l.b16 %v966
          %v995 = vunpack.c.l.b16 %v967
          %v996 = vpack.c.b16 %v993, %v992
          %v997 = vpack.c.b16 %v995, %v994
          %v1016 = vunpack.c.l.b16 %v968
          %v1017 = vunpack.c.l.b16 %v969
          %v1018 = vunpack.c.l.b16 %v970
          %v1019 = vunpack.c.l.b16 %v971
          %v1020 = vunpack.c.l.b16 %v972
          %v1021 = vunpack.c.l.b16 %v973
          %v1022 = vunpack.c.l.b16 %v974
          %v1023 = vunpack.c.l.b16 %v975
          %v1024 = vunpack.c.l.b16 %v976
          %v1025 = vunpack.c.l.b16 %v977
          %v1026 = vunpack.c.l.b16 %v978
          %v1027 = vunpack.c.l.b16 %v979
          %v1028 = vunpack.c.l.b16 %v980
          %v1029 = vunpack.c.l.b16 %v981
          %v1030 = vunpack.c.l.b16 %v982
          %v1031 = vunpack.c.l.b16 %v983
          %v1032 = vpack.c.b16 %v1017, %v1016
          %v1033 = vpack.c.b16 %v1019, %v1018
          %v1034 = vpack.c.b16 %v1021, %v1020
          %v1035 = vpack.c.b16 %v1023, %v1022
          %v1036 = vpack.c.b16 %v1025, %v1024
          %v1037 = vpack.c.b16 %v1027, %v1026
          %v1038 = vpack.c.b16 %v1029, %v1028
          %v1039 = vpack.c.b16 %v1031, %v1030
          %1048 = vmatpush.bf16.msra.mxu0 %v1039
          %1049 = vmatpush.bf16.msra.mxu0 %v1038
          %1050 = vmatpush.bf16.msra.mxu0 %v1037
          %1051 = vmatpush.bf16.msra.mxu0 %v1036
          %1052 = vmatpush.bf16.msra.mxu0 %v1035
          %1053 = vmatpush.bf16.msra.mxu0 %v1034
          %1054 = vmatpush.bf16.msra.mxu0 %v1033
          %1055 = vmatpush.bf16.msra.mxu0 %v1032
          %1056 = vmatmul.bf16.gmra.mxu0 %v996
          %v1057 = vpop.f32.mrf.mxu0
          %v1058 = vadd.f32 %v986, %v1057
          %v1059 = vpop.f32.mrf.mxu0
          %v1060 = vadd.f32 %v986, %v1059
          %1061 = vmatmul.bf16.gmra.mxu0 %v997
          %v1062 = vpop.f32.mrf.mxu0
          %v1063 = vadd.f32 %v986, %v1062
          %v1064 = vpop.f32.mrf.mxu0
          %v1065 = vadd.f32 %v986, %v1064
          %1066 = vdwg.mxu0
          %v1067 = vmax.f32 %v1058, 0.0
          %v1068 = vmax.f32 %v1060, 0.0
          %v1069 = vmax.f32 %v1063, 0.0
          %v1070 = vmax.f32 %v1065, 0.0
          %v1071 = vpack.c.bf16 %v1068, %v1067
          %v1072 = vpack.c.bf16 %v1070, %v1069
          %v1073 = vld [vmem:[%s7] sm:$0xf]
          %v1074 = vld [vmem:[%s7 + $0x4] sm:$0xf]
          %v1075 = vld [vmem:[%s7 + $0x8] sm:$0xf]
          %v1076 = vld [vmem:[%s7 + $0xc] sm:$0xf]
          %v1077 = vld [vmem:[%s7 + $0x10] sm:$0xf]
          %v1078 = vld [vmem:[%s7 + $0x14] sm:$0xf]
          %v1079 = vld [vmem:[%s7 + $0x18] sm:$0xf]
          %v1080 = vld [vmem:[%s7 + $0x1c] sm:$0xf]
          %v1081 = vld [vmem:[%s7 + $0x20] sm:$0xf]
          %v1082 = vld [vmem:[%s7 + $0x24] sm:$0xf]
          %v1083 = vld [vmem:[%s7 + $0x28] sm:$0xf]
          %v1084 = vld [vmem:[%s7 + $0x2c] sm:$0xf]
          %v1085 = vld [vmem:[%s7 + $0x30] sm:$0xf]
          %v1086 = vld [vmem:[%s7 + $0x34] sm:$0xf]
          %v1087 = vld [vmem:[%s7 + $0x38] sm:$0xf]
          %v1088 = vld [vmem:[%s7 + $0x3c] sm:$0xf]
          %v1089 = vld [vmem:[%s8] sm:$0x1]
          %v1091 = vperm.slane %v1089, 0
          %v1109 = vunpack.c.l.b16 %v1073
          %v1110 = vunpack.c.l.b16 %v1074
          %v1111 = vunpack.c.l.b16 %v1075
          %v1112 = vunpack.c.l.b16 %v1076
          %v1113 = vunpack.c.l.b16 %v1077
          %v1114 = vunpack.c.l.b16 %v1078
          %v1115 = vunpack.c.l.b16 %v1079
          %v1116 = vunpack.c.l.b16 %v1080
          %v1117 = vunpack.c.l.b16 %v1081
          %v1118 = vunpack.c.l.b16 %v1082
          %v1119 = vunpack.c.l.b16 %v1083
          %v1120 = vunpack.c.l.b16 %v1084
          %v1121 = vunpack.c.l.b16 %v1085
          %v1122 = vunpack.c.l.b16 %v1086
          %v1123 = vunpack.c.l.b16 %v1087
          %v1124 = vunpack.c.l.b16 %v1088
          %v1125 = vpack.c.b16 %v1110, %v1109
          %v1126 = vpack.c.b16 %v1112, %v1111
          %v1127 = vpack.c.b16 %v1114, %v1113
          %v1128 = vpack.c.b16 %v1116, %v1115
          %v1129 = vpack.c.b16 %v1118, %v1117
          %v1130 = vpack.c.b16 %v1120, %v1119
          %v1131 = vpack.c.b16 %v1122, %v1121
          %v1132 = vpack.c.b16 %v1124, %v1123
          %1141 = vmatpush.bf16.msra.mxu0 %v1132
          %1142 = vmatpush.bf16.msra.mxu0 %v1131
          %1143 = vmatpush.bf16.msra.mxu0 %v1130
          %1144 = vmatpush.bf16.msra.mxu0 %v1129
          %1145 = vmatpush.bf16.msra.mxu0 %v1128
          %1146 = vmatpush.bf16.msra.mxu0 %v1127
          %1147 = vmatpush.bf16.msra.mxu0 %v1126
          %1148 = vmatpush.bf16.msra.mxu0 %v1125
          %1149 = vmatmul.bf16.gmra.mxu0 %v1071
          %v1150 = vpop.f32.mrf.mxu0
          %v1151 = vadd.f32 %v1091, %v1150
          %v1152 = vpop.f32.mrf.mxu0
          %v1153 = vadd.f32 %v1091, %v1152
          %1154 = vmatmul.bf16.gmra.mxu0 %v1072
          %v1155 = vpop.f32.mrf.mxu0
          %v1156 = vadd.f32 %v1091, %v1155
          %v1157 = vpop.f32.mrf.mxu0
          %v1158 = vadd.f32 %v1091, %v1157
          %1159 = vdwg.mxu0
          %v1160 = vpack.c.bf16 %v1151, %v1151
          %v1161 = vpack.c.bf16 %v1153, %v1153
          %v1162 = vpack.c.bf16 %v1156, %v1156
          %v1163 = vpack.c.bf16 %v1158, %v1158
          %1164 = vst [vmem:[#allocation2] sm:$0xf] %v1160
          %1165 = vst [vmem:[#allocation2 + $0x8] sm:$0xf] %v1161
          %1166 = vst [vmem:[#allocation2 + $0x10] sm:$0xf] %v1162
          %1167 = vst [vmem:[#allocation2 + $0x18] sm:$0xf] %v1163
          %v1168 = vld [vmem:[#allocation10] sm:$0xf]
          %v1169 = vld [vmem:[#allocation10 + $0x4] sm:$0xf]
          %v1170 = vld [vmem:[#allocation10 + $0x8] sm:$0xf]
          %v1171 = vld [vmem:[#allocation10 + $0xc] sm:$0xf]
          %v1172 = vld [vmem:[#allocation10 + $0x10] sm:$0xf]
          %v1173 = vld [vmem:[#allocation10 + $0x14] sm:$0xf]
          %v1174 = vld [vmem:[#allocation10 + $0x18] sm:$0xf]
          %v1175 = vld [vmem:[#allocation10 + $0x1c] sm:$0xf]
          %v1176 = vld [vmem:[#allocation10 + $0x20] sm:$0xf]
          %v1177 = vld [vmem:[#allocation10 + $0x24] sm:$0xf]
          %v1178 = vld [vmem:[#allocation10 + $0x28] sm:$0xf]
          %v1179 = vld [vmem:[#allocation10 + $0x2c] sm:$0xf]
          %v1180 = vld [vmem:[#allocation10 + $0x30] sm:$0xf]
          %v1181 = vld [vmem:[#allocation10 + $0x34] sm:$0xf]
          %v1182 = vld [vmem:[#allocation10 + $0x38] sm:$0xf]
          %v1183 = vld [vmem:[#allocation10 + $0x3c] sm:$0xf]
          %v1184 = vld [vmem:[%s4] sm:$0xff]
          %v1185 = vld [vmem:[%s4 + $0x8] sm:$0xff]
          %v1186 = vld [vmem:[%s4 + $0x10] sm:$0xff]
          %v1187 = vld [vmem:[%s4 + $0x18] sm:$0xff]
          %v1188 = vld [vmem:[%s17] sm:$0x1]
          %1190 = vset.pattern.permute.xlu0 0
          %1191 = vperm.xlu0 %1190, %v1184
          %v1192 = vpop.permute.xlu0 %1191
          %1195 = vset.pattern.permute.xlu0 0
          %1196 = vperm.xlu0 %1195, %v1185
          %v1197 = vpop.permute.xlu0 %1196
          %1200 = vset.pattern.permute.xlu0 0
          %1201 = vperm.xlu0 %1200, %v1186
          %v1202 = vpop.permute.xlu0 %1201
          %1205 = vset.pattern.permute.xlu0 0
          %1206 = vperm.xlu0 %1205, %v1187
          %v1207 = vpop.permute.xlu0 %1206
          %v1210 = vperm.slane %v1188, 0
          %v1212 = vmul.f32 %v1192, %v1210
          %v1213 = vmul.f32 %v1197, %v1210
          %v1214 = vmul.f32 %v1202, %v1210
          %v1215 = vmul.f32 %v1207, %v1210
          %v1232 = vunpack.c.l.b16 %v1168
          %v1233 = vunpack.c.l.b16 %v1169
          %v1234 = vunpack.c.l.b16 %v1170
          %v1235 = vunpack.c.l.b16 %v1171
          %v1236 = vunpack.c.l.b16 %v1172
          %v1237 = vunpack.c.l.b16 %v1173
          %v1238 = vunpack.c.l.b16 %v1174
          %v1239 = vunpack.c.l.b16 %v1175
          %v1240 = vunpack.c.l.b16 %v1176
          %v1241 = vunpack.c.l.b16 %v1177
          %v1242 = vunpack.c.l.b16 %v1178
          %v1243 = vunpack.c.l.b16 %v1179
          %v1244 = vunpack.c.l.b16 %v1180
          %v1245 = vunpack.c.l.b16 %v1181
          %v1246 = vunpack.c.l.b16 %v1182
          %v1247 = vunpack.c.l.b16 %v1183
          %v1248 = vpack.c.b16 %v1233, %v1232
          %v1249 = vpack.c.b16 %v1235, %v1234
          %v1250 = vpack.c.b16 %v1237, %v1236
          %v1251 = vpack.c.b16 %v1239, %v1238
          %v1252 = vpack.c.b16 %v1241, %v1240
          %v1253 = vpack.c.b16 %v1243, %v1242
          %v1254 = vpack.c.b16 %v1245, %v1244
          %v1255 = vpack.c.b16 %v1247, %v1246
          %1264 = vmatpush.bf16.msra.mxu0 %v1255
          %1265 = vmatpush.bf16.msra.mxu0 %v1254
          %1266 = vmatpush.bf16.msra.mxu0 %v1253
          %1267 = vmatpush.bf16.msra.mxu0 %v1252
          %1268 = vmatpush.bf16.msra.mxu0 %v1251
          %1269 = vmatpush.bf16.msra.mxu0 %v1250
          %1270 = vmatpush.bf16.msra.mxu0 %v1249
          %1271 = vmatpush.bf16.msra.mxu0 %v1248
          %1272 = vmatmul.bf16.gmra.mxu0 %v996
          %v1273 = vpop.f32.mrf.mxu0
          %v1274 = vadd.f32 %v1212, %v1273
          %v1275 = vpop.f32.mrf.mxu0
          %v1276 = vadd.f32 %v1213, %v1275
          %1277 = vmatmul.bf16.gmra.mxu0 %v997
          %v1278 = vpop.f32.mrf.mxu0
          %v1279 = vadd.f32 %v1214, %v1278
          %v1280 = vpop.f32.mrf.mxu0
          %v1281 = vadd.f32 %v1215, %v1280
          %1282 = vdwg.mxu0
          %v1283 = vpack.c.bf16 %v1274, %v1274
          %v1284 = vpack.c.bf16 %v1276, %v1276
          %v1285 = vpack.c.bf16 %v1279, %v1279
          %v1286 = vpack.c.bf16 %v1281, %v1281
          %1287 = vst [vmem:[#allocation2 + $0x4] sm:$0xf] %v1283
          %1288 = vst [vmem:[#allocation2 + $0xc] sm:$0xf] %v1284
          %1289 = vst [vmem:[#allocation2 + $0x14] sm:$0xf] %v1285
          %1290 = vst [vmem:[#allocation2 + $0x1c] sm:$0xf] %v1286
          %1291 = vst [vmem:[#allocation3] sm:$0xff] 0.0
          %1292 = vst [vmem:[#allocation3 + $0x8] sm:$0xff] 0.0
          %1293 = vst [vmem:[#allocation3 + $0x10] sm:$0xff] 0.0
          %1294 = vst [vmem:[#allocation3 + $0x18] sm:$0xff] 0.0
        $region160: #{tpu_custom_call.1} parent=127 // pred_fallthru
          _
        %v1295 = vld [vmem:[%s948] sm:$0xf]
        %v1296 = vld [vmem:[%s948 + $0x4] sm:$0xf]
        %v1297 = vld [vmem:[%s948 + $0x8] sm:$0xf]
        %v1298 = vld [vmem:[%s948 + $0xc] sm:$0xf]
        %v1299 = vld [vmem:[%s948 + $0x10] sm:$0xf]
        %v1300 = vld [vmem:[%s948 + $0x14] sm:$0xf]
        %v1301 = vld [vmem:[%s948 + $0x18] sm:$0xf]
        %v1302 = vld [vmem:[%s948 + $0x1c] sm:$0xf]
        %v1303 = vld [vmem:[%s948 + $0x20] sm:$0xf]
        %v1304 = vld [vmem:[%s948 + $0x24] sm:$0xf]
        %v1305 = vld [vmem:[%s948 + $0x28] sm:$0xf]
        %v1306 = vld [vmem:[%s948 + $0x2c] sm:$0xf]
        %v1307 = vld [vmem:[%s948 + $0x30] sm:$0xf]
        %v1308 = vld [vmem:[%s948 + $0x34] sm:$0xf]
        %v1309 = vld [vmem:[%s948 + $0x38] sm:$0xf]
        %v1310 = vld [vmem:[%s948 + $0x3c] sm:$0xf]
        %v1311 = vld [vmem:[%s957] sm:$0xff]
        %v1312 = vld [vmem:[%s957 + $0x8] sm:$0xff]
        %v1313 = vld [vmem:[%s957 + $0x10] sm:$0xff]
        %v1314 = vld [vmem:[%s957 + $0x18] sm:$0xff]
        %v1315 = vld [vmem:[%s957 + $0x20] sm:$0xff]
        %v1316 = vld [vmem:[%s957 + $0x28] sm:$0xff]
        %v1317 = vld [vmem:[%s957 + $0x30] sm:$0xff]
        %v1318 = vld [vmem:[%s957 + $0x38] sm:$0xff]
        %v1319 = vld [vmem:[%s957 + $0x40] sm:$0xff]
        %v1320 = vld [vmem:[%s957 + $0x48] sm:$0xff]
        %v1321 = vld [vmem:[%s957 + $0x50] sm:$0xff]
        %v1322 = vld [vmem:[%s957 + $0x58] sm:$0xff]
        %v1323 = vld [vmem:[%s957 + $0x60] sm:$0xff]
        %v1324 = vld [vmem:[%s957 + $0x68] sm:$0xff]
        %v1325 = vld [vmem:[%s957 + $0x70] sm:$0xff]
        %v1326 = vld [vmem:[%s957 + $0x78] sm:$0xff]
        %v1327 = vld [vmem:[%s952] sm:$0x1]
        %v1328 = vlaneseq
        %v1329 = vand.u32 %v1328, 127
        %1330 = vset.pattern.permute.xlu0 0
        %1331 = vperm.xlu0 %1330, %v1311
        %v1332 = vpop.permute.xlu0 %1331
        %1333 = vset.pattern.permute.xlu0 0
        %1334 = vperm.xlu0 %1333, %v1312
        %v1335 = vpop.permute.xlu0 %1334
        %1336 = vset.pattern.permute.xlu0 0
        %1337 = vperm.xlu0 %1336, %v1313
        %v1338 = vpop.permute.xlu0 %1337
        %1339 = vset.pattern.permute.xlu0 0
        %1340 = vperm.xlu0 %1339, %v1314
        %v1341 = vpop.permute.xlu0 %1340
        %1342 = vset.pattern.permute.xlu0 0
        %1343 = vperm.xlu0 %1342, %v1315
        %v1344 = vpop.permute.xlu0 %1343
        %1345 = vset.pattern.permute.xlu0 0
        %1346 = vperm.xlu0 %1345, %v1316
        %v1347 = vpop.permute.xlu0 %1346
        %1348 = vset.pattern.permute.xlu0 0
        %1349 = vperm.xlu0 %1348, %v1317
        %v1350 = vpop.permute.xlu0 %1349
        %1351 = vset.pattern.permute.xlu0 0
        %1352 = vperm.xlu0 %1351, %v1318
        %v1353 = vpop.permute.xlu0 %1352
        %1354 = vset.pattern.permute.xlu0 0
        %1355 = vperm.xlu0 %1354, %v1319
        %v1356 = vpop.permute.xlu0 %1355
        %1357 = vset.pattern.permute.xlu0 0
        %1358 = vperm.xlu0 %1357, %v1320
        %v1359 = vpop.permute.xlu0 %1358
        %1360 = vset.pattern.permute.xlu0 0
        %1361 = vperm.xlu0 %1360, %v1321
        %v1362 = vpop.permute.xlu0 %1361
        %1363 = vset.pattern.permute.xlu0 0
        %1364 = vperm.xlu0 %1363, %v1322
        %v1365 = vpop.permute.xlu0 %1364
        %1366 = vset.pattern.permute.xlu0 0
        %1367 = vperm.xlu0 %1366, %v1323
        %v1368 = vpop.permute.xlu0 %1367
        %1369 = vset.pattern.permute.xlu0 0
        %1370 = vperm.xlu0 %1369, %v1324
        %v1371 = vpop.permute.xlu0 %1370
        %1372 = vset.pattern.permute.xlu0 0
        %1373 = vperm.xlu0 %1372, %v1325
        %v1374 = vpop.permute.xlu0 %1373
        %1375 = vset.pattern.permute.xlu0 0
        %1376 = vperm.xlu0 %1375, %v1326
        %v1377 = vpop.permute.xlu0 %1376
        %vm1378 = vcmp.eq.s32.totalorder %v1329, %v1332
        %vm1379 = vcmp.eq.s32.totalorder %v1329, %v1335
        %vm1380 = vcmp.eq.s32.totalorder %v1329, %v1338
        %vm1381 = vcmp.eq.s32.totalorder %v1329, %v1341
        %vm1382 = vcmp.eq.s32.totalorder %v1329, %v1344
        %vm1383 = vcmp.eq.s32.totalorder %v1329, %v1347
        %vm1384 = vcmp.eq.s32.totalorder %v1329, %v1350
        %vm1385 = vcmp.eq.s32.totalorder %v1329, %v1353
        %vm1386 = vcmp.eq.s32.totalorder %v1329, %v1356
        %vm1387 = vcmp.eq.s32.totalorder %v1329, %v1359
        %vm1388 = vcmp.eq.s32.totalorder %v1329, %v1362
        %vm1389 = vcmp.eq.s32.totalorder %v1329, %v1365
        %vm1390 = vcmp.eq.s32.totalorder %v1329, %v1368
        %vm1391 = vcmp.eq.s32.totalorder %v1329, %v1371
        %vm1392 = vcmp.eq.s32.totalorder %v1329, %v1374
        %vm1393 = vcmp.eq.s32.totalorder %v1329, %v1377
        %v1394 = vsel %vm1378, 1, 0
        %v1395 = vsel %vm1379, 1, 0
        %v1396 = vsel %vm1380, 1, 0
        %v1397 = vsel %vm1381, 1, 0
        %v1398 = vsel %vm1382, 1, 0
        %v1399 = vsel %vm1383, 1, 0
        %v1400 = vsel %vm1384, 1, 0
        %v1401 = vsel %vm1385, 1, 0
        %v1402 = vsel %vm1386, 1, 0
        %v1403 = vsel %vm1387, 1, 0
        %v1404 = vsel %vm1388, 1, 0
        %v1405 = vsel %vm1389, 1, 0
        %v1406 = vsel %vm1390, 1, 0
        %v1407 = vsel %vm1391, 1, 0
        %v1408 = vsel %vm1392, 1, 0
        %v1409 = vsel %vm1393, 1, 0
        %v1410 = vcvt.s32.f32 %v1394
        %v1411 = vcvt.s32.f32 %v1395
        %v1412 = vcvt.s32.f32 %v1396
        %v1413 = vcvt.s32.f32 %v1397
        %v1414 = vcvt.s32.f32 %v1398
        %v1415 = vcvt.s32.f32 %v1399
        %v1416 = vcvt.s32.f32 %v1400
        %v1417 = vcvt.s32.f32 %v1401
        %v1418 = vcvt.s32.f32 %v1402
        %v1419 = vcvt.s32.f32 %v1403
        %v1420 = vcvt.s32.f32 %v1404
        %v1421 = vcvt.s32.f32 %v1405
        %v1422 = vcvt.s32.f32 %v1406
        %v1423 = vcvt.s32.f32 %v1407
        %v1424 = vcvt.s32.f32 %v1408
        %v1425 = vcvt.s32.f32 %v1409
        %v1426 = vpack.c.bf16 %v1411, %v1410
        %v1427 = vpack.c.bf16 %v1413, %v1412
        %v1428 = vpack.c.bf16 %v1415, %v1414
        %v1429 = vpack.c.bf16 %v1417, %v1416
        %v1430 = vpack.c.bf16 %v1419, %v1418
        %v1431 = vpack.c.bf16 %v1421, %v1420
        %v1432 = vpack.c.bf16 %v1423, %v1422
        %v1433 = vpack.c.bf16 %v1425, %v1424
        %v1434 = vld [vmem:[#allocation2] sm:$0xff]
        %v1435 = vld [vmem:[#allocation2 + $0x8] sm:$0xff]
        %v1436 = vld [vmem:[#allocation2 + $0x10] sm:$0xff]
        %v1437 = vld [vmem:[#allocation2 + $0x18] sm:$0xff]
        %v1442 = vunpack.c.l.b16 %v1434
        %v1443 = vunpack.c.h.b16 %v1434
        %v1444 = vunpack.c.l.b16 %v1435
        %v1445 = vunpack.c.h.b16 %v1435
        %v1446 = vunpack.c.l.b16 %v1436
        %v1447 = vunpack.c.h.b16 %v1436
        %v1448 = vunpack.c.l.b16 %v1437
        %v1449 = vunpack.c.h.b16 %v1437
        %v1450 = vpack.c.b16 %v1444, %v1442
        %v1451 = vpack.c.b16 %v1445, %v1443
        %v1452 = vpack.c.b16 %v1448, %v1446
        %v1453 = vpack.c.b16 %v1449, %v1447
        %vm1458 = vcmask 261120
        %v1460 = vsel %vm1458, %v1426, 0
        %v1463 = vsel %vm1458, %v1427, 0
        %v1466 = vsel %vm1458, %v1428, 0
        %v1469 = vsel %vm1458, %v1429, 0
        %v1472 = vsel %vm1458, %v1430, 0
        %v1475 = vsel %vm1458, %v1431, 0
        %v1478 = vsel %vm1458, %v1432, 0
        %v1481 = vsel %vm1458, %v1433, 0
        %1483 = vmatpush.bf16.msra.mxu0 0
        %1484 = vmatpush.bf16.msra.mxu0 0
        %1485 = vmatpush.bf16.msra.mxu0 0
        %1486 = vmatpush.bf16.msra.mxu0 0
        %1487 = vmatpush.bf16.msra.mxu0 0
        %1488 = vmatpush.bf16.msra.mxu0 0
        %1489 = vmatpush.bf16.msra.mxu0 %v1452
        %1490 = vmatpush.bf16.msra.mxu0 %v1450
        %1491 = vmatmul.bf16.gmra.mxu0 %v1460
        %v1492 = vpop.f32.mrf.mxu0
        %v1493 = vadd.f32 0.0, %v1492
        %v1494 = vpop.f32.mrf.mxu0
        %v1495 = vadd.f32 0.0, %v1494
        %1496 = vmatmul.bf16.gmra.mxu0 %v1463
        %v1497 = vpop.f32.mrf.mxu0
        %v1498 = vadd.f32 0.0, %v1497
        %v1499 = vpop.f32.mrf.mxu0
        %v1500 = vadd.f32 0.0, %v1499
        %1501 = vmatmul.bf16.gmra.mxu0 %v1466
        %v1502 = vpop.f32.mrf.mxu0
        %v1503 = vadd.f32 0.0, %v1502
        %v1504 = vpop.f32.mrf.mxu0
        %v1505 = vadd.f32 0.0, %v1504
        %1506 = vmatmul.bf16.gmra.mxu0 %v1469
        %v1507 = vpop.f32.mrf.mxu0
        %v1508 = vadd.f32 0.0, %v1507
        %v1509 = vpop.f32.mrf.mxu0
        %v1510 = vadd.f32 0.0, %v1509
        %1511 = vmatmul.bf16.gmra.mxu0 %v1472
        %v1512 = vpop.f32.mrf.mxu0
        %v1513 = vadd.f32 0.0, %v1512
        %v1514 = vpop.f32.mrf.mxu0
        %v1515 = vadd.f32 0.0, %v1514
        %1516 = vmatmul.bf16.gmra.mxu0 %v1475
        %v1517 = vpop.f32.mrf.mxu0
        %v1518 = vadd.f32 0.0, %v1517
        %v1519 = vpop.f32.mrf.mxu0
        %v1520 = vadd.f32 0.0, %v1519
        %1521 = vmatmul.bf16.gmra.mxu0 %v1478
        %v1522 = vpop.f32.mrf.mxu0
        %v1523 = vadd.f32 0.0, %v1522
        %v1524 = vpop.f32.mrf.mxu0
        %v1525 = vadd.f32 0.0, %v1524
        %1526 = vmatmul.bf16.gmra.mxu0 %v1481
        %v1527 = vpop.f32.mrf.mxu0
        %v1528 = vadd.f32 0.0, %v1527
        %v1529 = vpop.f32.mrf.mxu0
        %v1530 = vadd.f32 0.0, %v1529
        %1531 = vdwg.mxu0
        %1532 = vmatpush.bf16.msra.mxu0 0
        %1533 = vmatpush.bf16.msra.mxu0 0
        %1534 = vmatpush.bf16.msra.mxu0 0
        %1535 = vmatpush.bf16.msra.mxu0 0
        %1536 = vmatpush.bf16.msra.mxu0 0
        %1537 = vmatpush.bf16.msra.mxu0 0
        %1538 = vmatpush.bf16.msra.mxu0 %v1453
        %1539 = vmatpush.bf16.msra.mxu0 %v1451
        %1540 = vmatmul.bf16.gmra.mxu0 %v1460
        %v1541 = vpop.f32.mrf.mxu0
        %v1542 = vadd.f32 0.0, %v1541
        %v1543 = vpop.f32.mrf.mxu0
        %v1544 = vadd.f32 0.0, %v1543
        %1545 = vmatmul.bf16.gmra.mxu0 %v1463
        %v1546 = vpop.f32.mrf.mxu0
        %v1547 = vadd.f32 0.0, %v1546
        %v1548 = vpop.f32.mrf.mxu0
        %v1549 = vadd.f32 0.0, %v1548
        %1550 = vmatmul.bf16.gmra.mxu0 %v1466
        %v1551 = vpop.f32.mrf.mxu0
        %v1552 = vadd.f32 0.0, %v1551
        %v1553 = vpop.f32.mrf.mxu0
        %v1554 = vadd.f32 0.0, %v1553
        %1555 = vmatmul.bf16.gmra.mxu0 %v1469
        %v1556 = vpop.f32.mrf.mxu0
        %v1557 = vadd.f32 0.0, %v1556
        %v1558 = vpop.f32.mrf.mxu0
        %v1559 = vadd.f32 0.0, %v1558
        %1560 = vmatmul.bf16.gmra.mxu0 %v1472
        %v1561 = vpop.f32.mrf.mxu0
        %v1562 = vadd.f32 0.0, %v1561
        %v1563 = vpop.f32.mrf.mxu0
        %v1564 = vadd.f32 0.0, %v1563
        %1565 = vmatmul.bf16.gmra.mxu0 %v1475
        %v1566 = vpop.f32.mrf.mxu0
        %v1567 = vadd.f32 0.0, %v1566
        %v1568 = vpop.f32.mrf.mxu0
        %v1569 = vadd.f32 0.0, %v1568
        %1570 = vmatmul.bf16.gmra.mxu0 %v1478
        %v1571 = vpop.f32.mrf.mxu0
        %v1572 = vadd.f32 0.0, %v1571
        %v1573 = vpop.f32.mrf.mxu0
        %v1574 = vadd.f32 0.0, %v1573
        %1575 = vmatmul.bf16.gmra.mxu0 %v1481
        %v1576 = vpop.f32.mrf.mxu0
        %v1577 = vadd.f32 0.0, %v1576
        %v1578 = vpop.f32.mrf.mxu0
        %v1579 = vadd.f32 0.0, %v1578
        %1580 = vdwg.mxu0
        %v1581 = vld [vmem:[%s9] sm:$0xf]
        %v1582 = vld [vmem:[%s9 + $0x4] sm:$0xf]
        %v1583 = vld [vmem:[%s9 + $0x8] sm:$0xf]
        %v1584 = vld [vmem:[%s9 + $0xc] sm:$0xf]
        %v1585 = vld [vmem:[%s9 + $0x10] sm:$0xf]
        %v1586 = vld [vmem:[%s9 + $0x14] sm:$0xf]
        %v1587 = vld [vmem:[%s9 + $0x18] sm:$0xf]
        %v1588 = vld [vmem:[%s9 + $0x1c] sm:$0xf]
        %v1589 = vld [vmem:[%s9 + $0x20] sm:$0xf]
        %v1590 = vld [vmem:[%s9 + $0x24] sm:$0xf]
        %v1591 = vld [vmem:[%s9 + $0x28] sm:$0xf]
        %v1592 = vld [vmem:[%s9 + $0x2c] sm:$0xf]
        %v1593 = vld [vmem:[%s9 + $0x30] sm:$0xf]
        %v1594 = vld [vmem:[%s9 + $0x34] sm:$0xf]
        %v1595 = vld [vmem:[%s9 + $0x38] sm:$0xf]
        %v1596 = vld [vmem:[%s9 + $0x3c] sm:$0xf]
        %v1597 = vld [vmem:[%s10] sm:$0x1]
        %v1599 = vperm.slane %v1597, 0
        %v1617 = vunpack.c.l.b16 %v1295
        %v1618 = vunpack.c.l.b16 %v1296
        %v1619 = vunpack.c.l.b16 %v1297
        %v1620 = vunpack.c.l.b16 %v1298
        %v1621 = vunpack.c.l.b16 %v1299
        %v1622 = vunpack.c.l.b16 %v1300
        %v1623 = vunpack.c.l.b16 %v1301
        %v1624 = vunpack.c.l.b16 %v1302
        %v1625 = vunpack.c.l.b16 %v1303
        %v1626 = vunpack.c.l.b16 %v1304
        %v1627 = vunpack.c.l.b16 %v1305
        %v1628 = vunpack.c.l.b16 %v1306
        %v1629 = vunpack.c.l.b16 %v1307
        %v1630 = vunpack.c.l.b16 %v1308
        %v1631 = vunpack.c.l.b16 %v1309
        %v1632 = vunpack.c.l.b16 %v1310
        %v1633 = vpack.c.b16 %v1618, %v1617
        %v1634 = vpack.c.b16 %v1620, %v1619
        %v1635 = vpack.c.b16 %v1622, %v1621
        %v1636 = vpack.c.b16 %v1624, %v1623
        %v1637 = vpack.c.b16 %v1626, %v1625
        %v1638 = vpack.c.b16 %v1628, %v1627
        %v1639 = vpack.c.b16 %v1630, %v1629
        %v1640 = vpack.c.b16 %v1632, %v1631
        %v1665 = vunpack.c.l.b16 %v1581
        %v1666 = vunpack.c.l.b16 %v1582
        %v1667 = vunpack.c.l.b16 %v1583
        %v1668 = vunpack.c.l.b16 %v1584
        %v1669 = vunpack.c.l.b16 %v1585
        %v1670 = vunpack.c.l.b16 %v1586
        %v1671 = vunpack.c.l.b16 %v1587
        %v1672 = vunpack.c.l.b16 %v1588
        %v1673 = vunpack.c.l.b16 %v1589
        %v1674 = vunpack.c.l.b16 %v1590
        %v1675 = vunpack.c.l.b16 %v1591
        %v1676 = vunpack.c.l.b16 %v1592
        %v1677 = vunpack.c.l.b16 %v1593
        %v1678 = vunpack.c.l.b16 %v1594
        %v1679 = vunpack.c.l.b16 %v1595
        %v1680 = vunpack.c.l.b16 %v1596
        %v1681 = vpack.c.b16 %v1666, %v1665
        %v1682 = vpack.c.b16 %v1668, %v1667
        %v1683 = vpack.c.b16 %v1670, %v1669
        %v1684 = vpack.c.b16 %v1672, %v1671
        %v1685 = vpack.c.b16 %v1674, %v1673
        %v1686 = vpack.c.b16 %v1676, %v1675
        %v1687 = vpack.c.b16 %v1678, %v1677
        %v1688 = vpack.c.b16 %v1680, %v1679
        %1697 = vmatpush.bf16.msra.mxu0 %v1688
        %1698 = vmatpush.bf16.msra.mxu0 %v1687
        %1699 = vmatpush.bf16.msra.mxu0 %v1686
        %1700 = vmatpush.bf16.msra.mxu0 %v1685
        %1701 = vmatpush.bf16.msra.mxu0 %v1684
        %1702 = vmatpush.bf16.msra.mxu0 %v1683
        %1703 = vmatpush.bf16.msra.mxu0 %v1682
        %1704 = vmatpush.bf16.msra.mxu0 %v1681
        %1705 = vmatmul.bf16.gmra.mxu0 %v1633
        %v1706 = vpop.f32.mrf.mxu0
        %v1707 = vadd.f32 %v1599, %v1706
        %v1708 = vpop.f32.mrf.mxu0
        %v1709 = vadd.f32 %v1599, %v1708
        %1710 = vmatmul.bf16.gmra.mxu0 %v1634
        %v1711 = vpop.f32.mrf.mxu0
        %v1712 = vadd.f32 %v1599, %v1711
        %v1713 = vpop.f32.mrf.mxu0
        %v1714 = vadd.f32 %v1599, %v1713
        %1715 = vmatmul.bf16.gmra.mxu0 %v1635
        %v1716 = vpop.f32.mrf.mxu0
        %v1717 = vadd.f32 %v1599, %v1716
        %v1718 = vpop.f32.mrf.mxu0
        %v1719 = vadd.f32 %v1599, %v1718
        %1720 = vmatmul.bf16.gmra.mxu0 %v1636
        %v1721 = vpop.f32.mrf.mxu0
        %v1722 = vadd.f32 %v1599, %v1721
        %v1723 = vpop.f32.mrf.mxu0
        %v1724 = vadd.f32 %v1599, %v1723
        %1725 = vmatmul.bf16.gmra.mxu0 %v1637
        %v1726 = vpop.f32.mrf.mxu0
        %v1727 = vadd.f32 %v1599, %v1726
        %v1728 = vpop.f32.mrf.mxu0
        %v1729 = vadd.f32 %v1599, %v1728
        %1730 = vmatmul.bf16.gmra.mxu0 %v1638
        %v1731 = vpop.f32.mrf.mxu0
        %v1732 = vadd.f32 %v1599, %v1731
        %v1733 = vpop.f32.mrf.mxu0
        %v1734 = vadd.f32 %v1599, %v1733
        %1735 = vmatmul.bf16.gmra.mxu0 %v1639
        %v1736 = vpop.f32.mrf.mxu0
        %v1737 = vadd.f32 %v1599, %v1736
        %v1738 = vpop.f32.mrf.mxu0
        %v1739 = vadd.f32 %v1599, %v1738
        %1740 = vmatmul.bf16.gmra.mxu0 %v1640
        %v1741 = vpop.f32.mrf.mxu0
        %v1742 = vadd.f32 %v1599, %v1741
        %v1743 = vpop.f32.mrf.mxu0
        %v1744 = vadd.f32 %v1599, %v1743
        %1745 = vdwg.mxu0
        %v1746 = vmax.f32 %v1707, 0.0
        %v1747 = vmax.f32 %v1709, 0.0
        %v1748 = vmax.f32 %v1712, 0.0
        %v1749 = vmax.f32 %v1714, 0.0
        %v1750 = vmax.f32 %v1717, 0.0
        %v1751 = vmax.f32 %v1719, 0.0
        %v1752 = vmax.f32 %v1722, 0.0
        %v1753 = vmax.f32 %v1724, 0.0
        %v1754 = vmax.f32 %v1727, 0.0
        %v1755 = vmax.f32 %v1729, 0.0
        %v1756 = vmax.f32 %v1732, 0.0
        %v1757 = vmax.f32 %v1734, 0.0
        %v1758 = vmax.f32 %v1737, 0.0
        %v1759 = vmax.f32 %v1739, 0.0
        %v1760 = vmax.f32 %v1742, 0.0
        %v1761 = vmax.f32 %v1744, 0.0
        %v1762 = vpack.c.bf16 %v1747, %v1746
        %v1763 = vpack.c.bf16 %v1749, %v1748
        %v1764 = vpack.c.bf16 %v1751, %v1750
        %v1765 = vpack.c.bf16 %v1753, %v1752
        %v1766 = vpack.c.bf16 %v1755, %v1754
        %v1767 = vpack.c.bf16 %v1757, %v1756
        %v1768 = vpack.c.bf16 %v1759, %v1758
        %v1769 = vpack.c.bf16 %v1761, %v1760
        %v1770 = vld [vmem:[#allocation4] sm:$0xf]
        %v1771 = vld [vmem:[#allocation4 + $0x4] sm:$0xf]
        %v1772 = vld [vmem:[#allocation4 + $0x8] sm:$0xf]
        %v1773 = vld [vmem:[#allocation4 + $0xc] sm:$0xf]
        %v1774 = vld [vmem:[#allocation4 + $0x10] sm:$0xf]
        %v1775 = vld [vmem:[#allocation4 + $0x14] sm:$0xf]
        %v1776 = vld [vmem:[#allocation4 + $0x18] sm:$0xf]
        %v1777 = vld [vmem:[#allocation4 + $0x1c] sm:$0xf]
        %v1778 = vld [vmem:[#allocation4 + $0x20] sm:$0xf]
        %v1779 = vld [vmem:[#allocation4 + $0x24] sm:$0xf]
        %v1780 = vld [vmem:[#allocation4 + $0x28] sm:$0xf]
        %v1781 = vld [vmem:[#allocation4 + $0x2c] sm:$0xf]
        %v1782 = vld [vmem:[#allocation4 + $0x30] sm:$0xf]
        %v1783 = vld [vmem:[#allocation4 + $0x34] sm:$0xf]
        %v1784 = vld [vmem:[#allocation4 + $0x38] sm:$0xf]
        %v1785 = vld [vmem:[#allocation4 + $0x3c] sm:$0xf]
        %v1786 = vld [vmem:[%s12] sm:$0x1]
        %v1788 = vperm.slane %v1786, 0
        %v1806 = vunpack.c.l.b16 %v1770
        %v1807 = vunpack.c.l.b16 %v1771
        %v1808 = vunpack.c.l.b16 %v1772
        %v1809 = vunpack.c.l.b16 %v1773
        %v1810 = vunpack.c.l.b16 %v1774
        %v1811 = vunpack.c.l.b16 %v1775
        %v1812 = vunpack.c.l.b16 %v1776
        %v1813 = vunpack.c.l.b16 %v1777
        %v1814 = vunpack.c.l.b16 %v1778
        %v1815 = vunpack.c.l.b16 %v1779
        %v1816 = vunpack.c.l.b16 %v1780
        %v1817 = vunpack.c.l.b16 %v1781
        %v1818 = vunpack.c.l.b16 %v1782
        %v1819 = vunpack.c.l.b16 %v1783
        %v1820 = vunpack.c.l.b16 %v1784
        %v1821 = vunpack.c.l.b16 %v1785
        %v1822 = vpack.c.b16 %v1807, %v1806
        %v1823 = vpack.c.b16 %v1809, %v1808
        %v1824 = vpack.c.b16 %v1811, %v1810
        %v1825 = vpack.c.b16 %v1813, %v1812
        %v1826 = vpack.c.b16 %v1815, %v1814
        %v1827 = vpack.c.b16 %v1817, %v1816
        %v1828 = vpack.c.b16 %v1819, %v1818
        %v1829 = vpack.c.b16 %v1821, %v1820
        %1838 = vmatpush.bf16.msra.mxu0 %v1829
        %1839 = vmatpush.bf16.msra.mxu0 %v1828
        %1840 = vmatpush.bf16.msra.mxu0 %v1827
        %1841 = vmatpush.bf16.msra.mxu0 %v1826
        %1842 = vmatpush.bf16.msra.mxu0 %v1825
        %1843 = vmatpush.bf16.msra.mxu0 %v1824
        %1844 = vmatpush.bf16.msra.mxu0 %v1823
        %1845 = vmatpush.bf16.msra.mxu0 %v1822
        %1846 = vmatmul.bf16.gmra.mxu0 %v1762
        %v1847 = vpop.f32.mrf.mxu0
        %v1848 = vadd.f32 %v1788, %v1847
        %v1849 = vpop.f32.mrf.mxu0
        %v1850 = vadd.f32 %v1788, %v1849
        %1851 = vmatmul.bf16.gmra.mxu0 %v1763
        %v1852 = vpop.f32.mrf.mxu0
        %v1853 = vadd.f32 %v1788, %v1852
        %v1854 = vpop.f32.mrf.mxu0
        %v1855 = vadd.f32 %v1788, %v1854
        %1856 = vmatmul.bf16.gmra.mxu0 %v1764
        %v1857 = vpop.f32.mrf.mxu0
        %v1858 = vadd.f32 %v1788, %v1857
        %v1859 = vpop.f32.mrf.mxu0
        %v1860 = vadd.f32 %v1788, %v1859
        %1861 = vmatmul.bf16.gmra.mxu0 %v1765
        %v1862 = vpop.f32.mrf.mxu0
        %v1863 = vadd.f32 %v1788, %v1862
        %v1864 = vpop.f32.mrf.mxu0
        %v1865 = vadd.f32 %v1788, %v1864
        %1866 = vmatmul.bf16.gmra.mxu0 %v1766
        %v1867 = vpop.f32.mrf.mxu0
        %v1868 = vadd.f32 %v1788, %v1867
        %v1869 = vpop.f32.mrf.mxu0
        %v1870 = vadd.f32 %v1788, %v1869
        %1871 = vmatmul.bf16.gmra.mxu0 %v1767
        %v1872 = vpop.f32.mrf.mxu0
        %v1873 = vadd.f32 %v1788, %v1872
        %v1874 = vpop.f32.mrf.mxu0
        %v1875 = vadd.f32 %v1788, %v1874
        %1876 = vmatmul.bf16.gmra.mxu0 %v1768
        %v1877 = vpop.f32.mrf.mxu0
        %v1878 = vadd.f32 %v1788, %v1877
        %v1879 = vpop.f32.mrf.mxu0
        %v1880 = vadd.f32 %v1788, %v1879
        %1881 = vmatmul.bf16.gmra.mxu0 %v1769
        %v1882 = vpop.f32.mrf.mxu0
        %v1883 = vadd.f32 %v1788, %v1882
        %v1884 = vpop.f32.mrf.mxu0
        %v1885 = vadd.f32 %v1788, %v1884
        %1886 = vdwg.mxu0
        %v1887 = vmul.f32 %v1848, %v1493
        %v1888 = vmul.f32 %v1850, %v1495
        %v1889 = vmul.f32 %v1853, %v1498
        %v1890 = vmul.f32 %v1855, %v1500
        %v1891 = vmul.f32 %v1858, %v1503
        %v1892 = vmul.f32 %v1860, %v1505
        %v1893 = vmul.f32 %v1863, %v1508
        %v1894 = vmul.f32 %v1865, %v1510
        %v1895 = vmul.f32 %v1868, %v1513
        %v1896 = vmul.f32 %v1870, %v1515
        %v1897 = vmul.f32 %v1873, %v1518
        %v1898 = vmul.f32 %v1875, %v1520
        %v1899 = vmul.f32 %v1878, %v1523
        %v1900 = vmul.f32 %v1880, %v1525
        %v1901 = vmul.f32 %v1883, %v1528
        %v1902 = vmul.f32 %v1885, %v1530
        %v1903 = vpack.c.bf16 %v1888, %v1887
        %v1904 = vpack.c.bf16 %v1890, %v1889
        %v1905 = vpack.c.bf16 %v1892, %v1891
        %v1906 = vpack.c.bf16 %v1894, %v1893
        %v1907 = vpack.c.bf16 %v1896, %v1895
        %v1908 = vpack.c.bf16 %v1898, %v1897
        %v1909 = vpack.c.bf16 %v1900, %v1899
        %v1910 = vpack.c.bf16 %v1902, %v1901
        %v1911 = vld [vmem:[#allocation7] sm:$0xf]
        %v1912 = vld [vmem:[#allocation7 + $0x4] sm:$0xf]
        %v1913 = vld [vmem:[#allocation7 + $0x8] sm:$0xf]
        %v1914 = vld [vmem:[#allocation7 + $0xc] sm:$0xf]
        %v1915 = vld [vmem:[#allocation7 + $0x10] sm:$0xf]
        %v1916 = vld [vmem:[#allocation7 + $0x14] sm:$0xf]
        %v1917 = vld [vmem:[#allocation7 + $0x18] sm:$0xf]
        %v1918 = vld [vmem:[#allocation7 + $0x1c] sm:$0xf]
        %v1919 = vld [vmem:[#allocation7 + $0x20] sm:$0xf]
        %v1920 = vld [vmem:[#allocation7 + $0x24] sm:$0xf]
        %v1921 = vld [vmem:[#allocation7 + $0x28] sm:$0xf]
        %v1922 = vld [vmem:[#allocation7 + $0x2c] sm:$0xf]
        %v1923 = vld [vmem:[#allocation7 + $0x30] sm:$0xf]
        %v1924 = vld [vmem:[#allocation7 + $0x34] sm:$0xf]
        %v1925 = vld [vmem:[#allocation7 + $0x38] sm:$0xf]
        %v1926 = vld [vmem:[#allocation7 + $0x3c] sm:$0xf]
        %v1927 = vld [vmem:[%s14] sm:$0x1]
        %v1929 = vperm.slane %v1927, 0
        %v1947 = vunpack.c.l.b16 %v1911
        %v1948 = vunpack.c.l.b16 %v1912
        %v1949 = vunpack.c.l.b16 %v1913
        %v1950 = vunpack.c.l.b16 %v1914
        %v1951 = vunpack.c.l.b16 %v1915
        %v1952 = vunpack.c.l.b16 %v1916
        %v1953 = vunpack.c.l.b16 %v1917
        %v1954 = vunpack.c.l.b16 %v1918
        %v1955 = vunpack.c.l.b16 %v1919
        %v1956 = vunpack.c.l.b16 %v1920
        %v1957 = vunpack.c.l.b16 %v1921
        %v1958 = vunpack.c.l.b16 %v1922
        %v1959 = vunpack.c.l.b16 %v1923
        %v1960 = vunpack.c.l.b16 %v1924
        %v1961 = vunpack.c.l.b16 %v1925
        %v1962 = vunpack.c.l.b16 %v1926
        %v1963 = vpack.c.b16 %v1948, %v1947
        %v1964 = vpack.c.b16 %v1950, %v1949
        %v1965 = vpack.c.b16 %v1952, %v1951
        %v1966 = vpack.c.b16 %v1954, %v1953
        %v1967 = vpack.c.b16 %v1956, %v1955
        %v1968 = vpack.c.b16 %v1958, %v1957
        %v1969 = vpack.c.b16 %v1960, %v1959
        %v1970 = vpack.c.b16 %v1962, %v1961
        %1979 = vmatpush.bf16.msra.mxu0 %v1970
        %1980 = vmatpush.bf16.msra.mxu0 %v1969
        %1981 = vmatpush.bf16.msra.mxu0 %v1968
        %1982 = vmatpush.bf16.msra.mxu0 %v1967
        %1983 = vmatpush.bf16.msra.mxu0 %v1966
        %1984 = vmatpush.bf16.msra.mxu0 %v1965
        %1985 = vmatpush.bf16.msra.mxu0 %v1964
        %1986 = vmatpush.bf16.msra.mxu0 %v1963
        %1987 = vmatmul.bf16.gmra.mxu0 %v1903
        %v1988 = vpop.f32.mrf.mxu0
        %v1989 = vadd.f32 %v1929, %v1988
        %v1990 = vpop.f32.mrf.mxu0
        %v1991 = vadd.f32 %v1929, %v1990
        %1992 = vmatmul.bf16.gmra.mxu0 %v1904
        %v1993 = vpop.f32.mrf.mxu0
        %v1994 = vadd.f32 %v1929, %v1993
        %v1995 = vpop.f32.mrf.mxu0
        %v1996 = vadd.f32 %v1929, %v1995
        %1997 = vmatmul.bf16.gmra.mxu0 %v1905
        %v1998 = vpop.f32.mrf.mxu0
        %v1999 = vadd.f32 %v1929, %v1998
        %v2000 = vpop.f32.mrf.mxu0
        %v2001 = vadd.f32 %v1929, %v2000
        %2002 = vmatmul.bf16.gmra.mxu0 %v1906
        %v2003 = vpop.f32.mrf.mxu0
        %v2004 = vadd.f32 %v1929, %v2003
        %v2005 = vpop.f32.mrf.mxu0
        %v2006 = vadd.f32 %v1929, %v2005
        %2007 = vmatmul.bf16.gmra.mxu0 %v1907
        %v2008 = vpop.f32.mrf.mxu0
        %v2009 = vadd.f32 %v1929, %v2008
        %v2010 = vpop.f32.mrf.mxu0
        %v2011 = vadd.f32 %v1929, %v2010
        %2012 = vmatmul.bf16.gmra.mxu0 %v1908
        %v2013 = vpop.f32.mrf.mxu0
        %v2014 = vadd.f32 %v1929, %v2013
        %v2015 = vpop.f32.mrf.mxu0
        %v2016 = vadd.f32 %v1929, %v2015
        %2017 = vmatmul.bf16.gmra.mxu0 %v1909
        %v2018 = vpop.f32.mrf.mxu0
        %v2019 = vadd.f32 %v1929, %v2018
        %v2020 = vpop.f32.mrf.mxu0
        %v2021 = vadd.f32 %v1929, %v2020
        %2022 = vmatmul.bf16.gmra.mxu0 %v1910
        %v2023 = vpop.f32.mrf.mxu0
        %v2024 = vadd.f32 %v1929, %v2023
        %v2025 = vpop.f32.mrf.mxu0
        %v2026 = vadd.f32 %v1929, %v2025
        %2027 = vdwg.mxu0
        %v2028 = vld [vmem:[#allocation9] sm:$0xf]
        %v2029 = vld [vmem:[#allocation9 + $0x4] sm:$0xf]
        %v2030 = vld [vmem:[#allocation9 + $0x8] sm:$0xf]
        %v2031 = vld [vmem:[#allocation9 + $0xc] sm:$0xf]
        %v2032 = vld [vmem:[#allocation9 + $0x10] sm:$0xf]
        %v2033 = vld [vmem:[#allocation9 + $0x14] sm:$0xf]
        %v2034 = vld [vmem:[#allocation9 + $0x18] sm:$0xf]
        %v2035 = vld [vmem:[#allocation9 + $0x1c] sm:$0xf]
        %v2036 = vld [vmem:[#allocation9 + $0x20] sm:$0xf]
        %v2037 = vld [vmem:[#allocation9 + $0x24] sm:$0xf]
        %v2038 = vld [vmem:[#allocation9 + $0x28] sm:$0xf]
        %v2039 = vld [vmem:[#allocation9 + $0x2c] sm:$0xf]
        %v2040 = vld [vmem:[#allocation9 + $0x30] sm:$0xf]
        %v2041 = vld [vmem:[#allocation9 + $0x34] sm:$0xf]
        %v2042 = vld [vmem:[#allocation9 + $0x38] sm:$0xf]
        %v2043 = vld [vmem:[#allocation9 + $0x3c] sm:$0xf]
        %v2060 = vunpack.c.l.b16 %v2028
        %v2061 = vunpack.c.l.b16 %v2029
        %v2062 = vunpack.c.l.b16 %v2030
        %v2063 = vunpack.c.l.b16 %v2031
        %v2064 = vunpack.c.l.b16 %v2032
        %v2065 = vunpack.c.l.b16 %v2033
        %v2066 = vunpack.c.l.b16 %v2034
        %v2067 = vunpack.c.l.b16 %v2035
        %v2068 = vunpack.c.l.b16 %v2036
        %v2069 = vunpack.c.l.b16 %v2037
        %v2070 = vunpack.c.l.b16 %v2038
        %v2071 = vunpack.c.l.b16 %v2039
        %v2072 = vunpack.c.l.b16 %v2040
        %v2073 = vunpack.c.l.b16 %v2041
        %v2074 = vunpack.c.l.b16 %v2042
        %v2075 = vunpack.c.l.b16 %v2043
        %v2076 = vpack.c.b16 %v2061, %v2060
        %v2077 = vpack.c.b16 %v2063, %v2062
        %v2078 = vpack.c.b16 %v2065, %v2064
        %v2079 = vpack.c.b16 %v2067, %v2066
        %v2080 = vpack.c.b16 %v2069, %v2068
        %v2081 = vpack.c.b16 %v2071, %v2070
        %v2082 = vpack.c.b16 %v2073, %v2072
        %v2083 = vpack.c.b16 %v2075, %v2074
        %2092 = vmatpush.bf16.msra.mxu0 %v2083
        %2093 = vmatpush.bf16.msra.mxu0 %v2082
        %2094 = vmatpush.bf16.msra.mxu0 %v2081
        %2095 = vmatpush.bf16.msra.mxu0 %v2080
        %2096 = vmatpush.bf16.msra.mxu0 %v2079
        %2097 = vmatpush.bf16.msra.mxu0 %v2078
        %2098 = vmatpush.bf16.msra.mxu0 %v2077
        %2099 = vmatpush.bf16.msra.mxu0 %v2076
        %2100 = vmatmul.bf16.gmra.mxu0 %v1633
        %v2101 = vpop.f32.mrf.mxu0
        %v2102 = vadd.f32 %v1542, %v2101
        %v2103 = vpop.f32.mrf.mxu0
        %v2104 = vadd.f32 %v1544, %v2103
        %2105 = vmatmul.bf16.gmra.mxu0 %v1634
        %v2106 = vpop.f32.mrf.mxu0
        %v2107 = vadd.f32 %v1547, %v2106
        %v2108 = vpop.f32.mrf.mxu0
        %v2109 = vadd.f32 %v1549, %v2108
        %2110 = vmatmul.bf16.gmra.mxu0 %v1635
        %v2111 = vpop.f32.mrf.mxu0
        %v2112 = vadd.f32 %v1552, %v2111
        %v2113 = vpop.f32.mrf.mxu0
        %v2114 = vadd.f32 %v1554, %v2113
        %2115 = vmatmul.bf16.gmra.mxu0 %v1636
        %v2116 = vpop.f32.mrf.mxu0
        %v2117 = vadd.f32 %v1557, %v2116
        %v2118 = vpop.f32.mrf.mxu0
        %v2119 = vadd.f32 %v1559, %v2118
        %2120 = vmatmul.bf16.gmra.mxu0 %v1637
        %v2121 = vpop.f32.mrf.mxu0
        %v2122 = vadd.f32 %v1562, %v2121
        %v2123 = vpop.f32.mrf.mxu0
        %v2124 = vadd.f32 %v1564, %v2123
        %2125 = vmatmul.bf16.gmra.mxu0 %v1638
        %v2126 = vpop.f32.mrf.mxu0
        %v2127 = vadd.f32 %v1567, %v2126
        %v2128 = vpop.f32.mrf.mxu0
        %v2129 = vadd.f32 %v1569, %v2128
        %2130 = vmatmul.bf16.gmra.mxu0 %v1639
        %v2131 = vpop.f32.mrf.mxu0
        %v2132 = vadd.f32 %v1572, %v2131
        %v2133 = vpop.f32.mrf.mxu0
        %v2134 = vadd.f32 %v1574, %v2133
        %2135 = vmatmul.bf16.gmra.mxu0 %v1640
        %v2136 = vpop.f32.mrf.mxu0
        %v2137 = vadd.f32 %v1577, %v2136
        %v2138 = vpop.f32.mrf.mxu0
        %v2139 = vadd.f32 %v1579, %v2138
        %2140 = vdwg.mxu0
        %v2141 = vld [vmem:[%s18] sm:$0x1]
        %v2143 = vperm.slane %v2141, 0
        %v2145 = vadd.f32 %v2102, %v2143
        %v2146 = vadd.f32 %v2104, %v2143
        %v2147 = vadd.f32 %v2107, %v2143
        %v2148 = vadd.f32 %v2109, %v2143
        %v2149 = vadd.f32 %v2112, %v2143
        %v2150 = vadd.f32 %v2114, %v2143
        %v2151 = vadd.f32 %v2117, %v2143
        %v2152 = vadd.f32 %v2119, %v2143
        %v2153 = vadd.f32 %v2122, %v2143
        %v2154 = vadd.f32 %v2124, %v2143
        %v2155 = vadd.f32 %v2127, %v2143
        %v2156 = vadd.f32 %v2129, %v2143
        %v2157 = vadd.f32 %v2132, %v2143
        %v2158 = vadd.f32 %v2134, %v2143
        %v2159 = vadd.f32 %v2137, %v2143
        %v2160 = vadd.f32 %v2139, %v2143
        %v2161 = vmax.f32 %v2145, 0.0
        %v2162 = vmax.f32 %v2146, 0.0
        %v2163 = vmax.f32 %v2147, 0.0
        %v2164 = vmax.f32 %v2148, 0.0
        %v2165 = vmax.f32 %v2149, 0.0
        %v2166 = vmax.f32 %v2150, 0.0
        %v2167 = vmax.f32 %v2151, 0.0
        %v2168 = vmax.f32 %v2152, 0.0
        %v2169 = vmax.f32 %v2153, 0.0
        %v2170 = vmax.f32 %v2154, 0.0
        %v2171 = vmax.f32 %v2155, 0.0
        %v2172 = vmax.f32 %v2156, 0.0
        %v2173 = vmax.f32 %v2157, 0.0
        %v2174 = vmax.f32 %v2158, 0.0
        %v2175 = vmax.f32 %v2159, 0.0
        %v2176 = vmax.f32 %v2160, 0.0
        %v2177 = vpack.c.bf16 %v2162, %v2161
        %v2178 = vpack.c.bf16 %v2164, %v2163
        %v2179 = vpack.c.bf16 %v2166, %v2165
        %v2180 = vpack.c.bf16 %v2168, %v2167
        %v2181 = vpack.c.bf16 %v2170, %v2169
        %v2182 = vpack.c.bf16 %v2172, %v2171
        %v2183 = vpack.c.bf16 %v2174, %v2173
        %v2184 = vpack.c.bf16 %v2176, %v2175
        %v2185 = vld [vmem:[#allocation12] sm:$0xf]
        %v2186 = vld [vmem:[#allocation12 + $0x4] sm:$0xf]
        %v2187 = vld [vmem:[#allocation12 + $0x8] sm:$0xf]
        %v2188 = vld [vmem:[#allocation12 + $0xc] sm:$0xf]
        %v2189 = vld [vmem:[#allocation12 + $0x10] sm:$0xf]
        %v2190 = vld [vmem:[#allocation12 + $0x14] sm:$0xf]
        %v2191 = vld [vmem:[#allocation12 + $0x18] sm:$0xf]
        %v2192 = vld [vmem:[#allocation12 + $0x1c] sm:$0xf]
        %v2193 = vld [vmem:[#allocation12 + $0x20] sm:$0xf]
        %v2194 = vld [vmem:[#allocation12 + $0x24] sm:$0xf]
        %v2195 = vld [vmem:[#allocation12 + $0x28] sm:$0xf]
        %v2196 = vld [vmem:[#allocation12 + $0x2c] sm:$0xf]
        %v2197 = vld [vmem:[#allocation12 + $0x30] sm:$0xf]
        %v2198 = vld [vmem:[#allocation12 + $0x34] sm:$0xf]
        %v2199 = vld [vmem:[#allocation12 + $0x38] sm:$0xf]
        %v2200 = vld [vmem:[#allocation12 + $0x3c] sm:$0xf]
        %v2201 = vld [vmem:[%s20] sm:$0x1]
        %v2203 = vperm.slane %v2201, 0
        %v2221 = vunpack.c.l.b16 %v2185
        %v2222 = vunpack.c.l.b16 %v2186
        %v2223 = vunpack.c.l.b16 %v2187
        %v2224 = vunpack.c.l.b16 %v2188
        %v2225 = vunpack.c.l.b16 %v2189
        %v2226 = vunpack.c.l.b16 %v2190
        %v2227 = vunpack.c.l.b16 %v2191
        %v2228 = vunpack.c.l.b16 %v2192
        %v2229 = vunpack.c.l.b16 %v2193
        %v2230 = vunpack.c.l.b16 %v2194
        %v2231 = vunpack.c.l.b16 %v2195
        %v2232 = vunpack.c.l.b16 %v2196
        %v2233 = vunpack.c.l.b16 %v2197
        %v2234 = vunpack.c.l.b16 %v2198
        %v2235 = vunpack.c.l.b16 %v2199
        %v2236 = vunpack.c.l.b16 %v2200
        %v2237 = vpack.c.b16 %v2222, %v2221
        %v2238 = vpack.c.b16 %v2224, %v2223
        %v2239 = vpack.c.b16 %v2226, %v2225
        %v2240 = vpack.c.b16 %v2228, %v2227
        %v2241 = vpack.c.b16 %v2230, %v2229
        %v2242 = vpack.c.b16 %v2232, %v2231
        %v2243 = vpack.c.b16 %v2234, %v2233
        %v2244 = vpack.c.b16 %v2236, %v2235
        %2253 = vmatpush.bf16.msra.mxu0 %v2244
        %2254 = vmatpush.bf16.msra.mxu0 %v2243
        %2255 = vmatpush.bf16.msra.mxu0 %v2242
        %2256 = vmatpush.bf16.msra.mxu0 %v2241
        %2257 = vmatpush.bf16.msra.mxu0 %v2240
        %2258 = vmatpush.bf16.msra.mxu0 %v2239
        %2259 = vmatpush.bf16.msra.mxu0 %v2238
        %2260 = vmatpush.bf16.msra.mxu0 %v2237
        %2261 = vmatmul.bf16.gmra.mxu0 %v2177
        %v2262 = vpop.f32.mrf.mxu0
        %v2263 = vadd.f32 %v2203, %v2262
        %v2264 = vpop.f32.mrf.mxu0
        %v2265 = vadd.f32 %v2203, %v2264
        %2266 = vmatmul.bf16.gmra.mxu0 %v2178
        %v2267 = vpop.f32.mrf.mxu0
        %v2268 = vadd.f32 %v2203, %v2267
        %v2269 = vpop.f32.mrf.mxu0
        %v2270 = vadd.f32 %v2203, %v2269
        %2271 = vmatmul.bf16.gmra.mxu0 %v2179
        %v2272 = vpop.f32.mrf.mxu0
        %v2273 = vadd.f32 %v2203, %v2272
        %v2274 = vpop.f32.mrf.mxu0
        %v2275 = vadd.f32 %v2203, %v2274
        %2276 = vmatmul.bf16.gmra.mxu0 %v2180
        %v2277 = vpop.f32.mrf.mxu0
        %v2278 = vadd.f32 %v2203, %v2277
        %v2279 = vpop.f32.mrf.mxu0
        %v2280 = vadd.f32 %v2203, %v2279
        %2281 = vmatmul.bf16.gmra.mxu0 %v2181
        %v2282 = vpop.f32.mrf.mxu0
        %v2283 = vadd.f32 %v2203, %v2282
        %v2284 = vpop.f32.mrf.mxu0
        %v2285 = vadd.f32 %v2203, %v2284
        %2286 = vmatmul.bf16.gmra.mxu0 %v2182
        %v2287 = vpop.f32.mrf.mxu0
        %v2288 = vadd.f32 %v2203, %v2287
        %v2289 = vpop.f32.mrf.mxu0
        %v2290 = vadd.f32 %v2203, %v2289
        %2291 = vmatmul.bf16.gmra.mxu0 %v2183
        %v2292 = vpop.f32.mrf.mxu0
        %v2293 = vadd.f32 %v2203, %v2292
        %v2294 = vpop.f32.mrf.mxu0
        %v2295 = vadd.f32 %v2203, %v2294
        %2296 = vmatmul.bf16.gmra.mxu0 %v2184
        %v2297 = vpop.f32.mrf.mxu0
        %v2298 = vadd.f32 %v2203, %v2297
        %v2299 = vpop.f32.mrf.mxu0
        %v2300 = vadd.f32 %v2203, %v2299
        %2301 = vdwg.mxu0
        %v2302 = vxor.u32 %v2263, 2147483648
        %v2303 = vxor.u32 %v2265, 2147483648
        %v2304 = vxor.u32 %v2268, 2147483648
        %v2305 = vxor.u32 %v2270, 2147483648
        %v2306 = vxor.u32 %v2273, 2147483648
        %v2307 = vxor.u32 %v2275, 2147483648
        %v2308 = vxor.u32 %v2278, 2147483648
        %v2309 = vxor.u32 %v2280, 2147483648
        %v2310 = vxor.u32 %v2283, 2147483648
        %v2311 = vxor.u32 %v2285, 2147483648
        %v2312 = vxor.u32 %v2288, 2147483648
        %v2313 = vxor.u32 %v2290, 2147483648
        %v2314 = vxor.u32 %v2293, 2147483648
        %v2315 = vxor.u32 %v2295, 2147483648
        %v2316 = vxor.u32 %v2298, 2147483648
        %v2317 = vxor.u32 %v2300, 2147483648
        %v2318 = vmul.f32 %v2302, 1.442695
        %v2319 = vpow.pop %v2318
        %v2320 = vmul.f32 %v2303, 1.442695
        %v2321 = vpow.pop %v2320
        %v2322 = vmul.f32 %v2304, 1.442695
        %v2323 = vpow.pop %v2322
        %v2324 = vmul.f32 %v2305, 1.442695
        %v2325 = vpow.pop %v2324
        %v2326 = vmul.f32 %v2306, 1.442695
        %v2327 = vpow.pop %v2326
        %v2328 = vmul.f32 %v2307, 1.442695
        %v2329 = vpow.pop %v2328
        %v2330 = vmul.f32 %v2308, 1.442695
        %v2331 = vpow.pop %v2330
        %v2332 = vmul.f32 %v2309, 1.442695
        %v2333 = vpow.pop %v2332
        %v2334 = vmul.f32 %v2310, 1.442695
        %v2335 = vpow.pop %v2334
        %v2336 = vmul.f32 %v2311, 1.442695
        %v2337 = vpow.pop %v2336
        %v2338 = vmul.f32 %v2312, 1.442695
        %v2339 = vpow.pop %v2338
        %v2340 = vmul.f32 %v2313, 1.442695
        %v2341 = vpow.pop %v2340
        %v2342 = vmul.f32 %v2314, 1.442695
        %v2343 = vpow.pop %v2342
        %v2344 = vmul.f32 %v2315, 1.442695
        %v2345 = vpow.pop %v2344
        %v2346 = vmul.f32 %v2316, 1.442695
        %v2347 = vpow.pop %v2346
        %v2348 = vmul.f32 %v2317, 1.442695
        %v2349 = vpow.pop %v2348
        %v2350 = vadd.f32 %v2319, 1.0
        %v2351 = vadd.f32 %v2321, 1.0
        %v2352 = vadd.f32 %v2323, 1.0
        %v2353 = vadd.f32 %v2325, 1.0
        %v2354 = vadd.f32 %v2327, 1.0
        %v2355 = vadd.f32 %v2329, 1.0
        %v2356 = vadd.f32 %v2331, 1.0
        %v2357 = vadd.f32 %v2333, 1.0
        %v2358 = vadd.f32 %v2335, 1.0
        %v2359 = vadd.f32 %v2337, 1.0
        %v2360 = vadd.f32 %v2339, 1.0
        %v2361 = vadd.f32 %v2341, 1.0
        %v2362 = vadd.f32 %v2343, 1.0
        %v2363 = vadd.f32 %v2345, 1.0
        %v2364 = vadd.f32 %v2347, 1.0
        %v2365 = vadd.f32 %v2349, 1.0
        %v2366 = vrcp.pop %v2350
        %v2367 = vmul.f32 %v2350, %v2366
        %v2368 = vsub.f32 1.0, %v2367
        %v2369 = vmul.f32 %v2366, %v2368
        %v2370 = vadd.f32 %v2366, %v2369
        %vm2371 = vweird.f32 %v2350
        %vm2372 = vweird.f32 %v2366
        %vm2373 = vmor %vm2371, %vm2372
        %v2374 = vsel %vm2373, %v2366, %v2370
        %v2375 = vand.u32 2147483647, %v2350
        %vm2376 = vcmp.eq.f32.partialorder %v2375, 8.507059e+37
        %v2377 = vand.u32 %v2350, 2147483648
        %v2378 = vor.u32 1.1754944e-38, %v2377
        %v2379 = vsel %vm2376, %v2378, %v2374
        %v2380 = vmul.f32 1.0, %v2379
        %v2381 = vrcp.pop %v2351
        %v2382 = vmul.f32 %v2351, %v2381
        %v2383 = vsub.f32 1.0, %v2382
        %v2384 = vmul.f32 %v2381, %v2383
        %v2385 = vadd.f32 %v2381, %v2384
        %vm2386 = vweird.f32 %v2351
        %vm2387 = vweird.f32 %v2381
        %vm2388 = vmor %vm2386, %vm2387
        %v2389 = vsel %vm2388, %v2381, %v2385
        %v2390 = vand.u32 2147483647, %v2351
        %vm2391 = vcmp.eq.f32.partialorder %v2390, 8.507059e+37
        %v2392 = vand.u32 %v2351, 2147483648
        %v2393 = vor.u32 1.1754944e-38, %v2392
        %v2394 = vsel %vm2391, %v2393, %v2389
        %v2395 = vmul.f32 1.0, %v2394
        %v2396 = vrcp.pop %v2352
        %v2397 = vmul.f32 %v2352, %v2396
        %v2398 = vsub.f32 1.0, %v2397
        %v2399 = vmul.f32 %v2396, %v2398
        %v2400 = vadd.f32 %v2396, %v2399
        %vm2401 = vweird.f32 %v2352
        %vm2402 = vweird.f32 %v2396
        %vm2403 = vmor %vm2401, %vm2402
        %v2404 = vsel %vm2403, %v2396, %v2400
        %v2405 = vand.u32 2147483647, %v2352
        %vm2406 = vcmp.eq.f32.partialorder %v2405, 8.507059e+37
        %v2407 = vand.u32 %v2352, 2147483648
        %v2408 = vor.u32 1.1754944e-38, %v2407
        %v2409 = vsel %vm2406, %v2408, %v2404
        %v2410 = vmul.f32 1.0, %v2409
        %v2411 = vrcp.pop %v2353
        %v2412 = vmul.f32 %v2353, %v2411
        %v2413 = vsub.f32 1.0, %v2412
        %v2414 = vmul.f32 %v2411, %v2413
        %v2415 = vadd.f32 %v2411, %v2414
        %vm2416 = vweird.f32 %v2353
        %vm2417 = vweird.f32 %v2411
        %vm2418 = vmor %vm2416, %vm2417
        %v2419 = vsel %vm2418, %v2411, %v2415
        %v2420 = vand.u32 2147483647, %v2353
        %vm2421 = vcmp.eq.f32.partialorder %v2420, 8.507059e+37
        %v2422 = vand.u32 %v2353, 2147483648
        %v2423 = vor.u32 1.1754944e-38, %v2422
        %v2424 = vsel %vm2421, %v2423, %v2419
        %v2425 = vmul.f32 1.0, %v2424
        %v2426 = vrcp.pop %v2354
        %v2427 = vmul.f32 %v2354, %v2426
        %v2428 = vsub.f32 1.0, %v2427
        %v2429 = vmul.f32 %v2426, %v2428
        %v2430 = vadd.f32 %v2426, %v2429
        %vm2431 = vweird.f32 %v2354
        %vm2432 = vweird.f32 %v2426
        %vm2433 = vmor %vm2431, %vm2432
        %v2434 = vsel %vm2433, %v2426, %v2430
        %v2435 = vand.u32 2147483647, %v2354
        %vm2436 = vcmp.eq.f32.partialorder %v2435, 8.507059e+37
        %v2437 = vand.u32 %v2354, 2147483648
        %v2438 = vor.u32 1.1754944e-38, %v2437
        %v2439 = vsel %vm2436, %v2438, %v2434
        %v2440 = vmul.f32 1.0, %v2439
        %v2441 = vrcp.pop %v2355
        %v2442 = vmul.f32 %v2355, %v2441
        %v2443 = vsub.f32 1.0, %v2442
        %v2444 = vmul.f32 %v2441, %v2443
        %v2445 = vadd.f32 %v2441, %v2444
        %vm2446 = vweird.f32 %v2355
        %vm2447 = vweird.f32 %v2441
        %vm2448 = vmor %vm2446, %vm2447
        %v2449 = vsel %vm2448, %v2441, %v2445
        %v2450 = vand.u32 2147483647, %v2355
        %vm2451 = vcmp.eq.f32.partialorder %v2450, 8.507059e+37
        %v2452 = vand.u32 %v2355, 2147483648
        %v2453 = vor.u32 1.1754944e-38, %v2452
        %v2454 = vsel %vm2451, %v2453, %v2449
        %v2455 = vmul.f32 1.0, %v2454
        %v2456 = vrcp.pop %v2356
        %v2457 = vmul.f32 %v2356, %v2456
        %v2458 = vsub.f32 1.0, %v2457
        %v2459 = vmul.f32 %v2456, %v2458
        %v2460 = vadd.f32 %v2456, %v2459
        %vm2461 = vweird.f32 %v2356
        %vm2462 = vweird.f32 %v2456
        %vm2463 = vmor %vm2461, %vm2462
        %v2464 = vsel %vm2463, %v2456, %v2460
        %v2465 = vand.u32 2147483647, %v2356
        %vm2466 = vcmp.eq.f32.partialorder %v2465, 8.507059e+37
        %v2467 = vand.u32 %v2356, 2147483648
        %v2468 = vor.u32 1.1754944e-38, %v2467
        %v2469 = vsel %vm2466, %v2468, %v2464
        %v2470 = vmul.f32 1.0, %v2469
        %v2471 = vrcp.pop %v2357
        %v2472 = vmul.f32 %v2357, %v2471
        %v2473 = vsub.f32 1.0, %v2472
        %v2474 = vmul.f32 %v2471, %v2473
        %v2475 = vadd.f32 %v2471, %v2474
        %vm2476 = vweird.f32 %v2357
        %vm2477 = vweird.f32 %v2471
        %vm2478 = vmor %vm2476, %vm2477
        %v2479 = vsel %vm2478, %v2471, %v2475
        %v2480 = vand.u32 2147483647, %v2357
        %vm2481 = vcmp.eq.f32.partialorder %v2480, 8.507059e+37
        %v2482 = vand.u32 %v2357, 2147483648
        %v2483 = vor.u32 1.1754944e-38, %v2482
        %v2484 = vsel %vm2481, %v2483, %v2479
        %v2485 = vmul.f32 1.0, %v2484
        %v2486 = vrcp.pop %v2358
        %v2487 = vmul.f32 %v2358, %v2486
        %v2488 = vsub.f32 1.0, %v2487
        %v2489 = vmul.f32 %v2486, %v2488
        %v2490 = vadd.f32 %v2486, %v2489
        %vm2491 = vweird.f32 %v2358
        %vm2492 = vweird.f32 %v2486
        %vm2493 = vmor %vm2491, %vm2492
        %v2494 = vsel %vm2493, %v2486, %v2490
        %v2495 = vand.u32 2147483647, %v2358
        %vm2496 = vcmp.eq.f32.partialorder %v2495, 8.507059e+37
        %v2497 = vand.u32 %v2358, 2147483648
        %v2498 = vor.u32 1.1754944e-38, %v2497
        %v2499 = vsel %vm2496, %v2498, %v2494
        %v2500 = vmul.f32 1.0, %v2499
        %v2501 = vrcp.pop %v2359
        %v2502 = vmul.f32 %v2359, %v2501
        %v2503 = vsub.f32 1.0, %v2502
        %v2504 = vmul.f32 %v2501, %v2503
        %v2505 = vadd.f32 %v2501, %v2504
        %vm2506 = vweird.f32 %v2359
        %vm2507 = vweird.f32 %v2501
        %vm2508 = vmor %vm2506, %vm2507
        %v2509 = vsel %vm2508, %v2501, %v2505
        %v2510 = vand.u32 2147483647, %v2359
        %vm2511 = vcmp.eq.f32.partialorder %v2510, 8.507059e+37
        %v2512 = vand.u32 %v2359, 2147483648
        %v2513 = vor.u32 1.1754944e-38, %v2512
        %v2514 = vsel %vm2511, %v2513, %v2509
        %v2515 = vmul.f32 1.0, %v2514
        %v2516 = vrcp.pop %v2360
        %v2517 = vmul.f32 %v2360, %v2516
        %v2518 = vsub.f32 1.0, %v2517
        %v2519 = vmul.f32 %v2516, %v2518
        %v2520 = vadd.f32 %v2516, %v2519
        %vm2521 = vweird.f32 %v2360
        %vm2522 = vweird.f32 %v2516
        %vm2523 = vmor %vm2521, %vm2522
        %v2524 = vsel %vm2523, %v2516, %v2520
        %v2525 = vand.u32 2147483647, %v2360
        %vm2526 = vcmp.eq.f32.partialorder %v2525, 8.507059e+37
        %v2527 = vand.u32 %v2360, 2147483648
        %v2528 = vor.u32 1.1754944e-38, %v2527
        %v2529 = vsel %vm2526, %v2528, %v2524
        %v2530 = vmul.f32 1.0, %v2529
        %v2531 = vrcp.pop %v2361
        %v2532 = vmul.f32 %v2361, %v2531
        %v2533 = vsub.f32 1.0, %v2532
        %v2534 = vmul.f32 %v2531, %v2533
        %v2535 = vadd.f32 %v2531, %v2534
        %vm2536 = vweird.f32 %v2361
        %vm2537 = vweird.f32 %v2531
        %vm2538 = vmor %vm2536, %vm2537
        %v2539 = vsel %vm2538, %v2531, %v2535
        %v2540 = vand.u32 2147483647, %v2361
        %vm2541 = vcmp.eq.f32.partialorder %v2540, 8.507059e+37
        %v2542 = vand.u32 %v2361, 2147483648
        %v2543 = vor.u32 1.1754944e-38, %v2542
        %v2544 = vsel %vm2541, %v2543, %v2539
        %v2545 = vmul.f32 1.0, %v2544
        %v2546 = vrcp.pop %v2362
        %v2547 = vmul.f32 %v2362, %v2546
        %v2548 = vsub.f32 1.0, %v2547
        %v2549 = vmul.f32 %v2546, %v2548
        %v2550 = vadd.f32 %v2546, %v2549
        %vm2551 = vweird.f32 %v2362
        %vm2552 = vweird.f32 %v2546
        %vm2553 = vmor %vm2551, %vm2552
        %v2554 = vsel %vm2553, %v2546, %v2550
        %v2555 = vand.u32 2147483647, %v2362
        %vm2556 = vcmp.eq.f32.partialorder %v2555, 8.507059e+37
        %v2557 = vand.u32 %v2362, 2147483648
        %v2558 = vor.u32 1.1754944e-38, %v2557
        %v2559 = vsel %vm2556, %v2558, %v2554
        %v2560 = vmul.f32 1.0, %v2559
        %v2561 = vrcp.pop %v2363
        %v2562 = vmul.f32 %v2363, %v2561
        %v2563 = vsub.f32 1.0, %v2562
        %v2564 = vmul.f32 %v2561, %v2563
        %v2565 = vadd.f32 %v2561, %v2564
        %vm2566 = vweird.f32 %v2363
        %vm2567 = vweird.f32 %v2561
        %vm2568 = vmor %vm2566, %vm2567
        %v2569 = vsel %vm2568, %v2561, %v2565
        %v2570 = vand.u32 2147483647, %v2363
        %vm2571 = vcmp.eq.f32.partialorder %v2570, 8.507059e+37
        %v2572 = vand.u32 %v2363, 2147483648
        %v2573 = vor.u32 1.1754944e-38, %v2572
        %v2574 = vsel %vm2571, %v2573, %v2569
        %v2575 = vmul.f32 1.0, %v2574
        %v2576 = vrcp.pop %v2364
        %v2577 = vmul.f32 %v2364, %v2576
        %v2578 = vsub.f32 1.0, %v2577
        %v2579 = vmul.f32 %v2576, %v2578
        %v2580 = vadd.f32 %v2576, %v2579
        %vm2581 = vweird.f32 %v2364
        %vm2582 = vweird.f32 %v2576
        %vm2583 = vmor %vm2581, %vm2582
        %v2584 = vsel %vm2583, %v2576, %v2580
        %v2585 = vand.u32 2147483647, %v2364
        %vm2586 = vcmp.eq.f32.partialorder %v2585, 8.507059e+37
        %v2587 = vand.u32 %v2364, 2147483648
        %v2588 = vor.u32 1.1754944e-38, %v2587
        %v2589 = vsel %vm2586, %v2588, %v2584
        %v2590 = vmul.f32 1.0, %v2589
        %v2591 = vrcp.pop %v2365
        %v2592 = vmul.f32 %v2365, %v2591
        %v2593 = vsub.f32 1.0, %v2592
        %v2594 = vmul.f32 %v2591, %v2593
        %v2595 = vadd.f32 %v2591, %v2594
        %vm2596 = vweird.f32 %v2365
        %vm2597 = vweird.f32 %v2591
        %vm2598 = vmor %vm2596, %vm2597
        %v2599 = vsel %vm2598, %v2591, %v2595
        %v2600 = vand.u32 2147483647, %v2365
        %vm2601 = vcmp.eq.f32.partialorder %v2600, 8.507059e+37
        %v2602 = vand.u32 %v2365, 2147483648
        %v2603 = vor.u32 1.1754944e-38, %v2602
        %v2604 = vsel %vm2601, %v2603, %v2599
        %v2605 = vmul.f32 1.0, %v2604
        %v2606 = vmul.f32 %v1989, %v2380
        %v2607 = vmul.f32 %v1991, %v2395
        %v2608 = vmul.f32 %v1994, %v2410
        %v2609 = vmul.f32 %v1996, %v2425
        %v2610 = vmul.f32 %v1999, %v2440
        %v2611 = vmul.f32 %v2001, %v2455
        %v2612 = vmul.f32 %v2004, %v2470
        %v2613 = vmul.f32 %v2006, %v2485
        %v2614 = vmul.f32 %v2009, %v2500
        %v2615 = vmul.f32 %v2011, %v2515
        %v2616 = vmul.f32 %v2014, %v2530
        %v2617 = vmul.f32 %v2016, %v2545
        %v2618 = vmul.f32 %v2019, %v2560
        %v2619 = vmul.f32 %v2021, %v2575
        %v2620 = vmul.f32 %v2024, %v2590
        %v2621 = vmul.f32 %v2026, %v2605
        %v2622 = vlaneseq
        %v2623 = vshrl.u32 %v2622, 7
        %v2624 = vadd.s32 %v2623, 8
        %v2625 = vadd.s32 %v2623, 16
        %v2626 = vadd.s32 %v2623, 24
        %v2627 = vperm.slane %v1327, 0
        %vm2628 = vcmp.eq.s32.totalorder %v2623, %v2627
        %vm2629 = vcmp.eq.s32.totalorder %v2624, %v2627
        %vm2630 = vcmp.eq.s32.totalorder %v2625, %v2627
        %vm2631 = vcmp.eq.s32.totalorder %v2626, %v2627
        %v2632 = vsel %vm2628, 1, 0
        %v2633 = vsel %vm2629, 1, 0
        %v2634 = vsel %vm2630, 1, 0
        %v2635 = vsel %vm2631, 1, 0
        %v2636 = vcvt.s32.f32 %v2632
        %v2637 = vcvt.s32.f32 %v2633
        %v2638 = vcvt.s32.f32 %v2634
        %v2639 = vcvt.s32.f32 %v2635
        %v2640 = vpack.c.bf16 %v2637, %v2636
        %v2641 = vpack.c.bf16 %v2639, %v2638
        %v2642 = vld [vmem:[#allocation3] sm:$0xff]
        %v2643 = vld [vmem:[#allocation3 + $0x8] sm:$0xff]
        %v2644 = vld [vmem:[#allocation3 + $0x10] sm:$0xff]
        %v2645 = vld [vmem:[#allocation3 + $0x18] sm:$0xff]
        %v2646 = vpack.c.bf16 %v2607, %v2606
        %v2647 = vpack.c.bf16 %v2609, %v2608
        %v2648 = vpack.c.bf16 %v2611, %v2610
        %v2649 = vpack.c.bf16 %v2613, %v2612
        %v2650 = vpack.c.bf16 %v2615, %v2614
        %v2651 = vpack.c.bf16 %v2617, %v2616
        %v2652 = vpack.c.bf16 %v2619, %v2618
        %v2653 = vpack.c.bf16 %v2621, %v2620
        %2654 = vmatpush.bf16.msra.mxu0 %v2653
        %2655 = vmatpush.bf16.msra.mxu0 %v2652
        %2656 = vmatpush.bf16.msra.mxu0 %v2651
        %2657 = vmatpush.bf16.msra.mxu0 %v2650
        %2658 = vmatpush.bf16.msra.mxu0 %v2649
        %2659 = vmatpush.bf16.msra.mxu0 %v2648
        %2660 = vmatpush.bf16.msra.mxu0 %v2647
        %2661 = vmatpush.bf16.msra.mxu0 %v2646
        %2662 = vmatmul.bf16.gmra.mxu0 %v2640
        %v2663 = vpop.f32.mrf.mxu0
        %v2664 = vadd.f32 0.0, %v2663
        %v2665 = vpop.f32.mrf.mxu0
        %v2666 = vadd.f32 0.0, %v2665
        %2667 = vmatmul.bf16.gmra.mxu0 %v2641
        %v2668 = vpop.f32.mrf.mxu0
        %v2669 = vadd.f32 0.0, %v2668
        %v2670 = vpop.f32.mrf.mxu0
        %v2671 = vadd.f32 0.0, %v2670
        %2672 = vdwg.mxu0
        %v2673 = vadd.f32 %v2642, %v2664
        %v2674 = vadd.f32 %v2643, %v2666
        %v2675 = vadd.f32 %v2644, %v2669
        %v2676 = vadd.f32 %v2645, %v2671
        %2677 = vst [vmem:[#allocation3] sm:$0xff] %v2673
        %2678 = vst [vmem:[#allocation3 + $0x8] sm:$0xff] %v2674
        %2679 = vst [vmem:[#allocation3 + $0x10] sm:$0xff] %v2675
        %2680 = vst [vmem:[#allocation3 + $0x18] sm:$0xff] %v2676
        %p2681 = scmp.eq.s32.totalorder %s43, 2
        // Predicated region
        $region161: #{tpu_custom_call.1} parent=127 // pred_check
          %p2682 = pneg %p2681
        $region162: #{tpu_custom_call.1} parent=127 // pred_check_branch
          %2684 = sbr.rel (%p2682) target = $region164
        $region163: #{tpu_custom_call.1} parent=127 // pred_region
          %v2685 = vld [vmem:[%s0] sm:$0xf]
          %v2686 = vld [vmem:[%s0 + $0x4] sm:$0xf]
          %v2687 = vld [vmem:[%s0 + $0x8] sm:$0xf]
          %v2688 = vld [vmem:[%s0 + $0xc] sm:$0xf]
          %v2689 = vld [vmem:[#allocation13] sm:$0xf]
          %v2690 = vld [vmem:[#allocation13 + $0x4] sm:$0xf]
          %v2691 = vld [vmem:[#allocation13 + $0x8] sm:$0xf]
          %v2692 = vld [vmem:[#allocation13 + $0xc] sm:$0xf]
          %v2693 = vld [vmem:[#allocation13 + $0x10] sm:$0xf]
          %v2694 = vld [vmem:[#allocation13 + $0x14] sm:$0xf]
          %v2695 = vld [vmem:[#allocation13 + $0x18] sm:$0xf]
          %v2696 = vld [vmem:[#allocation13 + $0x1c] sm:$0xf]
          %v2697 = vld [vmem:[#allocation13 + $0x20] sm:$0xf]
          %v2698 = vld [vmem:[#allocation13 + $0x24] sm:$0xf]
          %v2699 = vld [vmem:[#allocation13 + $0x28] sm:$0xf]
          %v2700 = vld [vmem:[#allocation13 + $0x2c] sm:$0xf]
          %v2701 = vld [vmem:[#allocation13 + $0x30] sm:$0xf]
          %v2702 = vld [vmem:[#allocation13 + $0x34] sm:$0xf]
          %v2703 = vld [vmem:[#allocation13 + $0x38] sm:$0xf]
          %v2704 = vld [vmem:[#allocation13 + $0x3c] sm:$0xf]
          %v2705 = vld [vmem:[%s22] sm:$0x1]
          %v2707 = vperm.slane %v2705, 0
          %v2713 = vunpack.c.l.b16 %v2685
          %v2714 = vunpack.c.l.b16 %v2686
          %v2715 = vunpack.c.l.b16 %v2687
          %v2716 = vunpack.c.l.b16 %v2688
          %v2717 = vpack.c.b16 %v2714, %v2713
          %v2718 = vpack.c.b16 %v2716, %v2715
          %v2737 = vunpack.c.l.b16 %v2689
          %v2738 = vunpack.c.l.b16 %v2690
          %v2739 = vunpack.c.l.b16 %v2691
          %v2740 = vunpack.c.l.b16 %v2692
          %v2741 = vunpack.c.l.b16 %v2693
          %v2742 = vunpack.c.l.b16 %v2694
          %v2743 = vunpack.c.l.b16 %v2695
          %v2744 = vunpack.c.l.b16 %v2696
          %v2745 = vunpack.c.l.b16 %v2697
          %v2746 = vunpack.c.l.b16 %v2698
          %v2747 = vunpack.c.l.b16 %v2699
          %v2748 = vunpack.c.l.b16 %v2700
          %v2749 = vunpack.c.l.b16 %v2701
          %v2750 = vunpack.c.l.b16 %v2702
          %v2751 = vunpack.c.l.b16 %v2703
          %v2752 = vunpack.c.l.b16 %v2704
          %v2753 = vpack.c.b16 %v2738, %v2737
          %v2754 = vpack.c.b16 %v2740, %v2739
          %v2755 = vpack.c.b16 %v2742, %v2741
          %v2756 = vpack.c.b16 %v2744, %v2743
          %v2757 = vpack.c.b16 %v2746, %v2745
          %v2758 = vpack.c.b16 %v2748, %v2747
          %v2759 = vpack.c.b16 %v2750, %v2749
          %v2760 = vpack.c.b16 %v2752, %v2751
          %2769 = vmatpush.bf16.msra.mxu0 %v2760
          %2770 = vmatpush.bf16.msra.mxu0 %v2759
          %2771 = vmatpush.bf16.msra.mxu0 %v2758
          %2772 = vmatpush.bf16.msra.mxu0 %v2757
          %2773 = vmatpush.bf16.msra.mxu0 %v2756
          %2774 = vmatpush.bf16.msra.mxu0 %v2755
          %2775 = vmatpush.bf16.msra.mxu0 %v2754
          %2776 = vmatpush.bf16.msra.mxu0 %v2753
          %2777 = vmatmul.bf16.gmra.mxu0 %v2717
          %v2778 = vpop.f32.mrf.mxu0
          %v2779 = vadd.f32 %v2707, %v2778
          %v2780 = vpop.f32.mrf.mxu0
          %v2781 = vadd.f32 %v2707, %v2780
          %2782 = vmatmul.bf16.gmra.mxu0 %v2718
          %v2783 = vpop.f32.mrf.mxu0
          %v2784 = vadd.f32 %v2707, %v2783
          %v2785 = vpop.f32.mrf.mxu0
          %v2786 = vadd.f32 %v2707, %v2785
          %2787 = vdwg.mxu0
          %v2788 = vld [vmem:[#allocation3] sm:$0xff]
          %v2789 = vld [vmem:[#allocation3 + $0x8] sm:$0xff]
          %v2790 = vld [vmem:[#allocation3 + $0x10] sm:$0xff]
          %v2791 = vld [vmem:[#allocation3 + $0x18] sm:$0xff]
          %v2792 = vadd.f32 %v2779, %v2788
          %v2793 = vadd.f32 %v2781, %v2789
          %v2794 = vadd.f32 %v2784, %v2790
          %v2795 = vadd.f32 %v2786, %v2791
          %vm2796 = vcmp.lt.s32.totalorder %v1329, 32
          %v2797 = vsel %vm2796, 1, 0
          %v2798 = vcvt.s32.f32 %v2797
          %v2799 = vmul.f32 %v2792, %v2798
          %v2800 = vmul.f32 %v2793, %v2798
          %v2801 = vmul.f32 %v2794, %v2798
          %v2802 = vmul.f32 %v2795, %v2798
          %2803 = vadd.xlane.f32.xlu0 %v2799
          %v2804 = vpop.xlane.xlu0 %2803
          %2805 = vadd.xlane.f32.xlu0 %v2800
          %v2806 = vpop.xlane.xlu0 %2805
          %2807 = vadd.xlane.f32.xlu0 %v2801
          %v2808 = vpop.xlane.xlu0 %2807
          %2809 = vadd.xlane.f32.xlu0 %v2802
          %v2810 = vpop.xlane.xlu0 %2809
          %v2811 = vmul.f32 %v2804, 0.03125
          %v2812 = vmul.f32 %v2806, 0.03125
          %v2813 = vmul.f32 %v2808, 0.03125
          %v2814 = vmul.f32 %v2810, 0.03125
          %v2815 = vsub.f32 %v2792, %v2811
          %v2816 = vsub.f32 %v2793, %v2812
          %v2817 = vsub.f32 %v2794, %v2813
          %v2818 = vsub.f32 %v2795, %v2814
          %v2819 = vmul.f32 %v2815, %v2798
          %v2820 = vmul.f32 %v2816, %v2798
          %v2821 = vmul.f32 %v2817, %v2798
          %v2822 = vmul.f32 %v2818, %v2798
          %v2823 = vmul.f32 %v2819, %v2819
          %v2824 = vmul.f32 %v2820, %v2820
          %v2825 = vmul.f32 %v2821, %v2821
          %v2826 = vmul.f32 %v2822, %v2822
          %2827 = vadd.xlane.f32.xlu0 %v2823
          %v2828 = vpop.xlane.xlu0 %2827
          %2829 = vadd.xlane.f32.xlu0 %v2824
          %v2830 = vpop.xlane.xlu0 %2829
          %2831 = vadd.xlane.f32.xlu0 %v2825
          %v2832 = vpop.xlane.xlu0 %2831
          %2833 = vadd.xlane.f32.xlu0 %v2826
          %v2834 = vpop.xlane.xlu0 %2833
          %v2835 = vmul.f32 %v2828, 0.03125
          %v2836 = vmul.f32 %v2830, 0.03125
          %v2837 = vmul.f32 %v2832, 0.03125
          %v2838 = vmul.f32 %v2834, 0.03125
          %v2839 = vadd.f32 %v2835, 1e-05
          %v2840 = vadd.f32 %v2836, 1e-05
          %v2841 = vadd.f32 %v2837, 1e-05
          %v2842 = vadd.f32 %v2838, 1e-05
          %v2843 = vrsqrt.pop %v2839
          %v2844 = vmul.f32 %v2843, %v2839
          %v2845 = vmul.f32 %v2844, %v2843
          %v2846 = vmul.f32 0.5, %v2845
          %v2847 = vsub.f32 1.5, %v2846
          %v2848 = vmul.f32 %v2843, %v2847
          %vm2849 = vweird.f32 %v2839
          %vm2850 = vweird.f32 %v2843
          %vm2851 = vmor %vm2849, %vm2850
          %v2852 = vsel %vm2851, %v2843, %v2848
          %v2853 = vrsqrt.pop %v2840
          %v2854 = vmul.f32 %v2853, %v2840
          %v2855 = vmul.f32 %v2854, %v2853
          %v2856 = vmul.f32 0.5, %v2855
          %v2857 = vsub.f32 1.5, %v2856
          %v2858 = vmul.f32 %v2853, %v2857
          %vm2859 = vweird.f32 %v2840
          %vm2860 = vweird.f32 %v2853
          %vm2861 = vmor %vm2859, %vm2860
          %v2862 = vsel %vm2861, %v2853, %v2858
          %v2863 = vrsqrt.pop %v2841
          %v2864 = vmul.f32 %v2863, %v2841
          %v2865 = vmul.f32 %v2864, %v2863
          %v2866 = vmul.f32 0.5, %v2865
          %v2867 = vsub.f32 1.5, %v2866
          %v2868 = vmul.f32 %v2863, %v2867
          %vm2869 = vweird.f32 %v2841
          %vm2870 = vweird.f32 %v2863
          %vm2871 = vmor %vm2869, %vm2870
          %v2872 = vsel %vm2871, %v2863, %v2868
          %v2873 = vrsqrt.pop %v2842
          %v2874 = vmul.f32 %v2873, %v2842
          %v2875 = vmul.f32 %v2874, %v2873
          %v2876 = vmul.f32 0.5, %v2875
          %v2877 = vsub.f32 1.5, %v2876
          %v2878 = vmul.f32 %v2873, %v2877
          %vm2879 = vweird.f32 %v2842
          %vm2880 = vweird.f32 %v2873
          %vm2881 = vmor %vm2879, %vm2880
          %v2882 = vsel %vm2881, %v2873, %v2878
          %v2883 = vmul.f32 %v2819, %v2852
          %v2884 = vmul.f32 %v2820, %v2862
          %v2885 = vmul.f32 %v2821, %v2872
          %v2886 = vmul.f32 %v2822, %v2882
          %v2887 = vld [vmem:[%s23] sm:$0x1]
          %v2889 = vperm.slane %v2887, 0
          %v2891 = vmul.f32 %v2883, %v2889
          %v2892 = vmul.f32 %v2884, %v2889
          %v2893 = vmul.f32 %v2885, %v2889
          %v2894 = vmul.f32 %v2886, %v2889
          %v2895 = vld [vmem:[%s24] sm:$0x1]
          %v2897 = vperm.slane %v2895, 0
          %v2899 = vadd.f32 %v2891, %v2897
          %v2900 = vadd.f32 %v2892, %v2897
          %v2901 = vadd.f32 %v2893, %v2897
          %v2902 = vadd.f32 %v2894, %v2897
          %v2903 = vmax.f32 %v2899, 0.0
          %v2904 = vmax.f32 %v2900, 0.0
          %v2905 = vmax.f32 %v2901, 0.0
          %v2906 = vmax.f32 %v2902, 0.0
          %v2907 = vpack.c.bf16 %v2904, %v2903
          %v2908 = vpack.c.bf16 %v2906, %v2905
          %v2909 = vld [vmem:[#allocation15] sm:$0xf]
          %v2910 = vld [vmem:[#allocation15 + $0x4] sm:$0xf]
          %v2911 = vld [vmem:[#allocation15 + $0x8] sm:$0xf]
          %v2912 = vld [vmem:[#allocation15 + $0xc] sm:$0xf]
          %v2913 = vld [vmem:[#allocation15 + $0x10] sm:$0xf]
          %v2914 = vld [vmem:[#allocation15 + $0x14] sm:$0xf]
          %v2915 = vld [vmem:[#allocation15 + $0x18] sm:$0xf]
          %v2916 = vld [vmem:[#allocation15 + $0x1c] sm:$0xf]
          %v2917 = vld [vmem:[#allocation15 + $0x20] sm:$0xf]
          %v2918 = vld [vmem:[#allocation15 + $0x24] sm:$0xf]
          %v2919 = vld [vmem:[#allocation15 + $0x28] sm:$0xf]
          %v2920 = vld [vmem:[#allocation15 + $0x2c] sm:$0xf]
          %v2921 = vld [vmem:[#allocation15 + $0x30] sm:$0xf]
          %v2922 = vld [vmem:[#allocation15 + $0x34] sm:$0xf]
          %v2923 = vld [vmem:[#allocation15 + $0x38] sm:$0xf]
          %v2924 = vld [vmem:[#allocation15 + $0x3c] sm:$0xf]
          %v2925 = vld [vmem:[%s26] sm:$0x1]
          %v2927 = vperm.slane %v2925, 0
          %v2945 = vunpack.c.l.b16 %v2909
          %v2946 = vunpack.c.l.b16 %v2910
          %v2947 = vunpack.c.l.b16 %v2911
          %v2948 = vunpack.c.l.b16 %v2912
          %v2949 = vunpack.c.l.b16 %v2913
          %v2950 = vunpack.c.l.b16 %v2914
          %v2951 = vunpack.c.l.b16 %v2915
          %v2952 = vunpack.c.l.b16 %v2916
          %v2953 = vunpack.c.l.b16 %v2917
          %v2954 = vunpack.c.l.b16 %v2918
          %v2955 = vunpack.c.l.b16 %v2919
          %v2956 = vunpack.c.l.b16 %v2920
          %v2957 = vunpack.c.l.b16 %v2921
          %v2958 = vunpack.c.l.b16 %v2922
          %v2959 = vunpack.c.l.b16 %v2923
          %v2960 = vunpack.c.l.b16 %v2924
          %v2961 = vpack.c.b16 %v2946, %v2945
          %v2962 = vpack.c.b16 %v2948, %v2947
          %v2963 = vpack.c.b16 %v2950, %v2949
          %v2964 = vpack.c.b16 %v2952, %v2951
          %v2965 = vpack.c.b16 %v2954, %v2953
          %v2966 = vpack.c.b16 %v2956, %v2955
          %v2967 = vpack.c.b16 %v2958, %v2957
          %v2968 = vpack.c.b16 %v2960, %v2959
          %2977 = vmatpush.bf16.msra.mxu0 %v2968
          %2978 = vmatpush.bf16.msra.mxu0 %v2967
          %2979 = vmatpush.bf16.msra.mxu0 %v2966
          %2980 = vmatpush.bf16.msra.mxu0 %v2965
          %2981 = vmatpush.bf16.msra.mxu0 %v2964
          %2982 = vmatpush.bf16.msra.mxu0 %v2963
          %2983 = vmatpush.bf16.msra.mxu0 %v2962
          %2984 = vmatpush.bf16.msra.mxu0 %v2961
          %2985 = vmatmul.bf16.gmra.mxu0 %v2907
          %v2986 = vpop.f32.mrf.mxu0
          %v2987 = vadd.f32 %v2927, %v2986
          %v2988 = vpop.f32.mrf.mxu0
          %v2989 = vadd.f32 %v2927, %v2988
          %2990 = vmatmul.bf16.gmra.mxu0 %v2908
          %v2991 = vpop.f32.mrf.mxu0
          %v2992 = vadd.f32 %v2927, %v2991
          %v2993 = vpop.f32.mrf.mxu0
          %v2994 = vadd.f32 %v2927, %v2993
          %2995 = vdwg.mxu0
          %2996 = vst [vmem:[#allocation16] sm:$0xff] %v2987
          %2997 = vst [vmem:[#allocation16 + $0x8] sm:$0xff] %v2989
          %2998 = vst [vmem:[#allocation16 + $0x10] sm:$0xff] %v2992
          %2999 = vst [vmem:[#allocation16 + $0x18] sm:$0xff] %v2994
        $region164: #{tpu_custom_call.1} parent=127 // pred_fallthru
          _
        // Predicated region
        $region165: #{tpu_custom_call.1} parent=127 // pred_check
          %p3000 = pneg %p638
        $region166: #{tpu_custom_call.1} parent=127 // pred_check_branch
          %3002 = sbr.rel (%p3000) target = $region168
        $region167: #{tpu_custom_call.1} parent=127 // pred_region
          %3004 = vsyncadd [#allocation6], 0
          %s3005 = sshll.u32 [#allocation16], 4
          %s3006 = int_to_ptr.vmem [resolvable:$true] %s3005
          %s3007 = sshll.u32 %s27, 4
          %s3008 = int_to_ptr.hbm [resolvable:$true] %s3007
          %3013 = dma.vmem_to_hbm [thread:$0]  %s3006, 512, %s3008, [#allocation6], 128, 128, 8
        $region168: #{tpu_custom_call.1} parent=127 // pred_fallthru
          _
        // Predicated region
        $region169: #{tpu_custom_call.1} parent=127 // pred_check
          %p3014 = pneg %p638
        $region170: #{tpu_custom_call.1} parent=127 // pred_check_branch
          %3016 = sbr.rel (%p3014) target = $region172
        $region171: #{tpu_custom_call.1} parent=127 // pred_region
          %3018 = dma.done [#allocation6], 512
        $region172: #{tpu_custom_call.1} parent=127 // pred_fallthru
          _
      $region128: #{tpu_custom_call.1} parent=5 // pred_fallthru
        _
      %p3019 = scmp.le.s32.totalorder 2, %s38
      // Predicated region
      $region173: #{tpu_custom_call.1} parent=5 // pred_check
        %p3020 = pneg %p3019
      $region174: #{tpu_custom_call.1} parent=5 // pred_check_branch
        %3022 = sbr.rel (%p3020) target = $region176
      $region175: #{tpu_custom_call.1} parent=5 // pred_region
        %s3023 = ssub.s32 %s38, 2
      $region176: #{tpu_custom_call.1} parent=5 // pred_fallthru
        _
    $region6: #{tpu_custom_call.1} parent=1 // loop_footer
      %s42 = sadd.s32 1, %s38
    $region7: #{tpu_custom_call.1} parent=1 // loop_footer_branch
      %37 = sbr.rel target = $region3
    $region8: #{tpu_custom_call.1} parent=1 // loop_exit
      _
    %3024 = vsyncpa [#allocation5], 1
    %s3025 = scalar_lea.sflag [#allocation5], 1
    %3026 = vsyncpa %s3025, 1
    %3027 = vsyncpa [#allocation8], 1
    %3028 = vsyncpa [#allocation11], 1
    %3029 = vsyncpa [#allocation14], 1
    %3030 = vsyncpa [#allocation6], 1
    %s3031 = scalar_lea.sflag [#allocation6], 1
    %3032 = vsyncpa %s3031, 1

</llo_original>
